<compile_context>
chip_gen: v5e
topology: v5e:2x2
jax: 0.10.0
libtpu: 0.0.40
codegen_flags: <defaults>
</compile_context>

<pallas_src>
import jax
import jax.numpy as jnp
from jax import lax
from jax.experimental import pallas as pl
from jax.experimental.pallas import tpu as pltpu


# ------------------------------ fused kernel --------------------------------

def _make_block_kernel(H, W, Cin, Cout, K, pad, downsample):
    S = H * W
    H2, W2 = H // 2, W // 2
    S2 = H2 * W2

    def kernel(x_ref, w1_ref, b1_ref, w2_ref, b2_ref, wsc_ref, bsc_ref,
               o_ref, xp_ref, hp_ref):
        # ---- stage the input into a zero-padded VMEM image (in-kernel pad) --
        x = x_ref[...]                                        # (H, W, Cin) f32
        xp_ref[...] = jnp.zeros_like(xp_ref)
        xp_ref[pad:pad + H, pad:pad + W, :] = x

        # ---- conv1 + bias + ReLU: K*K per-tap (S, Cin)@(Cin, Cout) matmuls --
        acc1 = jnp.zeros((S, Cout), jnp.float32)
        for ky in range(K):
            for kx in range(K):
                patch = xp_ref[ky:ky + H, kx:kx + W, :].reshape(S, Cin)
                acc1 = acc1 + jnp.dot(patch.astype(jnp.bfloat16),
                                      w1_ref[ky, kx, :, :],
                                      preferred_element_type=jnp.float32)
        h = jnp.maximum(acc1 + b1_ref[...], 0.0)              # (S, Cout) f32

        # ---- stash zero-padded h in VMEM for conv2 --------------------------
        hp_ref[...] = jnp.zeros_like(hp_ref)
        hp_ref[pad:pad + H, pad:pad + W, :] = h.reshape(H, W, Cout)

        # ---- conv2 (+bias), accumulated directly in lane-dense (Cout, S) ----
        # i.e. NCHW orientation; each tap is dot_general(w_tap[o,i], patch[n,i])
        acc2 = jnp.zeros((Cout, S), jnp.float32)
        for ky in range(K):
            for kx in range(K):
                patch = hp_ref[ky:ky + H, kx:kx + W, :].reshape(S, Cout)
                acc2 = acc2 + lax.dot_general(
                    w2_ref[ky, kx, :, :], patch.astype(jnp.bfloat16),
                    (((1,), (1,)), ((), ())),
                    preferred_element_type=jnp.float32)
        acc2 = acc2 + b2_ref[...]                             # (Cout, 1) bcast

        xflat = x.reshape(S, Cin)                             # (S, Cin) f32

        if not downsample:
            # 1x1 shortcut conv = one matmul, fused residual add
            sc = lax.dot_general(wsc_ref[...], xflat,
                                 (((1,), (1,)), ((), ())),
                                 preferred_element_type=jnp.float32)  # (Cout,S)
            o_ref[...] = acc2 + sc + bsc_ref[...]
        else:
            # 2x2 average pooling as one MXU matmul with a 0/0.25 matrix
            win = lax.broadcasted_iota(jnp.int32, (S2, S), 0)   # output window
            pix = lax.broadcasted_iota(jnp.int32, (S2, S), 1)   # input pixel
            same = (((pix // W) // 2 == win // W2) &
                    ((pix % W) // 2 == win % W2))
            P = jnp.where(same, 0.25, 0.0).astype(jnp.float32)  # (S2, S)

            pooled = lax.dot_general(acc2, P, (((1,), (1,)), ((), ())),
                                     preferred_element_type=jnp.float32)   # (Cout,S2)
            x_pool = jnp.dot(P, xflat,
                             preferred_element_type=jnp.float32)           # (S2,Cin)
            sc = lax.dot_general(wsc_ref[...], x_pool,
                                 (((1,), (1,)), ((), ())),
                                 preferred_element_type=jnp.float32)       # (Cout,S2)
            o_ref[...] = pooled + sc + bsc_ref[...]

    return kernel


# ------------------------ parameters / spectral norm ------------------------

def _l2_normalize(v, eps):
    return v / jnp.maximum(jnp.linalg.norm(v), eps)


def spectral_normalize(w_oihw, key, eps=1e-4, n_iter=5):
    """W / sigma_max(W.view(out, -1)) via power iteration (as nn.utils.spectral_norm)."""
    o = w_oihw.shape[0]
    wm = w_oihw.reshape(o, -1)
    u = _l2_normalize(jax.random.normal(key, (o,), jnp.float32), eps)
    for _ in range(n_iter):
        v = _l2_normalize(wm.T @ u, eps)
        u = _l2_normalize(wm @ v, eps)
    sigma = u @ (wm @ v)
    return w_oihw / sigma


def init_params(key, in_ch, out_ch, ksize=3):
    ks = jax.random.split(key, 9)
    w1 = 0.1 * jax.random.normal(ks[0], (out_ch, in_ch, ksize, ksize), jnp.float32)
    b1 = 0.05 * jax.random.normal(ks[1], (out_ch,), jnp.float32)
    w2 = 0.1 * jax.random.normal(ks[2], (out_ch, out_ch, ksize, ksize), jnp.float32)
    b2 = 0.05 * jax.random.normal(ks[3], (out_ch,), jnp.float32)
    wsc = 0.1 * jax.random.normal(ks[4], (out_ch, in_ch, 1, 1), jnp.float32)
    bsc = 0.05 * jax.random.normal(ks[5], (out_ch,), jnp.float32)
    w1 = spectral_normalize(w1, ks[6])
    w2 = spectral_normalize(w2, ks[7])
    wsc = spectral_normalize(wsc, ks[8])
    return dict(w1=w1, b1=b1, w2=w2, b2=b2, wsc=wsc, bsc=bsc)


# ------------------------------ forward pass -------------------------------

def optimized_block_forward(x_nchw, params, downsample=False, ksize=3, pad=1):
    B, Cin, H, W = x_nchw.shape
    Cout = params["w1"].shape[0]
    K = ksize
    assert 2 * pad == K - 1, "kernel assumes 'same' stride-1 conv (2*pad == K-1)"
    if downsample:
        assert H % 2 == 0 and W % 2 == 0
    Hp, Wp = H + 2 * pad, W + 2 * pad
    Ho, Wo = (H // 2, W // 2) if downsample else (H, W)
    S_out = Ho * Wo

    # weight / bias prep (plain JAX, hoisted; bf16 for MXU operands)
    w1 = jnp.transpose(params["w1"], (2, 3, 1, 0)).astype(jnp.bfloat16)   # (K,K,Cin,Cout)
    w2t = jnp.transpose(params["w2"], (2, 3, 0, 1)).astype(jnp.bfloat16)  # (K,K,Cout,Cout) per-tap (out,in)
    wsct = params["wsc"][:, :, 0, 0].astype(jnp.float32)                  # (Cout, Cin)
    b1 = params["b1"].reshape(1, Cout).astype(jnp.float32)
    b2 = params["b2"].reshape(Cout, 1).astype(jnp.float32)
    bsc = params["bsc"].reshape(Cout, 1).astype(jnp.float32)

    # TODO(synk): the NCHW -> NHWC input transpose stays as XLA glue at the boundary.
    x_nhwc = jnp.transpose(x_nchw, (0, 2, 3, 1)).astype(jnp.float32)

    kernel = _make_block_kernel(H, W, Cin, Cout, K, pad, downsample)

    out = pl.pallas_call(
        kernel,
        out_shape=jax.ShapeDtypeStruct((B, Cout, S_out), jnp.float32),
        grid=(B,),
        in_specs=[
            pl.BlockSpec((pl.Squeezed(), H, W, Cin), lambda b: (b, 0, 0, 0)),
            pl.BlockSpec((K, K, Cin, Cout), lambda b: (0, 0, 0, 0)),
            pl.BlockSpec((1, Cout), lambda b: (0, 0)),
            pl.BlockSpec((K, K, Cout, Cout), lambda b: (0, 0, 0, 0)),
            pl.BlockSpec((Cout, 1), lambda b: (0, 0)),
            pl.BlockSpec((Cout, Cin), lambda b: (0, 0)),
            pl.BlockSpec((Cout, 1), lambda b: (0, 0)),
        ],
        out_specs=pl.BlockSpec((pl.Squeezed(), Cout, S_out), lambda b: (b, 0, 0)),
        scratch_shapes=[
            pltpu.VMEM((Hp, Wp, Cin), jnp.float32),    # zero-padded x
            pltpu.VMEM((Hp, Wp, Cout), jnp.float32),   # zero-padded h
        ],
        compiler_params=pltpu.CompilerParams(dimension_semantics=("parallel",)),
    )(x_nhwc, w1, b1, w2t, b2, wsct, bsc)

    # Output is already in NCHW orientation (Cout on the sublane axis, pixels
    # lane-dense); the reshape below is layout-free.
    return out.reshape(B, Cout, Ho, Wo)


# ------------------------ pure-JAX reference (check) ------------------------

def _conv_ref(x, w, b, pad):
    y = lax.conv_general_dilated(x, w, (1, 1), ((pad, pad), (pad, pad)),
                                 dimension_numbers=("NCHW", "OIHW", "NCHW"))
    return y + b.reshape(1, -1, 1, 1)


def _avg_pool2_nchw(x):
    B, C, H, W = x.shape
    return x.reshape(B, C, H // 2, 2, W // 2, 2).mean(axis=(3, 5))


def optimized_block_ref(x, p, downsample=False):
    h = jax.nn.relu(_conv_ref(x, p["w1"], p["b1"], 1))
    h = _conv_ref(h, p["w2"], p["b2"], 1)
    if downsample:
        h = _avg_pool2_nchw(h)
        xs = _avg_pool2_nchw(x)
    else:
        xs = x
    return h + _conv_ref(xs, p["wsc"], p["bsc"], 0)


# ----------------------------------- main -----------------------------------

if __name__ == "__main__":
    key = jax.random.PRNGKey(0)
    kx_, kp_ = jax.random.split(key)
    B, in_ch, out_ch, H, W = 2, 8, 16, 16, 16
    x = jax.random.normal(kx_, (B, in_ch, H, W), jnp.float32)
    params = init_params(kp_, in_ch, out_ch)

    # default (downsample=False) path
    out = jax.block_until_ready(optimized_block_forward(x, params, downsample=False))
    ref = optimized_block_ref(x, params, downsample=False)
    assert out.shape == (B, out_ch, H, W), out.shape
    assert jnp.allclose(out, ref, atol=3e-2, rtol=3e-2), (
        "mismatch (downsample=False), max abs diff = %e"
        % float(jnp.max(jnp.abs(out - ref))))

    # downsample=True path
    out_ds = jax.block_until_ready(optimized_block_forward(x, params, downsample=True))
    ref_ds = optimized_block_ref(x, params, downsample=True)
    assert out_ds.shape == (B, out_ch, H // 2, W // 2), out_ds.shape
    assert jnp.allclose(out_ds, ref_ds, atol=3e-2, rtol=3e-2), (
        "mismatch (downsample=True), max abs diff = %e"
        % float(jnp.max(jnp.abs(out_ds - ref_ds))))

    print("KERNEL_OK")
</pallas_src>

<mosaic_0001>
module attributes {stable_mosaic.version = 11 : i64} {
  func.func @kernel(%arg0: i32, %arg1: memref<1x16x16x8xf32, #tpu.memory_space<vmem>>, %arg2: memref<3x3x8x16xbf16, #tpu.memory_space<vmem>>, %arg3: memref<1x16xf32, #tpu.memory_space<vmem>>, %arg4: memref<3x3x16x16xbf16, #tpu.memory_space<vmem>>, %arg5: memref<16x1xf32, #tpu.memory_space<vmem>>, %arg6: memref<16x8xf32, #tpu.memory_space<vmem>>, %arg7: memref<16x1xf32, #tpu.memory_space<vmem>>, %arg8: memref<1x16x256xf32, #tpu.memory_space<vmem>>, %arg9: memref<18x18x8xf32, #tpu.memory_space<vmem>>, %arg10: memref<18x18x16xf32, #tpu.memory_space<vmem>>) attributes {dimension_semantics = [#tpu.dimension_semantics<parallel>], iteration_bounds = array<i64: 2>, scalar_prefetch = 0 : i64, scratch_operands = 2 : i64, tpu.core_type = #tpu.core_type<tc>, window_params = [{transform_indices = @transform_0, window_bounds = array<i64: 1, 16, 16, 8>}, {pipeline_mode = #tpu.pipeline_mode<synchronous>, transform_indices = @transform_1, window_bounds = array<i64: 3, 3, 8, 16>}, {pipeline_mode = #tpu.pipeline_mode<synchronous>, transform_indices = @transform_2, window_bounds = array<i64: 1, 16>}, {pipeline_mode = #tpu.pipeline_mode<synchronous>, transform_indices = @transform_3, window_bounds = array<i64: 3, 3, 16, 16>}, {pipeline_mode = #tpu.pipeline_mode<synchronous>, transform_indices = @transform_4, window_bounds = array<i64: 16, 1>}, {pipeline_mode = #tpu.pipeline_mode<synchronous>, transform_indices = @transform_5, window_bounds = array<i64: 16, 8>}, {pipeline_mode = #tpu.pipeline_mode<synchronous>, transform_indices = @transform_6, window_bounds = array<i64: 16, 1>}, {transform_indices = @transform_7, window_bounds = array<i64: 1, 16, 256>}]} {
    %c0 = arith.constant 0 : index
    %c0_0 = arith.constant 0 : index
    %c0_1 = arith.constant 0 : index
    %c0_2 = arith.constant 0 : index
    %0 = vector.load %arg1[%c0, %c0_0, %c0_1, %c0_2] : memref<1x16x16x8xf32, #tpu.memory_space<vmem>>, vector<1x16x16x8xf32>
    %1 = vector.shape_cast %0 : vector<1x16x16x8xf32> to vector<16x16x8xf32>
    %cst = arith.constant 0.000000e+00 : f32
    %2 = vector.broadcast %cst : f32 to vector<18x18x8xf32>
    %c0_3 = arith.constant 0 : index
    %c0_4 = arith.constant 0 : index
    %c0_5 = arith.constant 0 : index
    %3 = vector.load %arg9[%c0_3, %c0_4, %c0_5] : memref<18x18x8xf32, #tpu.memory_space<vmem>>, vector<18x18x8xf32>
    tpu.vector_store %arg9[%c0_3, %c0_4, %c0_5], %2 {strides = array<i32>} : memref<18x18x8xf32, #tpu.memory_space<vmem>>, vector<18x18x8xf32>,
    %c1 = arith.constant 1 : index
    %c1_6 = arith.constant 1 : index
    %c0_7 = arith.constant 0 : index
    %4 = vector.load %arg9[%c1, %c1_6, %c0_7] : memref<18x18x8xf32, #tpu.memory_space<vmem>>, vector<16x16x8xf32>
    tpu.vector_store %arg9[%c1, %c1_6, %c0_7], %1 {strides = array<i32>} : memref<18x18x8xf32, #tpu.memory_space<vmem>>, vector<16x16x8xf32>,
    %cst_8 = arith.constant 0.000000e+00 : f32
    %5 = vector.broadcast %cst_8 : f32 to vector<256x16xf32>
    %c0_9 = arith.constant 0 : index
    %c0_10 = arith.constant 0 : index
    %c0_11 = arith.constant 0 : index
    %6 = vector.load %arg9[%c0_9, %c0_10, %c0_11] : memref<18x18x8xf32, #tpu.memory_space<vmem>>, vector<16x16x8xf32>
    %7 = vector.shape_cast %6 : vector<16x16x8xf32> to vector<256x8xf32>
    %8 = arith.truncf %7 : vector<256x8xf32> to vector<256x8xbf16>
    %c0_12 = arith.constant 0 : index
    %c0_13 = arith.constant 0 : index
    %c0_14 = arith.constant 0 : index
    %c0_15 = arith.constant 0 : index
    %9 = vector.load %arg2[%c0_12, %c0_13, %c0_14, %c0_15] : memref<3x3x8x16xbf16, #tpu.memory_space<vmem>>, vector<1x1x8x16xbf16>
    %10 = vector.shape_cast %9 : vector<1x1x8x16xbf16> to vector<8x16xbf16>
    %cst_16 = arith.constant dense<0.000000e+00> : vector<256x16xf32>
    %11 = tpu.matmul %8, %10, %cst_16 {dimension_numbers = #tpu.dot_dimension_numbers<[1], [0], [0], [1], [0, 0, 1, 1], [], []>} : vector<256x8xbf16>, vector<8x16xbf16>, vector<256x16xf32> -> vector<256x16xf32>
    %12 = arith.addf %5, %11 : vector<256x16xf32>
    %c0_17 = arith.constant 0 : index
    %c1_18 = arith.constant 1 : index
    %c0_19 = arith.constant 0 : index
    %13 = vector.load %arg9[%c0_17, %c1_18, %c0_19] : memref<18x18x8xf32, #tpu.memory_space<vmem>>, vector<16x16x8xf32>
    %14 = vector.shape_cast %13 : vector<16x16x8xf32> to vector<256x8xf32>
    %15 = arith.truncf %14 : vector<256x8xf32> to vector<256x8xbf16>
    %c0_20 = arith.constant 0 : index
    %c1_21 = arith.constant 1 : index
    %c0_22 = arith.constant 0 : index
    %c0_23 = arith.constant 0 : index
    %16 = vector.load %arg2[%c0_20, %c1_21, %c0_22, %c0_23] : memref<3x3x8x16xbf16, #tpu.memory_space<vmem>>, vector<1x1x8x16xbf16>
    %17 = vector.shape_cast %16 : vector<1x1x8x16xbf16> to vector<8x16xbf16>
    %cst_24 = arith.constant dense<0.000000e+00> : vector<256x16xf32>
    %18 = tpu.matmul %15, %17, %cst_24 {dimension_numbers = #tpu.dot_dimension_numbers<[1], [0], [0], [1], [0, 0, 1, 1], [], []>} : vector<256x8xbf16>, vector<8x16xbf16>, vector<256x16xf32> -> vector<256x16xf32>
    %19 = arith.addf %12, %18 : vector<256x16xf32>
    %c0_25 = arith.constant 0 : index
    %c2 = arith.constant 2 : index
    %c0_26 = arith.constant 0 : index
    %20 = vector.load %arg9[%c0_25, %c2, %c0_26] : memref<18x18x8xf32, #tpu.memory_space<vmem>>, vector<16x16x8xf32>
    %21 = vector.shape_cast %20 : vector<16x16x8xf32> to vector<256x8xf32>
    %22 = arith.truncf %21 : vector<256x8xf32> to vector<256x8xbf16>
    %c0_27 = arith.constant 0 : index
    %c2_28 = arith.constant 2 : index
    %c0_29 = arith.constant 0 : index
    %c0_30 = arith.constant 0 : index
    %23 = vector.load %arg2[%c0_27, %c2_28, %c0_29, %c0_30] : memref<3x3x8x16xbf16, #tpu.memory_space<vmem>>, vector<1x1x8x16xbf16>
    %24 = vector.shape_cast %23 : vector<1x1x8x16xbf16> to vector<8x16xbf16>
    %cst_31 = arith.constant dense<0.000000e+00> : vector<256x16xf32>
    %25 = tpu.matmul %22, %24, %cst_31 {dimension_numbers = #tpu.dot_dimension_numbers<[1], [0], [0], [1], [0, 0, 1, 1], [], []>} : vector<256x8xbf16>, vector<8x16xbf16>, vector<256x16xf32> -> vector<256x16xf32>
    %26 = arith.addf %19, %25 : vector<256x16xf32>
    %c1_32 = arith.constant 1 : index
    %c0_33 = arith.constant 0 : index
    %c0_34 = arith.constant 0 : index
    %27 = vector.load %arg9[%c1_32, %c0_33, %c0_34] : memref<18x18x8xf32, #tpu.memory_space<vmem>>, vector<16x16x8xf32>
    %28 = vector.shape_cast %27 : vector<16x16x8xf32> to vector<256x8xf32>
    %29 = arith.truncf %28 : vector<256x8xf32> to vector<256x8xbf16>
    %c1_35 = arith.constant 1 : index
    %c0_36 = arith.constant 0 : index
    %c0_37 = arith.constant 0 : index
    %c0_38 = arith.constant 0 : index
    %30 = vector.load %arg2[%c1_35, %c0_36, %c0_37, %c0_38] : memref<3x3x8x16xbf16, #tpu.memory_space<vmem>>, vector<1x1x8x16xbf16>
    %31 = vector.shape_cast %30 : vector<1x1x8x16xbf16> to vector<8x16xbf16>
    %cst_39 = arith.constant dense<0.000000e+00> : vector<256x16xf32>
    %32 = tpu.matmul %29, %31, %cst_39 {dimension_numbers = #tpu.dot_dimension_numbers<[1], [0], [0], [1], [0, 0, 1, 1], [], []>} : vector<256x8xbf16>, vector<8x16xbf16>, vector<256x16xf32> -> vector<256x16xf32>
    %33 = arith.addf %26, %32 : vector<256x16xf32>
    %c1_40 = arith.constant 1 : index
    %c1_41 = arith.constant 1 : index
    %c0_42 = arith.constant 0 : index
    %34 = vector.load %arg9[%c1_40, %c1_41, %c0_42] : memref<18x18x8xf32, #tpu.memory_space<vmem>>, vector<16x16x8xf32>
    %35 = vector.shape_cast %34 : vector<16x16x8xf32> to vector<256x8xf32>
    %36 = arith.truncf %35 : vector<256x8xf32> to vector<256x8xbf16>
    %c1_43 = arith.constant 1 : index
    %c1_44 = arith.constant 1 : index
    %c0_45 = arith.constant 0 : index
    %c0_46 = arith.constant 0 : index
    %37 = vector.load %arg2[%c1_43, %c1_44, %c0_45, %c0_46] : memref<3x3x8x16xbf16, #tpu.memory_space<vmem>>, vector<1x1x8x16xbf16>
    %38 = vector.shape_cast %37 : vector<1x1x8x16xbf16> to vector<8x16xbf16>
    %cst_47 = arith.constant dense<0.000000e+00> : vector<256x16xf32>
    %39 = tpu.matmul %36, %38, %cst_47 {dimension_numbers = #tpu.dot_dimension_numbers<[1], [0], [0], [1], [0, 0, 1, 1], [], []>} : vector<256x8xbf16>, vector<8x16xbf16>, vector<256x16xf32> -> vector<256x16xf32>
    %40 = arith.addf %33, %39 : vector<256x16xf32>
    %c1_48 = arith.constant 1 : index
    %c2_49 = arith.constant 2 : index
    %c0_50 = arith.constant 0 : index
    %41 = vector.load %arg9[%c1_48, %c2_49, %c0_50] : memref<18x18x8xf32, #tpu.memory_space<vmem>>, vector<16x16x8xf32>
    %42 = vector.shape_cast %41 : vector<16x16x8xf32> to vector<256x8xf32>
    %43 = arith.truncf %42 : vector<256x8xf32> to vector<256x8xbf16>
    %c1_51 = arith.constant 1 : index
    %c2_52 = arith.constant 2 : index
    %c0_53 = arith.constant 0 : index
    %c0_54 = arith.constant 0 : index
    %44 = vector.load %arg2[%c1_51, %c2_52, %c0_53, %c0_54] : memref<3x3x8x16xbf16, #tpu.memory_space<vmem>>, vector<1x1x8x16xbf16>
    %45 = vector.shape_cast %44 : vector<1x1x8x16xbf16> to vector<8x16xbf16>
    %cst_55 = arith.constant dense<0.000000e+00> : vector<256x16xf32>
    %46 = tpu.matmul %43, %45, %cst_55 {dimension_numbers = #tpu.dot_dimension_numbers<[1], [0], [0], [1], [0, 0, 1, 1], [], []>} : vector<256x8xbf16>, vector<8x16xbf16>, vector<256x16xf32> -> vector<256x16xf32>
    %47 = arith.addf %40, %46 : vector<256x16xf32>
    %c2_56 = arith.constant 2 : index
    %c0_57 = arith.constant 0 : index
    %c0_58 = arith.constant 0 : index
    %48 = vector.load %arg9[%c2_56, %c0_57, %c0_58] : memref<18x18x8xf32, #tpu.memory_space<vmem>>, vector<16x16x8xf32>
    %49 = vector.shape_cast %48 : vector<16x16x8xf32> to vector<256x8xf32>
    %50 = arith.truncf %49 : vector<256x8xf32> to vector<256x8xbf16>
    %c2_59 = arith.constant 2 : index
    %c0_60 = arith.constant 0 : index
    %c0_61 = arith.constant 0 : index
    %c0_62 = arith.constant 0 : index
    %51 = vector.load %arg2[%c2_59, %c0_60, %c0_61, %c0_62] : memref<3x3x8x16xbf16, #tpu.memory_space<vmem>>, vector<1x1x8x16xbf16>
    %52 = vector.shape_cast %51 : vector<1x1x8x16xbf16> to vector<8x16xbf16>
    %cst_63 = arith.constant dense<0.000000e+00> : vector<256x16xf32>
    %53 = tpu.matmul %50, %52, %cst_63 {dimension_numbers = #tpu.dot_dimension_numbers<[1], [0], [0], [1], [0, 0, 1, 1], [], []>} : vector<256x8xbf16>, vector<8x16xbf16>, vector<256x16xf32> -> vector<256x16xf32>
    %54 = arith.addf %47, %53 : vector<256x16xf32>
    %c2_64 = arith.constant 2 : index
    %c1_65 = arith.constant 1 : index
    %c0_66 = arith.constant 0 : index
    %55 = vector.load %arg9[%c2_64, %c1_65, %c0_66] : memref<18x18x8xf32, #tpu.memory_space<vmem>>, vector<16x16x8xf32>
    %56 = vector.shape_cast %55 : vector<16x16x8xf32> to vector<256x8xf32>
    %57 = arith.truncf %56 : vector<256x8xf32> to vector<256x8xbf16>
    %c2_67 = arith.constant 2 : index
    %c1_68 = arith.constant 1 : index
    %c0_69 = arith.constant 0 : index
    %c0_70 = arith.constant 0 : index
    %58 = vector.load %arg2[%c2_67, %c1_68, %c0_69, %c0_70] : memref<3x3x8x16xbf16, #tpu.memory_space<vmem>>, vector<1x1x8x16xbf16>
    %59 = vector.shape_cast %58 : vector<1x1x8x16xbf16> to vector<8x16xbf16>
    %cst_71 = arith.constant dense<0.000000e+00> : vector<256x16xf32>
    %60 = tpu.matmul %57, %59, %cst_71 {dimension_numbers = #tpu.dot_dimension_numbers<[1], [0], [0], [1], [0, 0, 1, 1], [], []>} : vector<256x8xbf16>, vector<8x16xbf16>, vector<256x16xf32> -> vector<256x16xf32>
    %61 = arith.addf %54, %60 : vector<256x16xf32>
    %c2_72 = arith.constant 2 : index
    %c2_73 = arith.constant 2 : index
    %c0_74 = arith.constant 0 : index
    %62 = vector.load %arg9[%c2_72, %c2_73, %c0_74] : memref<18x18x8xf32, #tpu.memory_space<vmem>>, vector<16x16x8xf32>
    %63 = vector.shape_cast %62 : vector<16x16x8xf32> to vector<256x8xf32>
    %64 = arith.truncf %63 : vector<256x8xf32> to vector<256x8xbf16>
    %c2_75 = arith.constant 2 : index
    %c2_76 = arith.constant 2 : index
    %c0_77 = arith.constant 0 : index
    %c0_78 = arith.constant 0 : index
    %65 = vector.load %arg2[%c2_75, %c2_76, %c0_77, %c0_78] : memref<3x3x8x16xbf16, #tpu.memory_space<vmem>>, vector<1x1x8x16xbf16>
    %66 = vector.shape_cast %65 : vector<1x1x8x16xbf16> to vector<8x16xbf16>
    %cst_79 = arith.constant dense<0.000000e+00> : vector<256x16xf32>
    %67 = tpu.matmul %64, %66, %cst_79 {dimension_numbers = #tpu.dot_dimension_numbers<[1], [0], [0], [1], [0, 0, 1, 1], [], []>} : vector<256x8xbf16>, vector<8x16xbf16>, vector<256x16xf32> -> vector<256x16xf32>
    %68 = arith.addf %61, %67 : vector<256x16xf32>
    %c0_80 = arith.constant 0 : index
    %c0_81 = arith.constant 0 : index
    %69 = vector.load %arg3[%c0_80, %c0_81] : memref<1x16xf32, #tpu.memory_space<vmem>>, vector<1x16xf32>
    %70 = vector.broadcast %69 : vector<1x16xf32> to vector<256x16xf32>
    %71 = arith.addf %68, %70 : vector<256x16xf32>
    %cst_82 = arith.constant 0.000000e+00 : f32
    %72 = vector.broadcast %cst_82 : f32 to vector<256x16xf32>
    %73 = arith.maximumf %71, %72 : vector<256x16xf32>
    %cst_83 = arith.constant 0.000000e+00 : f32
    %74 = vector.broadcast %cst_83 : f32 to vector<18x18x16xf32>
    %c0_84 = arith.constant 0 : index
    %c0_85 = arith.constant 0 : index
    %c0_86 = arith.constant 0 : index
    %75 = vector.load %arg10[%c0_84, %c0_85, %c0_86] : memref<18x18x16xf32, #tpu.memory_space<vmem>>, vector<18x18x16xf32>
    tpu.vector_store %arg10[%c0_84, %c0_85, %c0_86], %74 {strides = array<i32>} : memref<18x18x16xf32, #tpu.memory_space<vmem>>, vector<18x18x16xf32>,
    %76 = vector.shape_cast %73 : vector<256x16xf32> to vector<16x16x16xf32>
    %c1_87 = arith.constant 1 : index
    %c1_88 = arith.constant 1 : index
    %c0_89 = arith.constant 0 : index
    %77 = vector.load %arg10[%c1_87, %c1_88, %c0_89] : memref<18x18x16xf32, #tpu.memory_space<vmem>>, vector<16x16x16xf32>
    tpu.vector_store %arg10[%c1_87, %c1_88, %c0_89], %76 {strides = array<i32>} : memref<18x18x16xf32, #tpu.memory_space<vmem>>, vector<16x16x16xf32>,
    %cst_90 = arith.constant 0.000000e+00 : f32
    %78 = vector.broadcast %cst_90 : f32 to vector<16x256xf32>
    %c0_91 = arith.constant 0 : index
    %c0_92 = arith.constant 0 : index
    %c0_93 = arith.constant 0 : index
    %79 = vector.load %arg10[%c0_91, %c0_92, %c0_93] : memref<18x18x16xf32, #tpu.memory_space<vmem>>, vector<16x16x16xf32>
    %80 = vector.shape_cast %79 : vector<16x16x16xf32> to vector<256x16xf32>
    %c0_94 = arith.constant 0 : index
    %c0_95 = arith.constant 0 : index
    %c0_96 = arith.constant 0 : index
    %c0_97 = arith.constant 0 : index
    %81 = vector.load %arg4[%c0_94, %c0_95, %c0_96, %c0_97] : memref<3x3x16x16xbf16, #tpu.memory_space<vmem>>, vector<1x1x16x16xbf16>
    %82 = vector.shape_cast %81 : vector<1x1x16x16xbf16> to vector<16x16xbf16>
    %83 = arith.truncf %80 : vector<256x16xf32> to vector<256x16xbf16>
    %cst_98 = arith.constant dense<0.000000e+00> : vector<16x256xf32>
    %84 = tpu.matmul %82, %83, %cst_98 {dimension_numbers = #tpu.dot_dimension_numbers<[1], [1], [0], [0], [0, 0, 1, 0], [], []>} : vector<16x16xbf16>, vector<256x16xbf16>, vector<16x256xf32> -> vector<16x256xf32>
    %85 = arith.addf %78, %84 : vector<16x256xf32>
    %c0_99 = arith.constant 0 : index
    %c1_100 = arith.constant 1 : index
    %c0_101 = arith.constant 0 : index
    %86 = vector.load %arg10[%c0_99, %c1_100, %c0_101] : memref<18x18x16xf32, #tpu.memory_space<vmem>>, vector<16x16x16xf32>
    %87 = vector.shape_cast %86 : vector<16x16x16xf32> to vector<256x16xf32>
    %c0_102 = arith.constant 0 : index
    %c1_103 = arith.constant 1 : index
    %c0_104 = arith.constant 0 : index
    %c0_105 = arith.constant 0 : index
    %88 = vector.load %arg4[%c0_102, %c1_103, %c0_104, %c0_105] : memref<3x3x16x16xbf16, #tpu.memory_space<vmem>>, vector<1x1x16x16xbf16>
    %89 = vector.shape_cast %88 : vector<1x1x16x16xbf16> to vector<16x16xbf16>
    %90 = arith.truncf %87 : vector<256x16xf32> to vector<256x16xbf16>
    %cst_106 = arith.constant dense<0.000000e+00> : vector<16x256xf32>
    %91 = tpu.matmul %89, %90, %cst_106 {dimension_numbers = #tpu.dot_dimension_numbers<[1], [1], [0], [0], [0, 0, 1, 0], [], []>} : vector<16x16xbf16>, vector<256x16xbf16>, vector<16x256xf32> -> vector<16x256xf32>
    %92 = arith.addf %85, %91 : vector<16x256xf32>
    %c0_107 = arith.constant 0 : index
    %c2_108 = arith.constant 2 : index
    %c0_109 = arith.constant 0 : index
    %93 = vector.load %arg10[%c0_107, %c2_108, %c0_109] : memref<18x18x16xf32, #tpu.memory_space<vmem>>, vector<16x16x16xf32>
    %94 = vector.shape_cast %93 : vector<16x16x16xf32> to vector<256x16xf32>
    %c0_110 = arith.constant 0 : index
    %c2_111 = arith.constant 2 : index
    %c0_112 = arith.constant 0 : index
    %c0_113 = arith.constant 0 : index
    %95 = vector.load %arg4[%c0_110, %c2_111, %c0_112, %c0_113] : memref<3x3x16x16xbf16, #tpu.memory_space<vmem>>, vector<1x1x16x16xbf16>
    %96 = vector.shape_cast %95 : vector<1x1x16x16xbf16> to vector<16x16xbf16>
    %97 = arith.truncf %94 : vector<256x16xf32> to vector<256x16xbf16>
    %cst_114 = arith.constant dense<0.000000e+00> : vector<16x256xf32>
    %98 = tpu.matmul %96, %97, %cst_114 {dimension_numbers = #tpu.dot_dimension_numbers<[1], [1], [0], [0], [0, 0, 1, 0], [], []>} : vector<16x16xbf16>, vector<256x16xbf16>, vector<16x256xf32> -> vector<16x256xf32>
    %99 = arith.addf %92, %98 : vector<16x256xf32>
    %c1_115 = arith.constant 1 : index
    %c0_116 = arith.constant 0 : index
    %c0_117 = arith.constant 0 : index
    %100 = vector.load %arg10[%c1_115, %c0_116, %c0_117] : memref<18x18x16xf32, #tpu.memory_space<vmem>>, vector<16x16x16xf32>
    %101 = vector.shape_cast %100 : vector<16x16x16xf32> to vector<256x16xf32>
    %c1_118 = arith.constant 1 : index
    %c0_119 = arith.constant 0 : index
    %c0_120 = arith.constant 0 : index
    %c0_121 = arith.constant 0 : index
    %102 = vector.load %arg4[%c1_118, %c0_119, %c0_120, %c0_121] : memref<3x3x16x16xbf16, #tpu.memory_space<vmem>>, vector<1x1x16x16xbf16>
    %103 = vector.shape_cast %102 : vector<1x1x16x16xbf16> to vector<16x16xbf16>
    %104 = arith.truncf %101 : vector<256x16xf32> to vector<256x16xbf16>
    %cst_122 = arith.constant dense<0.000000e+00> : vector<16x256xf32>
    %105 = tpu.matmul %103, %104, %cst_122 {dimension_numbers = #tpu.dot_dimension_numbers<[1], [1], [0], [0], [0, 0, 1, 0], [], []>} : vector<16x16xbf16>, vector<256x16xbf16>, vector<16x256xf32> -> vector<16x256xf32>
    %106 = arith.addf %99, %105 : vector<16x256xf32>
    %c1_123 = arith.constant 1 : index
    %c1_124 = arith.constant 1 : index
    %c0_125 = arith.constant 0 : index
    %107 = vector.load %arg10[%c1_123, %c1_124, %c0_125] : memref<18x18x16xf32, #tpu.memory_space<vmem>>, vector<16x16x16xf32>
    %108 = vector.shape_cast %107 : vector<16x16x16xf32> to vector<256x16xf32>
    %c1_126 = arith.constant 1 : index
    %c1_127 = arith.constant 1 : index
    %c0_128 = arith.constant 0 : index
    %c0_129 = arith.constant 0 : index
    %109 = vector.load %arg4[%c1_126, %c1_127, %c0_128, %c0_129] : memref<3x3x16x16xbf16, #tpu.memory_space<vmem>>, vector<1x1x16x16xbf16>
    %110 = vector.shape_cast %109 : vector<1x1x16x16xbf16> to vector<16x16xbf16>
    %111 = arith.truncf %108 : vector<256x16xf32> to vector<256x16xbf16>
    %cst_130 = arith.constant dense<0.000000e+00> : vector<16x256xf32>
    %112 = tpu.matmul %110, %111, %cst_130 {dimension_numbers = #tpu.dot_dimension_numbers<[1], [1], [0], [0], [0, 0, 1, 0], [], []>} : vector<16x16xbf16>, vector<256x16xbf16>, vector<16x256xf32> -> vector<16x256xf32>
    %113 = arith.addf %106, %112 : vector<16x256xf32>
    %c1_131 = arith.constant 1 : index
    %c2_132 = arith.constant 2 : index
    %c0_133 = arith.constant 0 : index
    %114 = vector.load %arg10[%c1_131, %c2_132, %c0_133] : memref<18x18x16xf32, #tpu.memory_space<vmem>>, vector<16x16x16xf32>
    %115 = vector.shape_cast %114 : vector<16x16x16xf32> to vector<256x16xf32>
    %c1_134 = arith.constant 1 : index
    %c2_135 = arith.constant 2 : index
    %c0_136 = arith.constant 0 : index
    %c0_137 = arith.constant 0 : index
    %116 = vector.load %arg4[%c1_134, %c2_135, %c0_136, %c0_137] : memref<3x3x16x16xbf16, #tpu.memory_space<vmem>>, vector<1x1x16x16xbf16>
    %117 = vector.shape_cast %116 : vector<1x1x16x16xbf16> to vector<16x16xbf16>
    %118 = arith.truncf %115 : vector<256x16xf32> to vector<256x16xbf16>
    %cst_138 = arith.constant dense<0.000000e+00> : vector<16x256xf32>
    %119 = tpu.matmul %117, %118, %cst_138 {dimension_numbers = #tpu.dot_dimension_numbers<[1], [1], [0], [0], [0, 0, 1, 0], [], []>} : vector<16x16xbf16>, vector<256x16xbf16>, vector<16x256xf32> -> vector<16x256xf32>
    %120 = arith.addf %113, %119 : vector<16x256xf32>
    %c2_139 = arith.constant 2 : index
    %c0_140 = arith.constant 0 : index
    %c0_141 = arith.constant 0 : index
    %121 = vector.load %arg10[%c2_139, %c0_140, %c0_141] : memref<18x18x16xf32, #tpu.memory_space<vmem>>, vector<16x16x16xf32>
    %122 = vector.shape_cast %121 : vector<16x16x16xf32> to vector<256x16xf32>
    %c2_142 = arith.constant 2 : index
    %c0_143 = arith.constant 0 : index
    %c0_144 = arith.constant 0 : index
    %c0_145 = arith.constant 0 : index
    %123 = vector.load %arg4[%c2_142, %c0_143, %c0_144, %c0_145] : memref<3x3x16x16xbf16, #tpu.memory_space<vmem>>, vector<1x1x16x16xbf16>
    %124 = vector.shape_cast %123 : vector<1x1x16x16xbf16> to vector<16x16xbf16>
    %125 = arith.truncf %122 : vector<256x16xf32> to vector<256x16xbf16>
    %cst_146 = arith.constant dense<0.000000e+00> : vector<16x256xf32>
    %126 = tpu.matmul %124, %125, %cst_146 {dimension_numbers = #tpu.dot_dimension_numbers<[1], [1], [0], [0], [0, 0, 1, 0], [], []>} : vector<16x16xbf16>, vector<256x16xbf16>, vector<16x256xf32> -> vector<16x256xf32>
    %127 = arith.addf %120, %126 : vector<16x256xf32>
    %c2_147 = arith.constant 2 : index
    %c1_148 = arith.constant 1 : index
    %c0_149 = arith.constant 0 : index
    %128 = vector.load %arg10[%c2_147, %c1_148, %c0_149] : memref<18x18x16xf32, #tpu.memory_space<vmem>>, vector<16x16x16xf32>
    %129 = vector.shape_cast %128 : vector<16x16x16xf32> to vector<256x16xf32>
    %c2_150 = arith.constant 2 : index
    %c1_151 = arith.constant 1 : index
    %c0_152 = arith.constant 0 : index
    %c0_153 = arith.constant 0 : index
    %130 = vector.load %arg4[%c2_150, %c1_151, %c0_152, %c0_153] : memref<3x3x16x16xbf16, #tpu.memory_space<vmem>>, vector<1x1x16x16xbf16>
    %131 = vector.shape_cast %130 : vector<1x1x16x16xbf16> to vector<16x16xbf16>
    %132 = arith.truncf %129 : vector<256x16xf32> to vector<256x16xbf16>
    %cst_154 = arith.constant dense<0.000000e+00> : vector<16x256xf32>
    %133 = tpu.matmul %131, %132, %cst_154 {dimension_numbers = #tpu.dot_dimension_numbers<[1], [1], [0], [0], [0, 0, 1, 0], [], []>} : vector<16x16xbf16>, vector<256x16xbf16>, vector<16x256xf32> -> vector<16x256xf32>
    %134 = arith.addf %127, %133 : vector<16x256xf32>
    %c2_155 = arith.constant 2 : index
    %c2_156 = arith.constant 2 : index
    %c0_157 = arith.constant 0 : index
    %135 = vector.load %arg10[%c2_155, %c2_156, %c0_157] : memref<18x18x16xf32, #tpu.memory_space<vmem>>, vector<16x16x16xf32>
    %136 = vector.shape_cast %135 : vector<16x16x16xf32> to vector<256x16xf32>
    %c2_158 = arith.constant 2 : index
    %c2_159 = arith.constant 2 : index
    %c0_160 = arith.constant 0 : index
    %c0_161 = arith.constant 0 : index
    %137 = vector.load %arg4[%c2_158, %c2_159, %c0_160, %c0_161] : memref<3x3x16x16xbf16, #tpu.memory_space<vmem>>, vector<1x1x16x16xbf16>
    %138 = vector.shape_cast %137 : vector<1x1x16x16xbf16> to vector<16x16xbf16>
    %139 = arith.truncf %136 : vector<256x16xf32> to vector<256x16xbf16>
    %cst_162 = arith.constant dense<0.000000e+00> : vector<16x256xf32>
    %140 = tpu.matmul %138, %139, %cst_162 {dimension_numbers = #tpu.dot_dimension_numbers<[1], [1], [0], [0], [0, 0, 1, 0], [], []>} : vector<16x16xbf16>, vector<256x16xbf16>, vector<16x256xf32> -> vector<16x256xf32>
    %141 = arith.addf %134, %140 : vector<16x256xf32>
    %c0_163 = arith.constant 0 : index
    %c0_164 = arith.constant 0 : index
    %142 = vector.load %arg5[%c0_163, %c0_164] : memref<16x1xf32, #tpu.memory_space<vmem>>, vector<16x1xf32>
    %143 = vector.broadcast %142 : vector<16x1xf32> to vector<16x256xf32>
    %144 = arith.addf %141, %143 : vector<16x256xf32>
    %145 = vector.shape_cast %1 : vector<16x16x8xf32> to vector<256x8xf32>
    %c0_165 = arith.constant 0 : index
    %c0_166 = arith.constant 0 : index
    %146 = vector.load %arg6[%c0_165, %c0_166] : memref<16x8xf32, #tpu.memory_space<vmem>>, vector<16x8xf32>
    %cst_167 = arith.constant dense<0.000000e+00> : vector<16x256xf32>
    %147 = tpu.matmul %146, %145, %cst_167 {dimension_numbers = #tpu.dot_dimension_numbers<[1], [1], [0], [0], [0, 0, 1, 0], [], []>} : vector<16x8xf32>, vector<256x8xf32>, vector<16x256xf32> -> vector<16x256xf32>
    %148 = arith.addf %144, %147 : vector<16x256xf32>
    %c0_168 = arith.constant 0 : index
    %c0_169 = arith.constant 0 : index
    %149 = vector.load %arg7[%c0_168, %c0_169] : memref<16x1xf32, #tpu.memory_space<vmem>>, vector<16x1xf32>
    %150 = vector.broadcast %149 : vector<16x1xf32> to vector<16x256xf32>
    %151 = arith.addf %148, %150 : vector<16x256xf32>
    %c0_170 = arith.constant 0 : index
    %c0_171 = arith.constant 0 : index
    %c0_172 = arith.constant 0 : index
    %152 = vector.load %arg8[%c0_170, %c0_171, %c0_172] : memref<1x16x256xf32, #tpu.memory_space<vmem>>, vector<1x16x256xf32>
    %153 = vector.shape_cast %152 : vector<1x16x256xf32> to vector<16x256xf32>
    %154 = vector.shape_cast %151 : vector<16x256xf32> to vector<1x16x256xf32>
    tpu.vector_store %arg8[%c0_170, %c0_171, %c0_172], %154 {strides = array<i32>} : memref<1x16x256xf32, #tpu.memory_space<vmem>>, vector<1x16x256xf32>,
    return
  }
  func.func @transform_0(%arg0: i32) -> (i32, i32, i32, i32) {
    %c0_i32 = arith.constant 0 : i32
    %c0_i32_0 = arith.constant 0 : i32
    %c0_i32_1 = arith.constant 0 : i32
    %c0_i32_2 = arith.constant 0 : i32
    return %arg0, %c0_i32, %c0_i32_0, %c0_i32_1 : i32, i32, i32, i32
  }
  func.func @transform_1(%arg0: i32) -> (i32, i32, i32, i32) {
    %c0_i32 = arith.constant 0 : i32
    %c0_i32_0 = arith.constant 0 : i32
    %c0_i32_1 = arith.constant 0 : i32
    %c0_i32_2 = arith.constant 0 : i32
    %c0_i32_3 = arith.constant 0 : i32
    return %c0_i32, %c0_i32_0, %c0_i32_1, %c0_i32_2 : i32, i32, i32, i32
  }
  func.func @transform_2(%arg0: i32) -> (i32, i32) {
    %c0_i32 = arith.constant 0 : i32
    %c0_i32_0 = arith.constant 0 : i32
    %c0_i32_1 = arith.constant 0 : i32
    return %c0_i32, %c0_i32_0 : i32, i32
  }
  func.func @transform_3(%arg0: i32) -> (i32, i32, i32, i32) {
    %c0_i32 = arith.constant 0 : i32
    %c0_i32_0 = arith.constant 0 : i32
    %c0_i32_1 = arith.constant 0 : i32
    %c0_i32_2 = arith.constant 0 : i32
    %c0_i32_3 = arith.constant 0 : i32
    return %c0_i32, %c0_i32_0, %c0_i32_1, %c0_i32_2 : i32, i32, i32, i32
  }
  func.func @transform_4(%arg0: i32) -> (i32, i32) {
    %c0_i32 = arith.constant 0 : i32
    %c0_i32_0 = arith.constant 0 : i32
    %c0_i32_1 = arith.constant 0 : i32
    return %c0_i32, %c0_i32_0 : i32, i32
  }
  func.func @transform_5(%arg0: i32) -> (i32, i32) {
    %c0_i32 = arith.constant 0 : i32
    %c0_i32_0 = arith.constant 0 : i32
    %c0_i32_1 = arith.constant 0 : i32
    return %c0_i32, %c0_i32_0 : i32, i32
  }
  func.func @transform_6(%arg0: i32) -> (i32, i32) {
    %c0_i32 = arith.constant 0 : i32
    %c0_i32_0 = arith.constant 0 : i32
    %c0_i32_1 = arith.constant 0 : i32
    return %c0_i32, %c0_i32_0 : i32, i32
  }
  func.func @transform_7(%arg0: i32) -> (i32, i32, i32) {
    %c0_i32 = arith.constant 0 : i32
    %c0_i32_0 = arith.constant 0 : i32
    %c0_i32_1 = arith.constant 0 : i32
    return %arg0, %c0_i32, %c0_i32_0 : i32, i32, i32
  }
}

</mosaic_0001>

<llo_original>
// kernel: tpu_custom_call.1
$region0: #{tpu_custom_call.1}
  #allocation0 [shape = 'u32[]', space=smem, size = 0x4, offset = 0x4, fixed_abs, tag = 'smem constant byte address 0x4 - core index']
  #allocation1 [shape = 'u32[72,128]{1,0:T(1,128)}', space=vmem, size = 0x9000, scoped, tag = 'internal scratch']
  #allocation2 [shape = 'f32[18,18,8]{2,1,0:T(8,128)}', space=vmem, size = 0x36000, scoped, tag = 'scratch operand']
  #allocation3 [shape = 'f32[18,18,16]{2,1,0:T(8,128)}', space=vmem, size = 0x36000, scoped, tag = 'scratch operand']
  %s0 = inlined_call_operand.vmem [shape: f32[2,16,16,8], index: 0, kind: input, shape index: {}]
  %s1 = inlined_call_operand.vmem [shape: bf16[3,3,8,16], index: 1, kind: input, shape index: {}]
  %s2 = inlined_call_operand.vmem [shape: f32[1,16], index: 2, kind: input, shape index: {}]
  %s3 = inlined_call_operand.vmem [shape: bf16[3,3,16,16], index: 3, kind: input, shape index: {}]
  %s4 = inlined_call_operand.vmem [shape: f32[16,1], index: 4, kind: input, shape index: {}]
  %s5 = inlined_call_operand.vmem [shape: f32[16,8], index: 5, kind: input, shape index: {}]
  %s6 = inlined_call_operand.vmem [shape: f32[16,1], index: 6, kind: input, shape index: {}]
  %s7 = inlined_call_operand.hbm [shape: f32[2,16,256], index: 7, kind: output, shape index: {}]
  %s8 = sld [smem:[#allocation0]]
  $region61: #{tpu_custom_call.1} parent=0
    _
  %s10 = ssub.s32 1, %s8
  %s11 = scalar_select 0, %s10, %s8
  $region1: #{tpu_custom_call.1} parent=0
    #allocation4 [shape = 'u8[32768]{0}', space=vmem, size = 0x8000, scoped, tag = 'output window, operand 0']
    #allocation5 [shape = 's32[2]{0}', space=sflag, size = 0x8, scoped, tag = 'scoped memory for tpu_custom_call.1']
    %12 = vsyncpa [#allocation5], 0
    %s13 = scalar_lea.sflag [#allocation5], 1
    %14 = vsyncpa %s13, 0
    loop: start=0, step=1, limit=4
    $region2: #{tpu_custom_call.1} parent=1 // loop_pre_header
      _
    $region3: #{tpu_custom_call.1} parent=1 // loop_header
      %s16 = sphi 0, %s20
      %p17 = scmp.ge.s32.totalorder %s16, 4
      %s26 = sphi 0, %s28
      %s29 = sphi 0, %s26
      %s30 = sphi 0, %s29
      %s46 = sphi 0, %s30
      %s50 = sphi 0, %s50
      %s52 = sphi 0, %s50
      %s53 = sphi 0, %s52
      %s67 = sphi 0, %s53
      %s71 = sphi 0, %s71
      %s73 = sphi 0, %s71
      %s74 = sphi 0, %s73
      %s88 = sphi 0, %s74
      %s92 = sphi 0, %s92
      %s94 = sphi 0, %s92
      %s95 = sphi 0, %s94
      %s109 = sphi 0, %s95
      %s113 = sphi 0, %s113
      %s115 = sphi 0, %s113
      %s116 = sphi 0, %s115
      %s130 = sphi 0, %s116
      %s134 = sphi 0, %s134
      %s136 = sphi 0, %s134
      %s137 = sphi 0, %s136
      %s151 = sphi 0, %s137
      %s155 = sphi 0, %s155
      %s157 = sphi 0, %s155
      %s158 = sphi 0, %s157
      %s172 = sphi 0, %s158
      %s178 = sphi 0, %s180
      %s181 = sphi 0, %s178
      %s182 = sphi 0, %s181
      %s198 = sphi 0, %s182
    $region4: #{tpu_custom_call.1} parent=1 // loop_header_branch
      %19 = sbr.rel (%p17) target = $region8
    $region5: #{tpu_custom_call.1} parent=1 // loop_body
      %s21 = ssub.s32 %s16, 1
      %s22 = ssub.s32 %s16, 2
      %s23 = sadd.s32 %s16, 1
      %s24 = ssub.s32 %s16, %s23
      %p25 = scmp.eq.s32.totalorder %s24, 0
      %s27 = sadd.s32 %s26, 1
      %s28 = scalar_select %p25, %s26, %s27
      %p31 = pneg %p25
      %p32 = scmp.eq.s32.totalorder %s16, 1
      %p33 = por %p31, %p32
      %p34 = scmp.ne.s32.totalorder %s26, %s29
      %p35 = scmp.eq.s32.totalorder %s16, 0
      %p36 = por %p34, %p35
      %p37 = scmp.ne.s32.totalorder %s26, %s29
      %p38 = scmp.eq.s32.totalorder %s21, 1
      %p39 = por %p37, %p38
      %p40 = scmp.ne.s32.totalorder %s29, %s30
      %p41 = scmp.eq.s32.totalorder %s21, 0
      %p42 = por %p40, %p41
      %p43 = scmp.ne.s32.totalorder %s29, %s30
      %p44 = scmp.eq.s32.totalorder %s22, 1
      %p45 = por %p43, %p44
      %p47 = scmp.ne.s32.totalorder %s30, %s46
      %p48 = scmp.eq.s32.totalorder %s22, 0
      %p49 = por %p47, %p48
      %s51 = sadd.s32 %s50, 1
      %p54 = scmp.eq.s32.totalorder %s16, 1
      %p55 = scmp.ne.s32.totalorder %s50, %s52
      %p56 = scmp.eq.s32.totalorder %s16, 0
      %p57 = por %p55, %p56
      %p58 = scmp.ne.s32.totalorder %s50, %s52
      %p59 = scmp.eq.s32.totalorder %s21, 1
      %p60 = por %p58, %p59
      %p61 = scmp.ne.s32.totalorder %s52, %s53
      %p62 = scmp.eq.s32.totalorder %s21, 0
      %p63 = por %p61, %p62
      %p64 = scmp.ne.s32.totalorder %s52, %s53
      %p65 = scmp.eq.s32.totalorder %s22, 1
      %p66 = por %p64, %p65
      %p68 = scmp.ne.s32.totalorder %s53, %s67
      %p69 = scmp.eq.s32.totalorder %s22, 0
      %p70 = por %p68, %p69
      %s72 = sadd.s32 %s71, 1
      %p75 = scmp.eq.s32.totalorder %s16, 1
      %p76 = scmp.ne.s32.totalorder %s71, %s73
      %p77 = scmp.eq.s32.totalorder %s16, 0
      %p78 = por %p76, %p77
      %p79 = scmp.ne.s32.totalorder %s71, %s73
      %p80 = scmp.eq.s32.totalorder %s21, 1
      %p81 = por %p79, %p80
      %p82 = scmp.ne.s32.totalorder %s73, %s74
      %p83 = scmp.eq.s32.totalorder %s21, 0
      %p84 = por %p82, %p83
      %p85 = scmp.ne.s32.totalorder %s73, %s74
      %p86 = scmp.eq.s32.totalorder %s22, 1
      %p87 = por %p85, %p86
      %p89 = scmp.ne.s32.totalorder %s74, %s88
      %p90 = scmp.eq.s32.totalorder %s22, 0
      %p91 = por %p89, %p90
      %s93 = sadd.s32 %s92, 1
      %p96 = scmp.eq.s32.totalorder %s16, 1
      %p97 = scmp.ne.s32.totalorder %s92, %s94
      %p98 = scmp.eq.s32.totalorder %s16, 0
      %p99 = por %p97, %p98
      %p100 = scmp.ne.s32.totalorder %s92, %s94
      %p101 = scmp.eq.s32.totalorder %s21, 1
      %p102 = por %p100, %p101
      %p103 = scmp.ne.s32.totalorder %s94, %s95
      %p104 = scmp.eq.s32.totalorder %s21, 0
      %p105 = por %p103, %p104
      %p106 = scmp.ne.s32.totalorder %s94, %s95
      %p107 = scmp.eq.s32.totalorder %s22, 1
      %p108 = por %p106, %p107
      %p110 = scmp.ne.s32.totalorder %s95, %s109
      %p111 = scmp.eq.s32.totalorder %s22, 0
      %p112 = por %p110, %p111
      %s114 = sadd.s32 %s113, 1
      %p117 = scmp.eq.s32.totalorder %s16, 1
      %p118 = scmp.ne.s32.totalorder %s113, %s115
      %p119 = scmp.eq.s32.totalorder %s16, 0
      %p120 = por %p118, %p119
      %p121 = scmp.ne.s32.totalorder %s113, %s115
      %p122 = scmp.eq.s32.totalorder %s21, 1
      %p123 = por %p121, %p122
      %p124 = scmp.ne.s32.totalorder %s115, %s116
      %p125 = scmp.eq.s32.totalorder %s21, 0
      %p126 = por %p124, %p125
      %p127 = scmp.ne.s32.totalorder %s115, %s116
      %p128 = scmp.eq.s32.totalorder %s22, 1
      %p129 = por %p127, %p128
      %p131 = scmp.ne.s32.totalorder %s116, %s130
      %p132 = scmp.eq.s32.totalorder %s22, 0
      %p133 = por %p131, %p132
      %s135 = sadd.s32 %s134, 1
      %p138 = scmp.eq.s32.totalorder %s16, 1
      %p139 = scmp.ne.s32.totalorder %s134, %s136
      %p140 = scmp.eq.s32.totalorder %s16, 0
      %p141 = por %p139, %p140
      %p142 = scmp.ne.s32.totalorder %s134, %s136
      %p143 = scmp.eq.s32.totalorder %s21, 1
      %p144 = por %p142, %p143
      %p145 = scmp.ne.s32.totalorder %s136, %s137
      %p146 = scmp.eq.s32.totalorder %s21, 0
      %p147 = por %p145, %p146
      %p148 = scmp.ne.s32.totalorder %s136, %s137
      %p149 = scmp.eq.s32.totalorder %s22, 1
      %p150 = por %p148, %p149
      %p152 = scmp.ne.s32.totalorder %s137, %s151
      %p153 = scmp.eq.s32.totalorder %s22, 0
      %p154 = por %p152, %p153
      %s156 = sadd.s32 %s155, 1
      %p159 = scmp.eq.s32.totalorder %s16, 1
      %p160 = scmp.ne.s32.totalorder %s155, %s157
      %p161 = scmp.eq.s32.totalorder %s16, 0
      %p162 = por %p160, %p161
      %p163 = scmp.ne.s32.totalorder %s155, %s157
      %p164 = scmp.eq.s32.totalorder %s21, 1
      %p165 = por %p163, %p164
      %p166 = scmp.ne.s32.totalorder %s157, %s158
      %p167 = scmp.eq.s32.totalorder %s21, 0
      %p168 = por %p166, %p167
      %p169 = scmp.ne.s32.totalorder %s157, %s158
      %p170 = scmp.eq.s32.totalorder %s22, 1
      %p171 = por %p169, %p170
      %p173 = scmp.ne.s32.totalorder %s158, %s172
      %p174 = scmp.eq.s32.totalorder %s22, 0
      %p175 = por %p173, %p174
      %s176 = ssub.s32 %s16, %s23
      %p177 = scmp.eq.s32.totalorder %s176, 0
      %s179 = sadd.s32 %s178, 1
      %s180 = scalar_select %p177, %s178, %s179
      %p183 = pneg %p177
      %p184 = scmp.eq.s32.totalorder %s16, 1
      %p185 = por %p183, %p184
      %p186 = scmp.ne.s32.totalorder %s178, %s181
      %p187 = scmp.eq.s32.totalorder %s16, 0
      %p188 = por %p186, %p187
      %p189 = scmp.ne.s32.totalorder %s178, %s181
      %p190 = scmp.eq.s32.totalorder %s21, 1
      %p191 = por %p189, %p190
      %p192 = scmp.ne.s32.totalorder %s181, %s182
      %p193 = scmp.eq.s32.totalorder %s21, 0
      %p194 = por %p192, %p193
      %p195 = scmp.ne.s32.totalorder %s181, %s182
      %p196 = scmp.eq.s32.totalorder %s22, 1
      %p197 = por %p195, %p196
      %p199 = scmp.ne.s32.totalorder %s182, %s198
      %p200 = scmp.eq.s32.totalorder %s22, 0
      %p201 = por %p199, %p200
      %p202 = scmp.le.s32.totalorder 1, %s16
      %p203 = scmp.lt.s32.totalorder %s16, 3
      %p204 = pnand %p202, %p203
      %p205 = pneg %p204
      // Predicated region
      $region9: #{tpu_custom_call.1} parent=5 // pred_check
        _
      $region10: #{tpu_custom_call.1} parent=5 // pred_check_branch
        %207 = sbr.rel (%p204) target = $region12
      $region11: #{tpu_custom_call.1} parent=5 // pred_region
        %s208 = ssub.s32 %s16, 1
        // Predicated region
        $region13: #{tpu_custom_call.1} parent=11 // pred_check
          %p209 = pneg %p63
        $region14: #{tpu_custom_call.1} parent=11 // pred_check_branch
          %211 = sbr.rel (%p209) target = $region16
        $region15: #{tpu_custom_call.1} parent=11 // pred_region
          _
        $region16: #{tpu_custom_call.1} parent=11 // pred_fallthru
          _
        // Predicated region
        $region17: #{tpu_custom_call.1} parent=11 // pred_check
          %p212 = pneg %p84
        $region18: #{tpu_custom_call.1} parent=11 // pred_check_branch
          %214 = sbr.rel (%p212) target = $region20
        $region19: #{tpu_custom_call.1} parent=11 // pred_region
          _
        $region20: #{tpu_custom_call.1} parent=11 // pred_fallthru
          _
        // Predicated region
        $region21: #{tpu_custom_call.1} parent=11 // pred_check
          %p215 = pneg %p105
        $region22: #{tpu_custom_call.1} parent=11 // pred_check_branch
          %217 = sbr.rel (%p215) target = $region24
        $region23: #{tpu_custom_call.1} parent=11 // pred_region
          _
        $region24: #{tpu_custom_call.1} parent=11 // pred_fallthru
          _
        // Predicated region
        $region25: #{tpu_custom_call.1} parent=11 // pred_check
          %p218 = pneg %p126
        $region26: #{tpu_custom_call.1} parent=11 // pred_check_branch
          %220 = sbr.rel (%p218) target = $region28
        $region27: #{tpu_custom_call.1} parent=11 // pred_region
          _
        $region28: #{tpu_custom_call.1} parent=11 // pred_fallthru
          _
        // Predicated region
        $region29: #{tpu_custom_call.1} parent=11 // pred_check
          %p221 = pneg %p147
        $region30: #{tpu_custom_call.1} parent=11 // pred_check_branch
          %223 = sbr.rel (%p221) target = $region32
        $region31: #{tpu_custom_call.1} parent=11 // pred_region
          _
        $region32: #{tpu_custom_call.1} parent=11 // pred_fallthru
          _
        // Predicated region
        $region33: #{tpu_custom_call.1} parent=11 // pred_check
          %p224 = pneg %p168
        $region34: #{tpu_custom_call.1} parent=11 // pred_check_branch
          %226 = sbr.rel (%p224) target = $region36
        $region35: #{tpu_custom_call.1} parent=11 // pred_region
          _
        $region36: #{tpu_custom_call.1} parent=11 // pred_fallthru
          _
      $region12: #{tpu_custom_call.1} parent=5 // pred_fallthru
        _
      %p227 = scmp.lt.s32.totalorder %s16, 2
      // Predicated region
      $region37: #{tpu_custom_call.1} parent=5 // pred_check
        %p228 = pneg %p227
      $region38: #{tpu_custom_call.1} parent=5 // pred_check_branch
        %230 = sbr.rel (%p228) target = $region40
      $region39: #{tpu_custom_call.1} parent=5 // pred_region
        // Predicated region
        $region41: #{tpu_custom_call.1} parent=39 // pred_check
          %p231 = pneg %p36
        $region42: #{tpu_custom_call.1} parent=39 // pred_check_branch
          %233 = sbr.rel (%p231) target = $region44
        $region43: #{tpu_custom_call.1} parent=39 // pred_region
          %p234 = scmp.lt.s32.totalorder %s16, 1
          %s235 = scalar_select %p234, %s16, 1
          %s236 = smul.addr %s235, 32
          %s237 = smul.addr %s236, 8
          %s238 = scalar_lea.vmem %s0, %s237
        $region44: #{tpu_custom_call.1} parent=39 // pred_fallthru
          _
      $region40: #{tpu_custom_call.1} parent=5 // pred_fallthru
        _
      %p239 = scmp.le.s32.totalorder 1, %s16
      %p240 = scmp.lt.s32.totalorder %s16, 3
      %p241 = pnand %p239, %p240
      %p242 = pneg %p241
      // Predicated region
      $region45: #{tpu_custom_call.1} parent=5 // pred_check
        _
      $region46: #{tpu_custom_call.1} parent=5 // pred_check_branch
        %244 = sbr.rel (%p241) target = $region48
      $region47: #{tpu_custom_call.1} parent=5 // pred_region
        %s245 = ssub.s32 %s16, 1
        %p246 = scmp.lt.s32.totalorder %s21, 1
        %s247 = scalar_select %p246, %s21, 1
        %s248 = smul.addr %s247, 32
        %s249 = smul.addr %s248, 8
        %s250 = scalar_lea.vmem %s0, %s249
        %p251 = pneg %p42
        %p252 = pneg %p39
        %p253 = pneg %p63
        %p254 = pneg %p60
        %p255 = pneg %p84
        %p256 = pneg %p81
        %p257 = pneg %p105
        %p258 = pneg %p102
        %p259 = pneg %p126
        %p260 = pneg %p123
        %p261 = pneg %p147
        %p262 = pneg %p144
        %p263 = pneg %p168
        %p264 = pneg %p165
        %p265 = pneg %p194
        %p266 = pneg %p191
        %s267 = sand.u32 %s181, 1
        %s268 = scalar_lea.sflag [#allocation5], %s267
        %s269 = sand.u32 %s181, 1
        %s270 = smul.addr %s269, 32
        %s271 = scalar_lea.vmem [#allocation4], %s270
        %p272 = scmp.lt.s32.totalorder %s21, 1
        %s273 = scalar_select %p272, %s21, 1
        %s274 = smul.addr %s273, 32
        %s275 = smul.addr %s274, 8
        %s276 = scalar_lea.vmem %s0, %s275
        %v278 = vld [vmem:[%s276] sm:$0xff]
        %v279 = vld [vmem:[%s276 + $0x8] sm:$0xff]
        %v280 = vld [vmem:[%s276 + $0x10] sm:$0xff]
        %v281 = vld [vmem:[%s276 + $0x18] sm:$0xff]
        %v282 = vld [vmem:[%s276 + $0x20] sm:$0xff]
        %v283 = vld [vmem:[%s276 + $0x28] sm:$0xff]
        %v284 = vld [vmem:[%s276 + $0x30] sm:$0xff]
        %v285 = vld [vmem:[%s276 + $0x38] sm:$0xff]
        %v286 = vld [vmem:[%s276 + $0x40] sm:$0xff]
        %v287 = vld [vmem:[%s276 + $0x48] sm:$0xff]
        %v288 = vld [vmem:[%s276 + $0x50] sm:$0xff]
        %v289 = vld [vmem:[%s276 + $0x58] sm:$0xff]
        %v290 = vld [vmem:[%s276 + $0x60] sm:$0xff]
        %v291 = vld [vmem:[%s276 + $0x68] sm:$0xff]
        %v292 = vld [vmem:[%s276 + $0x70] sm:$0xff]
        %v293 = vld [vmem:[%s276 + $0x78] sm:$0xff]
        %v294 = vld [vmem:[%s276 + $0x80] sm:$0xff]
        %v295 = vld [vmem:[%s276 + $0x88] sm:$0xff]
        %v296 = vld [vmem:[%s276 + $0x90] sm:$0xff]
        %v297 = vld [vmem:[%s276 + $0x98] sm:$0xff]
        %v298 = vld [vmem:[%s276 + $0xa0] sm:$0xff]
        %v299 = vld [vmem:[%s276 + $0xa8] sm:$0xff]
        %v300 = vld [vmem:[%s276 + $0xb0] sm:$0xff]
        %v301 = vld [vmem:[%s276 + $0xb8] sm:$0xff]
        %v302 = vld [vmem:[%s276 + $0xc0] sm:$0xff]
        %v303 = vld [vmem:[%s276 + $0xc8] sm:$0xff]
        %v304 = vld [vmem:[%s276 + $0xd0] sm:$0xff]
        %v305 = vld [vmem:[%s276 + $0xd8] sm:$0xff]
        %v306 = vld [vmem:[%s276 + $0xe0] sm:$0xff]
        %v307 = vld [vmem:[%s276 + $0xe8] sm:$0xff]
        %v308 = vld [vmem:[%s276 + $0xf0] sm:$0xff]
        %v309 = vld [vmem:[%s276 + $0xf8] sm:$0xff]
        %vm310 = vcmask 64512
        %311 = vst.msk [vmem:[#allocation2] sm:$0xff] %vm310, 0.0
        %312 = vst.msk [vmem:[#allocation2 + $0x8] sm:$0xff] %vm310, 0.0
        %vm313 = vcmask 58368
        %314 = vst.msk [vmem:[#allocation2 + $0x10] sm:$0x3] %vm313, 0.0
        %315 = vst.msk [vmem:[#allocation2 + $0x18] sm:$0xff] %vm310, 0.0
        %316 = vst.msk [vmem:[#allocation2 + $0x20] sm:$0xff] %vm310, 0.0
        %317 = vst.msk [vmem:[#allocation2 + $0x28] sm:$0x3] %vm313, 0.0
        %318 = vst.msk [vmem:[#allocation2 + $0x30] sm:$0xff] %vm310, 0.0
        %319 = vst.msk [vmem:[#allocation2 + $0x38] sm:$0xff] %vm310, 0.0
        %320 = vst.msk [vmem:[#allocation2 + $0x40] sm:$0x3] %vm313, 0.0
        %321 = vst.msk [vmem:[#allocation2 + $0x48] sm:$0xff] %vm310, 0.0
        %322 = vst.msk [vmem:[#allocation2 + $0x50] sm:$0xff] %vm310, 0.0
        %323 = vst.msk [vmem:[#allocation2 + $0x58] sm:$0x3] %vm313, 0.0
        %324 = vst.msk [vmem:[#allocation2 + $0x60] sm:$0xff] %vm310, 0.0
        %325 = vst.msk [vmem:[#allocation2 + $0x68] sm:$0xff] %vm310, 0.0
        %326 = vst.msk [vmem:[#allocation2 + $0x70] sm:$0x3] %vm313, 0.0
        %327 = vst.msk [vmem:[#allocation2 + $0x78] sm:$0xff] %vm310, 0.0
        %328 = vst.msk [vmem:[#allocation2 + $0x80] sm:$0xff] %vm310, 0.0
        %329 = vst.msk [vmem:[#allocation2 + $0x88] sm:$0x3] %vm313, 0.0
        %330 = vst.msk [vmem:[#allocation2 + $0x90] sm:$0xff] %vm310, 0.0
        %331 = vst.msk [vmem:[#allocation2 + $0x98] sm:$0xff] %vm310, 0.0
        %332 = vst.msk [vmem:[#allocation2 + $0xa0] sm:$0x3] %vm313, 0.0
        %333 = vst.msk [vmem:[#allocation2 + $0xa8] sm:$0xff] %vm310, 0.0
        %334 = vst.msk [vmem:[#allocation2 + $0xb0] sm:$0xff] %vm310, 0.0
        %335 = vst.msk [vmem:[#allocation2 + $0xb8] sm:$0x3] %vm313, 0.0
        %336 = vst.msk [vmem:[#allocation2 + $0xc0] sm:$0xff] %vm310, 0.0
        %337 = vst.msk [vmem:[#allocation2 + $0xc8] sm:$0xff] %vm310, 0.0
        %338 = vst.msk [vmem:[#allocation2 + $0xd0] sm:$0x3] %vm313, 0.0
        %339 = vst.msk [vmem:[#allocation2 + $0xd8] sm:$0xff] %vm310, 0.0
        %340 = vst.msk [vmem:[#allocation2 + $0xe0] sm:$0xff] %vm310, 0.0
        %341 = vst.msk [vmem:[#allocation2 + $0xe8] sm:$0x3] %vm313, 0.0
        %342 = vst.msk [vmem:[#allocation2 + $0xf0] sm:$0xff] %vm310, 0.0
        %343 = vst.msk [vmem:[#allocation2 + $0xf8] sm:$0xff] %vm310, 0.0
        %344 = vst.msk [vmem:[#allocation2 + $0x100] sm:$0x3] %vm313, 0.0
        %345 = vst.msk [vmem:[#allocation2 + $0x108] sm:$0xff] %vm310, 0.0
        %346 = vst.msk [vmem:[#allocation2 + $0x110] sm:$0xff] %vm310, 0.0
        %347 = vst.msk [vmem:[#allocation2 + $0x118] sm:$0x3] %vm313, 0.0
        %348 = vst.msk [vmem:[#allocation2 + $0x120] sm:$0xff] %vm310, 0.0
        %349 = vst.msk [vmem:[#allocation2 + $0x128] sm:$0xff] %vm310, 0.0
        %350 = vst.msk [vmem:[#allocation2 + $0x130] sm:$0x3] %vm313, 0.0
        %351 = vst.msk [vmem:[#allocation2 + $0x138] sm:$0xff] %vm310, 0.0
        %352 = vst.msk [vmem:[#allocation2 + $0x140] sm:$0xff] %vm310, 0.0
        %353 = vst.msk [vmem:[#allocation2 + $0x148] sm:$0x3] %vm313, 0.0
        %354 = vst.msk [vmem:[#allocation2 + $0x150] sm:$0xff] %vm310, 0.0
        %355 = vst.msk [vmem:[#allocation2 + $0x158] sm:$0xff] %vm310, 0.0
        %356 = vst.msk [vmem:[#allocation2 + $0x160] sm:$0x3] %vm313, 0.0
        %357 = vst.msk [vmem:[#allocation2 + $0x168] sm:$0xff] %vm310, 0.0
        %358 = vst.msk [vmem:[#allocation2 + $0x170] sm:$0xff] %vm310, 0.0
        %359 = vst.msk [vmem:[#allocation2 + $0x178] sm:$0x3] %vm313, 0.0
        %360 = vst.msk [vmem:[#allocation2 + $0x180] sm:$0xff] %vm310, 0.0
        %361 = vst.msk [vmem:[#allocation2 + $0x188] sm:$0xff] %vm310, 0.0
        %362 = vst.msk [vmem:[#allocation2 + $0x190] sm:$0x3] %vm313, 0.0
        %363 = vst.msk [vmem:[#allocation2 + $0x198] sm:$0xff] %vm310, 0.0
        %364 = vst.msk [vmem:[#allocation2 + $0x1a0] sm:$0xff] %vm310, 0.0
        %365 = vst.msk [vmem:[#allocation2 + $0x1a8] sm:$0x3] %vm313, 0.0
        %s366 = scalar_lea.vmem [#allocation2], 24
        %367 = vst.msk [vmem:[%s366 + $0x1] sm:$0xff] %vm310, %v278
        %368 = vst.msk [vmem:[%s366 + $0x9] sm:$0xff] %vm310, %v279
        %369 = vst.msk [vmem:[%s366 + $0x19] sm:$0xff] %vm310, %v280
        %370 = vst.msk [vmem:[%s366 + $0x21] sm:$0xff] %vm310, %v281
        %371 = vst.msk [vmem:[%s366 + $0x31] sm:$0xff] %vm310, %v282
        %372 = vst.msk [vmem:[%s366 + $0x39] sm:$0xff] %vm310, %v283
        %373 = vst.msk [vmem:[%s366 + $0x49] sm:$0xff] %vm310, %v284
        %374 = vst.msk [vmem:[%s366 + $0x51] sm:$0xff] %vm310, %v285
        %375 = vst.msk [vmem:[%s366 + $0x61] sm:$0xff] %vm310, %v286
        %376 = vst.msk [vmem:[%s366 + $0x69] sm:$0xff] %vm310, %v287
        %377 = vst.msk [vmem:[%s366 + $0x79] sm:$0xff] %vm310, %v288
        %378 = vst.msk [vmem:[%s366 + $0x81] sm:$0xff] %vm310, %v289
        %379 = vst.msk [vmem:[%s366 + $0x91] sm:$0xff] %vm310, %v290
        %380 = vst.msk [vmem:[%s366 + $0x99] sm:$0xff] %vm310, %v291
        %381 = vst.msk [vmem:[%s366 + $0xa9] sm:$0xff] %vm310, %v292
        %382 = vst.msk [vmem:[%s366 + $0xb1] sm:$0xff] %vm310, %v293
        %383 = vst.msk [vmem:[%s366 + $0xc1] sm:$0xff] %vm310, %v294
        %384 = vst.msk [vmem:[%s366 + $0xc9] sm:$0xff] %vm310, %v295
        %385 = vst.msk [vmem:[%s366 + $0xd9] sm:$0xff] %vm310, %v296
        %386 = vst.msk [vmem:[%s366 + $0xe1] sm:$0xff] %vm310, %v297
        %387 = vst.msk [vmem:[%s366 + $0xf1] sm:$0xff] %vm310, %v298
        %388 = vst.msk [vmem:[%s366 + $0xf9] sm:$0xff] %vm310, %v299
        %389 = vst.msk [vmem:[%s366 + $0x109] sm:$0xff] %vm310, %v300
        %390 = vst.msk [vmem:[%s366 + $0x111] sm:$0xff] %vm310, %v301
        %391 = vst.msk [vmem:[%s366 + $0x121] sm:$0xff] %vm310, %v302
        %392 = vst.msk [vmem:[%s366 + $0x129] sm:$0xff] %vm310, %v303
        %393 = vst.msk [vmem:[%s366 + $0x139] sm:$0xff] %vm310, %v304
        %394 = vst.msk [vmem:[%s366 + $0x141] sm:$0xff] %vm310, %v305
        %395 = vst.msk [vmem:[%s366 + $0x151] sm:$0xff] %vm310, %v306
        %396 = vst.msk [vmem:[%s366 + $0x159] sm:$0xff] %vm310, %v307
        %397 = vst.msk [vmem:[%s366 + $0x169] sm:$0xff] %vm310, %v308
        %398 = vst.msk [vmem:[%s366 + $0x171] sm:$0xff] %vm310, %v309
        %v399 = vld [vmem:[#allocation2] sm:$0xff]
        %v400 = vld [vmem:[#allocation2 + $0x8] sm:$0xff]
        %v401 = vld [vmem:[#allocation2 + $0x18] sm:$0xff]
        %v402 = vld [vmem:[#allocation2 + $0x20] sm:$0xff]
        %v403 = vld [vmem:[#allocation2 + $0x30] sm:$0xff]
        %v404 = vld [vmem:[#allocation2 + $0x38] sm:$0xff]
        %v405 = vld [vmem:[#allocation2 + $0x48] sm:$0xff]
        %v406 = vld [vmem:[#allocation2 + $0x50] sm:$0xff]
        %v407 = vld [vmem:[#allocation2 + $0x60] sm:$0xff]
        %v408 = vld [vmem:[#allocation2 + $0x68] sm:$0xff]
        %v409 = vld [vmem:[#allocation2 + $0x78] sm:$0xff]
        %v410 = vld [vmem:[#allocation2 + $0x80] sm:$0xff]
        %v411 = vld [vmem:[#allocation2 + $0x90] sm:$0xff]
        %v412 = vld [vmem:[#allocation2 + $0x98] sm:$0xff]
        %v413 = vld [vmem:[#allocation2 + $0xa8] sm:$0xff]
        %v414 = vld [vmem:[#allocation2 + $0xb0] sm:$0xff]
        %v415 = vld [vmem:[#allocation2 + $0xc0] sm:$0xff]
        %v416 = vld [vmem:[#allocation2 + $0xc8] sm:$0xff]
        %v417 = vld [vmem:[#allocation2 + $0xd8] sm:$0xff]
        %v418 = vld [vmem:[#allocation2 + $0xe0] sm:$0xff]
        %v419 = vld [vmem:[#allocation2 + $0xf0] sm:$0xff]
        %v420 = vld [vmem:[#allocation2 + $0xf8] sm:$0xff]
        %v421 = vld [vmem:[#allocation2 + $0x108] sm:$0xff]
        %v422 = vld [vmem:[#allocation2 + $0x110] sm:$0xff]
        %v423 = vld [vmem:[#allocation2 + $0x120] sm:$0xff]
        %v424 = vld [vmem:[#allocation2 + $0x128] sm:$0xff]
        %v425 = vld [vmem:[#allocation2 + $0x138] sm:$0xff]
        %v426 = vld [vmem:[#allocation2 + $0x140] sm:$0xff]
        %v427 = vld [vmem:[#allocation2 + $0x150] sm:$0xff]
        %v428 = vld [vmem:[#allocation2 + $0x158] sm:$0xff]
        %v429 = vld [vmem:[#allocation2 + $0x168] sm:$0xff]
        %v430 = vld [vmem:[#allocation2 + $0x170] sm:$0xff]
        %v431 = vpack.c.bf16 %v400, %v399
        %v432 = vpack.c.bf16 %v402, %v401
        %v433 = vpack.c.bf16 %v404, %v403
        %v434 = vpack.c.bf16 %v406, %v405
        %v435 = vpack.c.bf16 %v408, %v407
        %v436 = vpack.c.bf16 %v410, %v409
        %v437 = vpack.c.bf16 %v412, %v411
        %v438 = vpack.c.bf16 %v414, %v413
        %v439 = vpack.c.bf16 %v416, %v415
        %v440 = vpack.c.bf16 %v418, %v417
        %v441 = vpack.c.bf16 %v420, %v419
        %v442 = vpack.c.bf16 %v422, %v421
        %v443 = vpack.c.bf16 %v424, %v423
        %v444 = vpack.c.bf16 %v426, %v425
        %v445 = vpack.c.bf16 %v428, %v427
        %v446 = vpack.c.bf16 %v430, %v429
        %v447 = vld [vmem:[%s1] sm:$0xf]
        %v448 = vld [vmem:[#allocation2 + $0x1] sm:$0xff]
        %v449 = vld [vmem:[#allocation2 + $0x9] sm:$0xff]
        %v450 = vld [vmem:[#allocation2 + $0x19] sm:$0xff]
        %v451 = vld [vmem:[#allocation2 + $0x21] sm:$0xff]
        %v452 = vld [vmem:[#allocation2 + $0x31] sm:$0xff]
        %v453 = vld [vmem:[#allocation2 + $0x39] sm:$0xff]
        %v454 = vld [vmem:[#allocation2 + $0x49] sm:$0xff]
        %v455 = vld [vmem:[#allocation2 + $0x51] sm:$0xff]
        %v456 = vld [vmem:[#allocation2 + $0x61] sm:$0xff]
        %v457 = vld [vmem:[#allocation2 + $0x69] sm:$0xff]
        %v458 = vld [vmem:[#allocation2 + $0x79] sm:$0xff]
        %v459 = vld [vmem:[#allocation2 + $0x81] sm:$0xff]
        %v460 = vld [vmem:[#allocation2 + $0x91] sm:$0xff]
        %v461 = vld [vmem:[#allocation2 + $0x99] sm:$0xff]
        %v462 = vld [vmem:[#allocation2 + $0xa9] sm:$0xff]
        %v463 = vld [vmem:[#allocation2 + $0xb1] sm:$0xff]
        %v464 = vld [vmem:[#allocation2 + $0xc1] sm:$0xff]
        %v465 = vld [vmem:[#allocation2 + $0xc9] sm:$0xff]
        %v466 = vld [vmem:[#allocation2 + $0xd9] sm:$0xff]
        %v467 = vld [vmem:[#allocation2 + $0xe1] sm:$0xff]
        %v468 = vld [vmem:[#allocation2 + $0xf1] sm:$0xff]
        %v469 = vld [vmem:[#allocation2 + $0xf9] sm:$0xff]
        %v470 = vld [vmem:[#allocation2 + $0x109] sm:$0xff]
        %v471 = vld [vmem:[#allocation2 + $0x111] sm:$0xff]
        %v472 = vld [vmem:[#allocation2 + $0x121] sm:$0xff]
        %v473 = vld [vmem:[#allocation2 + $0x129] sm:$0xff]
        %v474 = vld [vmem:[#allocation2 + $0x139] sm:$0xff]
        %v475 = vld [vmem:[#allocation2 + $0x141] sm:$0xff]
        %v476 = vld [vmem:[#allocation2 + $0x151] sm:$0xff]
        %v477 = vld [vmem:[#allocation2 + $0x159] sm:$0xff]
        %v478 = vld [vmem:[#allocation2 + $0x169] sm:$0xff]
        %v479 = vld [vmem:[#allocation2 + $0x171] sm:$0xff]
        %v480 = vpack.c.bf16 %v449, %v448
        %v481 = vpack.c.bf16 %v451, %v450
        %v482 = vpack.c.bf16 %v453, %v452
        %v483 = vpack.c.bf16 %v455, %v454
        %v484 = vpack.c.bf16 %v457, %v456
        %v485 = vpack.c.bf16 %v459, %v458
        %v486 = vpack.c.bf16 %v461, %v460
        %v487 = vpack.c.bf16 %v463, %v462
        %v488 = vpack.c.bf16 %v465, %v464
        %v489 = vpack.c.bf16 %v467, %v466
        %v490 = vpack.c.bf16 %v469, %v468
        %v491 = vpack.c.bf16 %v471, %v470
        %v492 = vpack.c.bf16 %v473, %v472
        %v493 = vpack.c.bf16 %v475, %v474
        %v494 = vpack.c.bf16 %v477, %v476
        %v495 = vpack.c.bf16 %v479, %v478
        %s496 = scalar_lea.vmem %s1, 4
        %v497 = vld [vmem:[%s496] sm:$0xf]
        %v499 = vsel %vm310, %v480, 0
        %v502 = vsel %vm310, %v481, 0
        %v505 = vsel %vm310, %v482, 0
        %v508 = vsel %vm310, %v483, 0
        %v511 = vsel %vm310, %v484, 0
        %v514 = vsel %vm310, %v485, 0
        %v517 = vsel %vm310, %v486, 0
        %v520 = vsel %vm310, %v487, 0
        %v523 = vsel %vm310, %v488, 0
        %v526 = vsel %vm310, %v489, 0
        %v529 = vsel %vm310, %v490, 0
        %v532 = vsel %vm310, %v491, 0
        %v535 = vsel %vm310, %v492, 0
        %v538 = vsel %vm310, %v493, 0
        %v541 = vsel %vm310, %v494, 0
        %v544 = vsel %vm310, %v495, 0
        %vm546 = vcmask 1043456
        %v548 = vsel %vm546, %v497, 0
        %550 = vmatpush.bf16.msra.mxu0 0
        %551 = vmatpush.bf16.msra.mxu0 0
        %552 = vmatpush.bf16.msra.mxu0 0
        %553 = vmatpush.bf16.msra.mxu0 0
        %554 = vmatpush.bf16.msra.mxu0 0
        %555 = vmatpush.bf16.msra.mxu0 0
        %556 = vmatpush.bf16.msra.mxu0 0
        %557 = vmatpush.bf16.msra.mxu0 %v548
        %558 = vmatmul.bf16.gmra.mxu0 %v499
        %v559 = vpop.f32.mrf.mxu0
        %v560 = vadd.f32 0.0, %v559
        %v561 = vpop.f32.mrf.mxu0
        %v562 = vadd.f32 0.0, %v561
        %563 = vmatmul.bf16.gmra.mxu0 %v502
        %v564 = vpop.f32.mrf.mxu0
        %v565 = vadd.f32 0.0, %v564
        %v566 = vpop.f32.mrf.mxu0
        %v567 = vadd.f32 0.0, %v566
        %568 = vmatmul.bf16.gmra.mxu0 %v505
        %v569 = vpop.f32.mrf.mxu0
        %v570 = vadd.f32 0.0, %v569
        %v571 = vpop.f32.mrf.mxu0
        %v572 = vadd.f32 0.0, %v571
        %573 = vmatmul.bf16.gmra.mxu0 %v508
        %v574 = vpop.f32.mrf.mxu0
        %v575 = vadd.f32 0.0, %v574
        %v576 = vpop.f32.mrf.mxu0
        %v577 = vadd.f32 0.0, %v576
        %578 = vmatmul.bf16.gmra.mxu0 %v511
        %v579 = vpop.f32.mrf.mxu0
        %v580 = vadd.f32 0.0, %v579
        %v581 = vpop.f32.mrf.mxu0
        %v582 = vadd.f32 0.0, %v581
        %583 = vmatmul.bf16.gmra.mxu0 %v514
        %v584 = vpop.f32.mrf.mxu0
        %v585 = vadd.f32 0.0, %v584
        %v586 = vpop.f32.mrf.mxu0
        %v587 = vadd.f32 0.0, %v586
        %588 = vmatmul.bf16.gmra.mxu0 %v517
        %v589 = vpop.f32.mrf.mxu0
        %v590 = vadd.f32 0.0, %v589
        %v591 = vpop.f32.mrf.mxu0
        %v592 = vadd.f32 0.0, %v591
        %593 = vmatmul.bf16.gmra.mxu0 %v520
        %v594 = vpop.f32.mrf.mxu0
        %v595 = vadd.f32 0.0, %v594
        %v596 = vpop.f32.mrf.mxu0
        %v597 = vadd.f32 0.0, %v596
        %598 = vmatmul.bf16.gmra.mxu0 %v523
        %v599 = vpop.f32.mrf.mxu0
        %v600 = vadd.f32 0.0, %v599
        %v601 = vpop.f32.mrf.mxu0
        %v602 = vadd.f32 0.0, %v601
        %603 = vmatmul.bf16.gmra.mxu0 %v526
        %v604 = vpop.f32.mrf.mxu0
        %v605 = vadd.f32 0.0, %v604
        %v606 = vpop.f32.mrf.mxu0
        %v607 = vadd.f32 0.0, %v606
        %608 = vmatmul.bf16.gmra.mxu0 %v529
        %v609 = vpop.f32.mrf.mxu0
        %v610 = vadd.f32 0.0, %v609
        %v611 = vpop.f32.mrf.mxu0
        %v612 = vadd.f32 0.0, %v611
        %613 = vmatmul.bf16.gmra.mxu0 %v532
        %v614 = vpop.f32.mrf.mxu0
        %v615 = vadd.f32 0.0, %v614
        %v616 = vpop.f32.mrf.mxu0
        %v617 = vadd.f32 0.0, %v616
        %618 = vmatmul.bf16.gmra.mxu0 %v535
        %v619 = vpop.f32.mrf.mxu0
        %v620 = vadd.f32 0.0, %v619
        %v621 = vpop.f32.mrf.mxu0
        %v622 = vadd.f32 0.0, %v621
        %623 = vmatmul.bf16.gmra.mxu0 %v538
        %v624 = vpop.f32.mrf.mxu0
        %v625 = vadd.f32 0.0, %v624
        %v626 = vpop.f32.mrf.mxu0
        %v627 = vadd.f32 0.0, %v626
        %628 = vmatmul.bf16.gmra.mxu0 %v541
        %v629 = vpop.f32.mrf.mxu0
        %v630 = vadd.f32 0.0, %v629
        %v631 = vpop.f32.mrf.mxu0
        %v632 = vadd.f32 0.0, %v631
        %633 = vmatmul.bf16.gmra.mxu0 %v544
        %v634 = vpop.f32.mrf.mxu0
        %v635 = vadd.f32 0.0, %v634
        %v636 = vpop.f32.mrf.mxu0
        %v637 = vadd.f32 0.0, %v636
        %638 = vdwg.mxu0
        %v640 = vsel %vm310, %v431, 0
        %v643 = vsel %vm310, %v432, 0
        %v646 = vsel %vm310, %v433, 0
        %v649 = vsel %vm310, %v434, 0
        %v652 = vsel %vm310, %v435, 0
        %v655 = vsel %vm310, %v436, 0
        %v658 = vsel %vm310, %v437, 0
        %v661 = vsel %vm310, %v438, 0
        %v664 = vsel %vm310, %v439, 0
        %v667 = vsel %vm310, %v440, 0
        %v670 = vsel %vm310, %v441, 0
        %v673 = vsel %vm310, %v442, 0
        %v676 = vsel %vm310, %v443, 0
        %v679 = vsel %vm310, %v444, 0
        %v682 = vsel %vm310, %v445, 0
        %v685 = vsel %vm310, %v446, 0
        %v688 = vsel %vm546, %v447, 0
        %690 = vmatpush.bf16.msra.mxu0 0
        %691 = vmatpush.bf16.msra.mxu0 0
        %692 = vmatpush.bf16.msra.mxu0 0
        %693 = vmatpush.bf16.msra.mxu0 0
        %694 = vmatpush.bf16.msra.mxu0 0
        %695 = vmatpush.bf16.msra.mxu0 0
        %696 = vmatpush.bf16.msra.mxu0 0
        %697 = vmatpush.bf16.msra.mxu0 %v688
        %698 = vmatmul.bf16.gmra.mxu0 %v640
        %v699 = vpop.f32.mrf.mxu0
        %v700 = vadd.f32 %v560, %v699
        %v701 = vpop.f32.mrf.mxu0
        %v702 = vadd.f32 %v562, %v701
        %703 = vmatmul.bf16.gmra.mxu0 %v643
        %v704 = vpop.f32.mrf.mxu0
        %v705 = vadd.f32 %v565, %v704
        %v706 = vpop.f32.mrf.mxu0
        %v707 = vadd.f32 %v567, %v706
        %708 = vmatmul.bf16.gmra.mxu0 %v646
        %v709 = vpop.f32.mrf.mxu0
        %v710 = vadd.f32 %v570, %v709
        %v711 = vpop.f32.mrf.mxu0
        %v712 = vadd.f32 %v572, %v711
        %713 = vmatmul.bf16.gmra.mxu0 %v649
        %v714 = vpop.f32.mrf.mxu0
        %v715 = vadd.f32 %v575, %v714
        %v716 = vpop.f32.mrf.mxu0
        %v717 = vadd.f32 %v577, %v716
        %718 = vmatmul.bf16.gmra.mxu0 %v652
        %v719 = vpop.f32.mrf.mxu0
        %v720 = vadd.f32 %v580, %v719
        %v721 = vpop.f32.mrf.mxu0
        %v722 = vadd.f32 %v582, %v721
        %723 = vmatmul.bf16.gmra.mxu0 %v655
        %v724 = vpop.f32.mrf.mxu0
        %v725 = vadd.f32 %v585, %v724
        %v726 = vpop.f32.mrf.mxu0
        %v727 = vadd.f32 %v587, %v726
        %728 = vmatmul.bf16.gmra.mxu0 %v658
        %v729 = vpop.f32.mrf.mxu0
        %v730 = vadd.f32 %v590, %v729
        %v731 = vpop.f32.mrf.mxu0
        %v732 = vadd.f32 %v592, %v731
        %733 = vmatmul.bf16.gmra.mxu0 %v661
        %v734 = vpop.f32.mrf.mxu0
        %v735 = vadd.f32 %v595, %v734
        %v736 = vpop.f32.mrf.mxu0
        %v737 = vadd.f32 %v597, %v736
        %738 = vmatmul.bf16.gmra.mxu0 %v664
        %v739 = vpop.f32.mrf.mxu0
        %v740 = vadd.f32 %v600, %v739
        %v741 = vpop.f32.mrf.mxu0
        %v742 = vadd.f32 %v602, %v741
        %743 = vmatmul.bf16.gmra.mxu0 %v667
        %v744 = vpop.f32.mrf.mxu0
        %v745 = vadd.f32 %v605, %v744
        %v746 = vpop.f32.mrf.mxu0
        %v747 = vadd.f32 %v607, %v746
        %748 = vmatmul.bf16.gmra.mxu0 %v670
        %v749 = vpop.f32.mrf.mxu0
        %v750 = vadd.f32 %v610, %v749
        %v751 = vpop.f32.mrf.mxu0
        %v752 = vadd.f32 %v612, %v751
        %753 = vmatmul.bf16.gmra.mxu0 %v673
        %v754 = vpop.f32.mrf.mxu0
        %v755 = vadd.f32 %v615, %v754
        %v756 = vpop.f32.mrf.mxu0
        %v757 = vadd.f32 %v617, %v756
        %758 = vmatmul.bf16.gmra.mxu0 %v676
        %v759 = vpop.f32.mrf.mxu0
        %v760 = vadd.f32 %v620, %v759
        %v761 = vpop.f32.mrf.mxu0
        %v762 = vadd.f32 %v622, %v761
        %763 = vmatmul.bf16.gmra.mxu0 %v679
        %v764 = vpop.f32.mrf.mxu0
        %v765 = vadd.f32 %v625, %v764
        %v766 = vpop.f32.mrf.mxu0
        %v767 = vadd.f32 %v627, %v766
        %768 = vmatmul.bf16.gmra.mxu0 %v682
        %v769 = vpop.f32.mrf.mxu0
        %v770 = vadd.f32 %v630, %v769
        %v771 = vpop.f32.mrf.mxu0
        %v772 = vadd.f32 %v632, %v771
        %773 = vmatmul.bf16.gmra.mxu0 %v685
        %v774 = vpop.f32.mrf.mxu0
        %v775 = vadd.f32 %v635, %v774
        %v776 = vpop.f32.mrf.mxu0
        %v777 = vadd.f32 %v637, %v776
        %778 = vdwg.mxu0
        %v779 = vld [vmem:[#allocation2 + $0x2] sm:$0xff]
        %v780 = vld [vmem:[#allocation2 + $0xa] sm:$0xff]
        %v781 = vld [vmem:[#allocation2 + $0x1a] sm:$0xff]
        %v782 = vld [vmem:[#allocation2 + $0x22] sm:$0xff]
        %v783 = vld [vmem:[#allocation2 + $0x32] sm:$0xff]
        %v784 = vld [vmem:[#allocation2 + $0x3a] sm:$0xff]
        %v785 = vld [vmem:[#allocation2 + $0x4a] sm:$0xff]
        %v786 = vld [vmem:[#allocation2 + $0x52] sm:$0xff]
        %v787 = vld [vmem:[#allocation2 + $0x62] sm:$0xff]
        %v788 = vld [vmem:[#allocation2 + $0x6a] sm:$0xff]
        %v789 = vld [vmem:[#allocation2 + $0x7a] sm:$0xff]
        %v790 = vld [vmem:[#allocation2 + $0x82] sm:$0xff]
        %v791 = vld [vmem:[#allocation2 + $0x92] sm:$0xff]
        %v792 = vld [vmem:[#allocation2 + $0x9a] sm:$0xff]
        %v793 = vld [vmem:[#allocation2 + $0xaa] sm:$0xff]
        %v794 = vld [vmem:[#allocation2 + $0xb2] sm:$0xff]
        %v795 = vld [vmem:[#allocation2 + $0xc2] sm:$0xff]
        %v796 = vld [vmem:[#allocation2 + $0xca] sm:$0xff]
        %v797 = vld [vmem:[#allocation2 + $0xda] sm:$0xff]
        %v798 = vld [vmem:[#allocation2 + $0xe2] sm:$0xff]
        %v799 = vld [vmem:[#allocation2 + $0xf2] sm:$0xff]
        %v800 = vld [vmem:[#allocation2 + $0xfa] sm:$0xff]
        %v801 = vld [vmem:[#allocation2 + $0x10a] sm:$0xff]
        %v802 = vld [vmem:[#allocation2 + $0x112] sm:$0xff]
        %v803 = vld [vmem:[#allocation2 + $0x122] sm:$0xff]
        %v804 = vld [vmem:[#allocation2 + $0x12a] sm:$0xff]
        %v805 = vld [vmem:[#allocation2 + $0x13a] sm:$0xff]
        %v806 = vld [vmem:[#allocation2 + $0x142] sm:$0xff]
        %v807 = vld [vmem:[#allocation2 + $0x152] sm:$0xff]
        %v808 = vld [vmem:[#allocation2 + $0x15a] sm:$0xff]
        %v809 = vld [vmem:[#allocation2 + $0x16a] sm:$0xff]
        %v810 = vld [vmem:[#allocation2 + $0x172] sm:$0xff]
        %v811 = vpack.c.bf16 %v780, %v779
        %v812 = vpack.c.bf16 %v782, %v781
        %v813 = vpack.c.bf16 %v784, %v783
        %v814 = vpack.c.bf16 %v786, %v785
        %v815 = vpack.c.bf16 %v788, %v787
        %v816 = vpack.c.bf16 %v790, %v789
        %v817 = vpack.c.bf16 %v792, %v791
        %v818 = vpack.c.bf16 %v794, %v793
        %v819 = vpack.c.bf16 %v796, %v795
        %v820 = vpack.c.bf16 %v798, %v797
        %v821 = vpack.c.bf16 %v800, %v799
        %v822 = vpack.c.bf16 %v802, %v801
        %v823 = vpack.c.bf16 %v804, %v803
        %v824 = vpack.c.bf16 %v806, %v805
        %v825 = vpack.c.bf16 %v808, %v807
        %v826 = vpack.c.bf16 %v810, %v809
        %s827 = scalar_lea.vmem %s1, 8
        %v828 = vld [vmem:[%s827] sm:$0xf]
        %v830 = vsel %vm310, %v811, 0
        %v833 = vsel %vm310, %v812, 0
        %v836 = vsel %vm310, %v813, 0
        %v839 = vsel %vm310, %v814, 0
        %v842 = vsel %vm310, %v815, 0
        %v845 = vsel %vm310, %v816, 0
        %v848 = vsel %vm310, %v817, 0
        %v851 = vsel %vm310, %v818, 0
        %v854 = vsel %vm310, %v819, 0
        %v857 = vsel %vm310, %v820, 0
        %v860 = vsel %vm310, %v821, 0
        %v863 = vsel %vm310, %v822, 0
        %v866 = vsel %vm310, %v823, 0
        %v869 = vsel %vm310, %v824, 0
        %v872 = vsel %vm310, %v825, 0
        %v875 = vsel %vm310, %v826, 0
        %v878 = vsel %vm546, %v828, 0
        %880 = vmatpush.bf16.msra.mxu0 0
        %881 = vmatpush.bf16.msra.mxu0 0
        %882 = vmatpush.bf16.msra.mxu0 0
        %883 = vmatpush.bf16.msra.mxu0 0
        %884 = vmatpush.bf16.msra.mxu0 0
        %885 = vmatpush.bf16.msra.mxu0 0
        %886 = vmatpush.bf16.msra.mxu0 0
        %887 = vmatpush.bf16.msra.mxu0 %v878
        %888 = vmatmul.bf16.gmra.mxu0 %v830
        %v889 = vpop.f32.mrf.mxu0
        %v890 = vadd.f32 0.0, %v889
        %v891 = vpop.f32.mrf.mxu0
        %v892 = vadd.f32 0.0, %v891
        %893 = vmatmul.bf16.gmra.mxu0 %v833
        %v894 = vpop.f32.mrf.mxu0
        %v895 = vadd.f32 0.0, %v894
        %v896 = vpop.f32.mrf.mxu0
        %v897 = vadd.f32 0.0, %v896
        %898 = vmatmul.bf16.gmra.mxu0 %v836
        %v899 = vpop.f32.mrf.mxu0
        %v900 = vadd.f32 0.0, %v899
        %v901 = vpop.f32.mrf.mxu0
        %v902 = vadd.f32 0.0, %v901
        %903 = vmatmul.bf16.gmra.mxu0 %v839
        %v904 = vpop.f32.mrf.mxu0
        %v905 = vadd.f32 0.0, %v904
        %v906 = vpop.f32.mrf.mxu0
        %v907 = vadd.f32 0.0, %v906
        %908 = vmatmul.bf16.gmra.mxu0 %v842
        %v909 = vpop.f32.mrf.mxu0
        %v910 = vadd.f32 0.0, %v909
        %v911 = vpop.f32.mrf.mxu0
        %v912 = vadd.f32 0.0, %v911
        %913 = vmatmul.bf16.gmra.mxu0 %v845
        %v914 = vpop.f32.mrf.mxu0
        %v915 = vadd.f32 0.0, %v914
        %v916 = vpop.f32.mrf.mxu0
        %v917 = vadd.f32 0.0, %v916
        %918 = vmatmul.bf16.gmra.mxu0 %v848
        %v919 = vpop.f32.mrf.mxu0
        %v920 = vadd.f32 0.0, %v919
        %v921 = vpop.f32.mrf.mxu0
        %v922 = vadd.f32 0.0, %v921
        %923 = vmatmul.bf16.gmra.mxu0 %v851
        %v924 = vpop.f32.mrf.mxu0
        %v925 = vadd.f32 0.0, %v924
        %v926 = vpop.f32.mrf.mxu0
        %v927 = vadd.f32 0.0, %v926
        %928 = vmatmul.bf16.gmra.mxu0 %v854
        %v929 = vpop.f32.mrf.mxu0
        %v930 = vadd.f32 0.0, %v929
        %v931 = vpop.f32.mrf.mxu0
        %v932 = vadd.f32 0.0, %v931
        %933 = vmatmul.bf16.gmra.mxu0 %v857
        %v934 = vpop.f32.mrf.mxu0
        %v935 = vadd.f32 0.0, %v934
        %v936 = vpop.f32.mrf.mxu0
        %v937 = vadd.f32 0.0, %v936
        %938 = vmatmul.bf16.gmra.mxu0 %v860
        %v939 = vpop.f32.mrf.mxu0
        %v940 = vadd.f32 0.0, %v939
        %v941 = vpop.f32.mrf.mxu0
        %v942 = vadd.f32 0.0, %v941
        %943 = vmatmul.bf16.gmra.mxu0 %v863
        %v944 = vpop.f32.mrf.mxu0
        %v945 = vadd.f32 0.0, %v944
        %v946 = vpop.f32.mrf.mxu0
        %v947 = vadd.f32 0.0, %v946
        %948 = vmatmul.bf16.gmra.mxu0 %v866
        %v949 = vpop.f32.mrf.mxu0
        %v950 = vadd.f32 0.0, %v949
        %v951 = vpop.f32.mrf.mxu0
        %v952 = vadd.f32 0.0, %v951
        %953 = vmatmul.bf16.gmra.mxu0 %v869
        %v954 = vpop.f32.mrf.mxu0
        %v955 = vadd.f32 0.0, %v954
        %v956 = vpop.f32.mrf.mxu0
        %v957 = vadd.f32 0.0, %v956
        %958 = vmatmul.bf16.gmra.mxu0 %v872
        %v959 = vpop.f32.mrf.mxu0
        %v960 = vadd.f32 0.0, %v959
        %v961 = vpop.f32.mrf.mxu0
        %v962 = vadd.f32 0.0, %v961
        %963 = vmatmul.bf16.gmra.mxu0 %v875
        %v964 = vpop.f32.mrf.mxu0
        %v965 = vadd.f32 0.0, %v964
        %v966 = vpop.f32.mrf.mxu0
        %v967 = vadd.f32 0.0, %v966
        %968 = vdwg.mxu0
        %v969 = vadd.f32 %v700, %v890
        %v970 = vadd.f32 %v702, %v892
        %v971 = vadd.f32 %v705, %v895
        %v972 = vadd.f32 %v707, %v897
        %v973 = vadd.f32 %v710, %v900
        %v974 = vadd.f32 %v712, %v902
        %v975 = vadd.f32 %v715, %v905
        %v976 = vadd.f32 %v717, %v907
        %v977 = vadd.f32 %v720, %v910
        %v978 = vadd.f32 %v722, %v912
        %v979 = vadd.f32 %v725, %v915
        %v980 = vadd.f32 %v727, %v917
        %v981 = vadd.f32 %v730, %v920
        %v982 = vadd.f32 %v732, %v922
        %v983 = vadd.f32 %v735, %v925
        %v984 = vadd.f32 %v737, %v927
        %v985 = vadd.f32 %v740, %v930
        %v986 = vadd.f32 %v742, %v932
        %v987 = vadd.f32 %v745, %v935
        %v988 = vadd.f32 %v747, %v937
        %v989 = vadd.f32 %v750, %v940
        %v990 = vadd.f32 %v752, %v942
        %v991 = vadd.f32 %v755, %v945
        %v992 = vadd.f32 %v757, %v947
        %v993 = vadd.f32 %v760, %v950
        %v994 = vadd.f32 %v762, %v952
        %v995 = vadd.f32 %v765, %v955
        %v996 = vadd.f32 %v767, %v957
        %v997 = vadd.f32 %v770, %v960
        %v998 = vadd.f32 %v772, %v962
        %v999 = vadd.f32 %v775, %v965
        %v1000 = vadd.f32 %v777, %v967
        %v1001 = vld [vmem:[%s366] sm:$0xff]
        %v1002 = vld [vmem:[%s366 + $0x8] sm:$0xff]
        %v1003 = vld [vmem:[%s366 + $0x18] sm:$0xff]
        %v1004 = vld [vmem:[%s366 + $0x20] sm:$0xff]
        %v1005 = vld [vmem:[%s366 + $0x30] sm:$0xff]
        %v1006 = vld [vmem:[%s366 + $0x38] sm:$0xff]
        %v1007 = vld [vmem:[%s366 + $0x48] sm:$0xff]
        %v1008 = vld [vmem:[%s366 + $0x50] sm:$0xff]
        %v1009 = vld [vmem:[%s366 + $0x60] sm:$0xff]
        %v1010 = vld [vmem:[%s366 + $0x68] sm:$0xff]
        %v1011 = vld [vmem:[%s366 + $0x78] sm:$0xff]
        %v1012 = vld [vmem:[%s366 + $0x80] sm:$0xff]
        %v1013 = vld [vmem:[%s366 + $0x90] sm:$0xff]
        %v1014 = vld [vmem:[%s366 + $0x98] sm:$0xff]
        %v1015 = vld [vmem:[%s366 + $0xa8] sm:$0xff]
        %v1016 = vld [vmem:[%s366 + $0xb0] sm:$0xff]
        %v1017 = vld [vmem:[%s366 + $0xc0] sm:$0xff]
        %v1018 = vld [vmem:[%s366 + $0xc8] sm:$0xff]
        %v1019 = vld [vmem:[%s366 + $0xd8] sm:$0xff]
        %v1020 = vld [vmem:[%s366 + $0xe0] sm:$0xff]
        %v1021 = vld [vmem:[%s366 + $0xf0] sm:$0xff]
        %v1022 = vld [vmem:[%s366 + $0xf8] sm:$0xff]
        %v1023 = vld [vmem:[%s366 + $0x108] sm:$0xff]
        %v1024 = vld [vmem:[%s366 + $0x110] sm:$0xff]
        %v1025 = vld [vmem:[%s366 + $0x120] sm:$0xff]
        %v1026 = vld [vmem:[%s366 + $0x128] sm:$0xff]
        %v1027 = vld [vmem:[%s366 + $0x138] sm:$0xff]
        %v1028 = vld [vmem:[%s366 + $0x140] sm:$0xff]
        %v1029 = vld [vmem:[%s366 + $0x150] sm:$0xff]
        %v1030 = vld [vmem:[%s366 + $0x158] sm:$0xff]
        %v1031 = vld [vmem:[%s366 + $0x168] sm:$0xff]
        %v1032 = vld [vmem:[%s366 + $0x170] sm:$0xff]
        %v1033 = vpack.c.bf16 %v1002, %v1001
        %v1034 = vpack.c.bf16 %v1004, %v1003
        %v1035 = vpack.c.bf16 %v1006, %v1005
        %v1036 = vpack.c.bf16 %v1008, %v1007
        %v1037 = vpack.c.bf16 %v1010, %v1009
        %v1038 = vpack.c.bf16 %v1012, %v1011
        %v1039 = vpack.c.bf16 %v1014, %v1013
        %v1040 = vpack.c.bf16 %v1016, %v1015
        %v1041 = vpack.c.bf16 %v1018, %v1017
        %v1042 = vpack.c.bf16 %v1020, %v1019
        %v1043 = vpack.c.bf16 %v1022, %v1021
        %v1044 = vpack.c.bf16 %v1024, %v1023
        %v1045 = vpack.c.bf16 %v1026, %v1025
        %v1046 = vpack.c.bf16 %v1028, %v1027
        %v1047 = vpack.c.bf16 %v1030, %v1029
        %v1048 = vpack.c.bf16 %v1032, %v1031
        %s1049 = scalar_lea.vmem %s1, 12
        %v1050 = vld [vmem:[%s1049] sm:$0xf]
        %v1052 = vsel %vm310, %v1033, 0
        %v1055 = vsel %vm310, %v1034, 0
        %v1058 = vsel %vm310, %v1035, 0
        %v1061 = vsel %vm310, %v1036, 0
        %v1064 = vsel %vm310, %v1037, 0
        %v1067 = vsel %vm310, %v1038, 0
        %v1070 = vsel %vm310, %v1039, 0
        %v1073 = vsel %vm310, %v1040, 0
        %v1076 = vsel %vm310, %v1041, 0
        %v1079 = vsel %vm310, %v1042, 0
        %v1082 = vsel %vm310, %v1043, 0
        %v1085 = vsel %vm310, %v1044, 0
        %v1088 = vsel %vm310, %v1045, 0
        %v1091 = vsel %vm310, %v1046, 0
        %v1094 = vsel %vm310, %v1047, 0
        %v1097 = vsel %vm310, %v1048, 0
        %v1100 = vsel %vm546, %v1050, 0
        %1102 = vmatpush.bf16.msra.mxu0 0
        %1103 = vmatpush.bf16.msra.mxu0 0
        %1104 = vmatpush.bf16.msra.mxu0 0
        %1105 = vmatpush.bf16.msra.mxu0 0
        %1106 = vmatpush.bf16.msra.mxu0 0
        %1107 = vmatpush.bf16.msra.mxu0 0
        %1108 = vmatpush.bf16.msra.mxu0 0
        %1109 = vmatpush.bf16.msra.mxu0 %v1100
        %1110 = vmatmul.bf16.gmra.mxu0 %v1052
        %v1111 = vpop.f32.mrf.mxu0
        %v1112 = vadd.f32 0.0, %v1111
        %v1113 = vpop.f32.mrf.mxu0
        %v1114 = vadd.f32 0.0, %v1113
        %1115 = vmatmul.bf16.gmra.mxu0 %v1055
        %v1116 = vpop.f32.mrf.mxu0
        %v1117 = vadd.f32 0.0, %v1116
        %v1118 = vpop.f32.mrf.mxu0
        %v1119 = vadd.f32 0.0, %v1118
        %1120 = vmatmul.bf16.gmra.mxu0 %v1058
        %v1121 = vpop.f32.mrf.mxu0
        %v1122 = vadd.f32 0.0, %v1121
        %v1123 = vpop.f32.mrf.mxu0
        %v1124 = vadd.f32 0.0, %v1123
        %1125 = vmatmul.bf16.gmra.mxu0 %v1061
        %v1126 = vpop.f32.mrf.mxu0
        %v1127 = vadd.f32 0.0, %v1126
        %v1128 = vpop.f32.mrf.mxu0
        %v1129 = vadd.f32 0.0, %v1128
        %1130 = vmatmul.bf16.gmra.mxu0 %v1064
        %v1131 = vpop.f32.mrf.mxu0
        %v1132 = vadd.f32 0.0, %v1131
        %v1133 = vpop.f32.mrf.mxu0
        %v1134 = vadd.f32 0.0, %v1133
        %1135 = vmatmul.bf16.gmra.mxu0 %v1067
        %v1136 = vpop.f32.mrf.mxu0
        %v1137 = vadd.f32 0.0, %v1136
        %v1138 = vpop.f32.mrf.mxu0
        %v1139 = vadd.f32 0.0, %v1138
        %1140 = vmatmul.bf16.gmra.mxu0 %v1070
        %v1141 = vpop.f32.mrf.mxu0
        %v1142 = vadd.f32 0.0, %v1141
        %v1143 = vpop.f32.mrf.mxu0
        %v1144 = vadd.f32 0.0, %v1143
        %1145 = vmatmul.bf16.gmra.mxu0 %v1073
        %v1146 = vpop.f32.mrf.mxu0
        %v1147 = vadd.f32 0.0, %v1146
        %v1148 = vpop.f32.mrf.mxu0
        %v1149 = vadd.f32 0.0, %v1148
        %1150 = vmatmul.bf16.gmra.mxu0 %v1076
        %v1151 = vpop.f32.mrf.mxu0
        %v1152 = vadd.f32 0.0, %v1151
        %v1153 = vpop.f32.mrf.mxu0
        %v1154 = vadd.f32 0.0, %v1153
        %1155 = vmatmul.bf16.gmra.mxu0 %v1079
        %v1156 = vpop.f32.mrf.mxu0
        %v1157 = vadd.f32 0.0, %v1156
        %v1158 = vpop.f32.mrf.mxu0
        %v1159 = vadd.f32 0.0, %v1158
        %1160 = vmatmul.bf16.gmra.mxu0 %v1082
        %v1161 = vpop.f32.mrf.mxu0
        %v1162 = vadd.f32 0.0, %v1161
        %v1163 = vpop.f32.mrf.mxu0
        %v1164 = vadd.f32 0.0, %v1163
        %1165 = vmatmul.bf16.gmra.mxu0 %v1085
        %v1166 = vpop.f32.mrf.mxu0
        %v1167 = vadd.f32 0.0, %v1166
        %v1168 = vpop.f32.mrf.mxu0
        %v1169 = vadd.f32 0.0, %v1168
        %1170 = vmatmul.bf16.gmra.mxu0 %v1088
        %v1171 = vpop.f32.mrf.mxu0
        %v1172 = vadd.f32 0.0, %v1171
        %v1173 = vpop.f32.mrf.mxu0
        %v1174 = vadd.f32 0.0, %v1173
        %1175 = vmatmul.bf16.gmra.mxu0 %v1091
        %v1176 = vpop.f32.mrf.mxu0
        %v1177 = vadd.f32 0.0, %v1176
        %v1178 = vpop.f32.mrf.mxu0
        %v1179 = vadd.f32 0.0, %v1178
        %1180 = vmatmul.bf16.gmra.mxu0 %v1094
        %v1181 = vpop.f32.mrf.mxu0
        %v1182 = vadd.f32 0.0, %v1181
        %v1183 = vpop.f32.mrf.mxu0
        %v1184 = vadd.f32 0.0, %v1183
        %1185 = vmatmul.bf16.gmra.mxu0 %v1097
        %v1186 = vpop.f32.mrf.mxu0
        %v1187 = vadd.f32 0.0, %v1186
        %v1188 = vpop.f32.mrf.mxu0
        %v1189 = vadd.f32 0.0, %v1188
        %1190 = vdwg.mxu0
        %v1191 = vadd.f32 %v969, %v1112
        %v1192 = vadd.f32 %v970, %v1114
        %v1193 = vadd.f32 %v971, %v1117
        %v1194 = vadd.f32 %v972, %v1119
        %v1195 = vadd.f32 %v973, %v1122
        %v1196 = vadd.f32 %v974, %v1124
        %v1197 = vadd.f32 %v975, %v1127
        %v1198 = vadd.f32 %v976, %v1129
        %v1199 = vadd.f32 %v977, %v1132
        %v1200 = vadd.f32 %v978, %v1134
        %v1201 = vadd.f32 %v979, %v1137
        %v1202 = vadd.f32 %v980, %v1139
        %v1203 = vadd.f32 %v981, %v1142
        %v1204 = vadd.f32 %v982, %v1144
        %v1205 = vadd.f32 %v983, %v1147
        %v1206 = vadd.f32 %v984, %v1149
        %v1207 = vadd.f32 %v985, %v1152
        %v1208 = vadd.f32 %v986, %v1154
        %v1209 = vadd.f32 %v987, %v1157
        %v1210 = vadd.f32 %v988, %v1159
        %v1211 = vadd.f32 %v989, %v1162
        %v1212 = vadd.f32 %v990, %v1164
        %v1213 = vadd.f32 %v991, %v1167
        %v1214 = vadd.f32 %v992, %v1169
        %v1215 = vadd.f32 %v993, %v1172
        %v1216 = vadd.f32 %v994, %v1174
        %v1217 = vadd.f32 %v995, %v1177
        %v1218 = vadd.f32 %v996, %v1179
        %v1219 = vadd.f32 %v997, %v1182
        %v1220 = vadd.f32 %v998, %v1184
        %v1221 = vadd.f32 %v999, %v1187
        %v1222 = vadd.f32 %v1000, %v1189
        %v1223 = vld [vmem:[%s366 + $0x1] sm:$0xff]
        %v1224 = vld [vmem:[%s366 + $0x9] sm:$0xff]
        %v1225 = vld [vmem:[%s366 + $0x19] sm:$0xff]
        %v1226 = vld [vmem:[%s366 + $0x21] sm:$0xff]
        %v1227 = vld [vmem:[%s366 + $0x31] sm:$0xff]
        %v1228 = vld [vmem:[%s366 + $0x39] sm:$0xff]
        %v1229 = vld [vmem:[%s366 + $0x49] sm:$0xff]
        %v1230 = vld [vmem:[%s366 + $0x51] sm:$0xff]
        %v1231 = vld [vmem:[%s366 + $0x61] sm:$0xff]
        %v1232 = vld [vmem:[%s366 + $0x69] sm:$0xff]
        %v1233 = vld [vmem:[%s366 + $0x79] sm:$0xff]
        %v1234 = vld [vmem:[%s366 + $0x81] sm:$0xff]
        %v1235 = vld [vmem:[%s366 + $0x91] sm:$0xff]
        %v1236 = vld [vmem:[%s366 + $0x99] sm:$0xff]
        %v1237 = vld [vmem:[%s366 + $0xa9] sm:$0xff]
        %v1238 = vld [vmem:[%s366 + $0xb1] sm:$0xff]
        %v1239 = vld [vmem:[%s366 + $0xc1] sm:$0xff]
        %v1240 = vld [vmem:[%s366 + $0xc9] sm:$0xff]
        %v1241 = vld [vmem:[%s366 + $0xd9] sm:$0xff]
        %v1242 = vld [vmem:[%s366 + $0xe1] sm:$0xff]
        %v1243 = vld [vmem:[%s366 + $0xf1] sm:$0xff]
        %v1244 = vld [vmem:[%s366 + $0xf9] sm:$0xff]
        %v1245 = vld [vmem:[%s366 + $0x109] sm:$0xff]
        %v1246 = vld [vmem:[%s366 + $0x111] sm:$0xff]
        %v1247 = vld [vmem:[%s366 + $0x121] sm:$0xff]
        %v1248 = vld [vmem:[%s366 + $0x129] sm:$0xff]
        %v1249 = vld [vmem:[%s366 + $0x139] sm:$0xff]
        %v1250 = vld [vmem:[%s366 + $0x141] sm:$0xff]
        %v1251 = vld [vmem:[%s366 + $0x151] sm:$0xff]
        %v1252 = vld [vmem:[%s366 + $0x159] sm:$0xff]
        %v1253 = vld [vmem:[%s366 + $0x169] sm:$0xff]
        %v1254 = vld [vmem:[%s366 + $0x171] sm:$0xff]
        %v1255 = vpack.c.bf16 %v1224, %v1223
        %v1256 = vpack.c.bf16 %v1226, %v1225
        %v1257 = vpack.c.bf16 %v1228, %v1227
        %v1258 = vpack.c.bf16 %v1230, %v1229
        %v1259 = vpack.c.bf16 %v1232, %v1231
        %v1260 = vpack.c.bf16 %v1234, %v1233
        %v1261 = vpack.c.bf16 %v1236, %v1235
        %v1262 = vpack.c.bf16 %v1238, %v1237
        %v1263 = vpack.c.bf16 %v1240, %v1239
        %v1264 = vpack.c.bf16 %v1242, %v1241
        %v1265 = vpack.c.bf16 %v1244, %v1243
        %v1266 = vpack.c.bf16 %v1246, %v1245
        %v1267 = vpack.c.bf16 %v1248, %v1247
        %v1268 = vpack.c.bf16 %v1250, %v1249
        %v1269 = vpack.c.bf16 %v1252, %v1251
        %v1270 = vpack.c.bf16 %v1254, %v1253
        %s1271 = scalar_lea.vmem %s1, 16
        %v1272 = vld [vmem:[%s1271] sm:$0xf]
        %v1274 = vsel %vm310, %v1255, 0
        %v1277 = vsel %vm310, %v1256, 0
        %v1280 = vsel %vm310, %v1257, 0
        %v1283 = vsel %vm310, %v1258, 0
        %v1286 = vsel %vm310, %v1259, 0
        %v1289 = vsel %vm310, %v1260, 0
        %v1292 = vsel %vm310, %v1261, 0
        %v1295 = vsel %vm310, %v1262, 0
        %v1298 = vsel %vm310, %v1263, 0
        %v1301 = vsel %vm310, %v1264, 0
        %v1304 = vsel %vm310, %v1265, 0
        %v1307 = vsel %vm310, %v1266, 0
        %v1310 = vsel %vm310, %v1267, 0
        %v1313 = vsel %vm310, %v1268, 0
        %v1316 = vsel %vm310, %v1269, 0
        %v1319 = vsel %vm310, %v1270, 0
        %v1322 = vsel %vm546, %v1272, 0
        %1324 = vmatpush.bf16.msra.mxu0 0
        %1325 = vmatpush.bf16.msra.mxu0 0
        %1326 = vmatpush.bf16.msra.mxu0 0
        %1327 = vmatpush.bf16.msra.mxu0 0
        %1328 = vmatpush.bf16.msra.mxu0 0
        %1329 = vmatpush.bf16.msra.mxu0 0
        %1330 = vmatpush.bf16.msra.mxu0 0
        %1331 = vmatpush.bf16.msra.mxu0 %v1322
        %1332 = vmatmul.bf16.gmra.mxu0 %v1274
        %v1333 = vpop.f32.mrf.mxu0
        %v1334 = vadd.f32 0.0, %v1333
        %v1335 = vpop.f32.mrf.mxu0
        %v1336 = vadd.f32 0.0, %v1335
        %1337 = vmatmul.bf16.gmra.mxu0 %v1277
        %v1338 = vpop.f32.mrf.mxu0
        %v1339 = vadd.f32 0.0, %v1338
        %v1340 = vpop.f32.mrf.mxu0
        %v1341 = vadd.f32 0.0, %v1340
        %1342 = vmatmul.bf16.gmra.mxu0 %v1280
        %v1343 = vpop.f32.mrf.mxu0
        %v1344 = vadd.f32 0.0, %v1343
        %v1345 = vpop.f32.mrf.mxu0
        %v1346 = vadd.f32 0.0, %v1345
        %1347 = vmatmul.bf16.gmra.mxu0 %v1283
        %v1348 = vpop.f32.mrf.mxu0
        %v1349 = vadd.f32 0.0, %v1348
        %v1350 = vpop.f32.mrf.mxu0
        %v1351 = vadd.f32 0.0, %v1350
        %1352 = vmatmul.bf16.gmra.mxu0 %v1286
        %v1353 = vpop.f32.mrf.mxu0
        %v1354 = vadd.f32 0.0, %v1353
        %v1355 = vpop.f32.mrf.mxu0
        %v1356 = vadd.f32 0.0, %v1355
        %1357 = vmatmul.bf16.gmra.mxu0 %v1289
        %v1358 = vpop.f32.mrf.mxu0
        %v1359 = vadd.f32 0.0, %v1358
        %v1360 = vpop.f32.mrf.mxu0
        %v1361 = vadd.f32 0.0, %v1360
        %1362 = vmatmul.bf16.gmra.mxu0 %v1292
        %v1363 = vpop.f32.mrf.mxu0
        %v1364 = vadd.f32 0.0, %v1363
        %v1365 = vpop.f32.mrf.mxu0
        %v1366 = vadd.f32 0.0, %v1365
        %1367 = vmatmul.bf16.gmra.mxu0 %v1295
        %v1368 = vpop.f32.mrf.mxu0
        %v1369 = vadd.f32 0.0, %v1368
        %v1370 = vpop.f32.mrf.mxu0
        %v1371 = vadd.f32 0.0, %v1370
        %1372 = vmatmul.bf16.gmra.mxu0 %v1298
        %v1373 = vpop.f32.mrf.mxu0
        %v1374 = vadd.f32 0.0, %v1373
        %v1375 = vpop.f32.mrf.mxu0
        %v1376 = vadd.f32 0.0, %v1375
        %1377 = vmatmul.bf16.gmra.mxu0 %v1301
        %v1378 = vpop.f32.mrf.mxu0
        %v1379 = vadd.f32 0.0, %v1378
        %v1380 = vpop.f32.mrf.mxu0
        %v1381 = vadd.f32 0.0, %v1380
        %1382 = vmatmul.bf16.gmra.mxu0 %v1304
        %v1383 = vpop.f32.mrf.mxu0
        %v1384 = vadd.f32 0.0, %v1383
        %v1385 = vpop.f32.mrf.mxu0
        %v1386 = vadd.f32 0.0, %v1385
        %1387 = vmatmul.bf16.gmra.mxu0 %v1307
        %v1388 = vpop.f32.mrf.mxu0
        %v1389 = vadd.f32 0.0, %v1388
        %v1390 = vpop.f32.mrf.mxu0
        %v1391 = vadd.f32 0.0, %v1390
        %1392 = vmatmul.bf16.gmra.mxu0 %v1310
        %v1393 = vpop.f32.mrf.mxu0
        %v1394 = vadd.f32 0.0, %v1393
        %v1395 = vpop.f32.mrf.mxu0
        %v1396 = vadd.f32 0.0, %v1395
        %1397 = vmatmul.bf16.gmra.mxu0 %v1313
        %v1398 = vpop.f32.mrf.mxu0
        %v1399 = vadd.f32 0.0, %v1398
        %v1400 = vpop.f32.mrf.mxu0
        %v1401 = vadd.f32 0.0, %v1400
        %1402 = vmatmul.bf16.gmra.mxu0 %v1316
        %v1403 = vpop.f32.mrf.mxu0
        %v1404 = vadd.f32 0.0, %v1403
        %v1405 = vpop.f32.mrf.mxu0
        %v1406 = vadd.f32 0.0, %v1405
        %1407 = vmatmul.bf16.gmra.mxu0 %v1319
        %v1408 = vpop.f32.mrf.mxu0
        %v1409 = vadd.f32 0.0, %v1408
        %v1410 = vpop.f32.mrf.mxu0
        %v1411 = vadd.f32 0.0, %v1410
        %1412 = vdwg.mxu0
        %v1413 = vadd.f32 %v1191, %v1334
        %v1414 = vadd.f32 %v1192, %v1336
        %v1415 = vadd.f32 %v1193, %v1339
        %v1416 = vadd.f32 %v1194, %v1341
        %v1417 = vadd.f32 %v1195, %v1344
        %v1418 = vadd.f32 %v1196, %v1346
        %v1419 = vadd.f32 %v1197, %v1349
        %v1420 = vadd.f32 %v1198, %v1351
        %v1421 = vadd.f32 %v1199, %v1354
        %v1422 = vadd.f32 %v1200, %v1356
        %v1423 = vadd.f32 %v1201, %v1359
        %v1424 = vadd.f32 %v1202, %v1361
        %v1425 = vadd.f32 %v1203, %v1364
        %v1426 = vadd.f32 %v1204, %v1366
        %v1427 = vadd.f32 %v1205, %v1369
        %v1428 = vadd.f32 %v1206, %v1371
        %v1429 = vadd.f32 %v1207, %v1374
        %v1430 = vadd.f32 %v1208, %v1376
        %v1431 = vadd.f32 %v1209, %v1379
        %v1432 = vadd.f32 %v1210, %v1381
        %v1433 = vadd.f32 %v1211, %v1384
        %v1434 = vadd.f32 %v1212, %v1386
        %v1435 = vadd.f32 %v1213, %v1389
        %v1436 = vadd.f32 %v1214, %v1391
        %v1437 = vadd.f32 %v1215, %v1394
        %v1438 = vadd.f32 %v1216, %v1396
        %v1439 = vadd.f32 %v1217, %v1399
        %v1440 = vadd.f32 %v1218, %v1401
        %v1441 = vadd.f32 %v1219, %v1404
        %v1442 = vadd.f32 %v1220, %v1406
        %v1443 = vadd.f32 %v1221, %v1409
        %v1444 = vadd.f32 %v1222, %v1411
        %v1445 = vld [vmem:[%s366 + $0x2] sm:$0xff]
        %v1446 = vld [vmem:[%s366 + $0xa] sm:$0xff]
        %v1447 = vld [vmem:[%s366 + $0x1a] sm:$0xff]
        %v1448 = vld [vmem:[%s366 + $0x22] sm:$0xff]
        %v1449 = vld [vmem:[%s366 + $0x32] sm:$0xff]
        %v1450 = vld [vmem:[%s366 + $0x3a] sm:$0xff]
        %v1451 = vld [vmem:[%s366 + $0x4a] sm:$0xff]
        %v1452 = vld [vmem:[%s366 + $0x52] sm:$0xff]
        %v1453 = vld [vmem:[%s366 + $0x62] sm:$0xff]
        %v1454 = vld [vmem:[%s366 + $0x6a] sm:$0xff]
        %v1455 = vld [vmem:[%s366 + $0x7a] sm:$0xff]
        %v1456 = vld [vmem:[%s366 + $0x82] sm:$0xff]
        %v1457 = vld [vmem:[%s366 + $0x92] sm:$0xff]
        %v1458 = vld [vmem:[%s366 + $0x9a] sm:$0xff]
        %v1459 = vld [vmem:[%s366 + $0xaa] sm:$0xff]
        %v1460 = vld [vmem:[%s366 + $0xb2] sm:$0xff]
        %v1461 = vld [vmem:[%s366 + $0xc2] sm:$0xff]
        %v1462 = vld [vmem:[%s366 + $0xca] sm:$0xff]
        %v1463 = vld [vmem:[%s366 + $0xda] sm:$0xff]
        %v1464 = vld [vmem:[%s366 + $0xe2] sm:$0xff]
        %v1465 = vld [vmem:[%s366 + $0xf2] sm:$0xff]
        %v1466 = vld [vmem:[%s366 + $0xfa] sm:$0xff]
        %v1467 = vld [vmem:[%s366 + $0x10a] sm:$0xff]
        %v1468 = vld [vmem:[%s366 + $0x112] sm:$0xff]
        %v1469 = vld [vmem:[%s366 + $0x122] sm:$0xff]
        %v1470 = vld [vmem:[%s366 + $0x12a] sm:$0xff]
        %v1471 = vld [vmem:[%s366 + $0x13a] sm:$0xff]
        %v1472 = vld [vmem:[%s366 + $0x142] sm:$0xff]
        %v1473 = vld [vmem:[%s366 + $0x152] sm:$0xff]
        %v1474 = vld [vmem:[%s366 + $0x15a] sm:$0xff]
        %v1475 = vld [vmem:[%s366 + $0x16a] sm:$0xff]
        %v1476 = vld [vmem:[%s366 + $0x172] sm:$0xff]
        %v1477 = vpack.c.bf16 %v1446, %v1445
        %v1478 = vpack.c.bf16 %v1448, %v1447
        %v1479 = vpack.c.bf16 %v1450, %v1449
        %v1480 = vpack.c.bf16 %v1452, %v1451
        %v1481 = vpack.c.bf16 %v1454, %v1453
        %v1482 = vpack.c.bf16 %v1456, %v1455
        %v1483 = vpack.c.bf16 %v1458, %v1457
        %v1484 = vpack.c.bf16 %v1460, %v1459
        %v1485 = vpack.c.bf16 %v1462, %v1461
        %v1486 = vpack.c.bf16 %v1464, %v1463
        %v1487 = vpack.c.bf16 %v1466, %v1465
        %v1488 = vpack.c.bf16 %v1468, %v1467
        %v1489 = vpack.c.bf16 %v1470, %v1469
        %v1490 = vpack.c.bf16 %v1472, %v1471
        %v1491 = vpack.c.bf16 %v1474, %v1473
        %v1492 = vpack.c.bf16 %v1476, %v1475
        %s1493 = scalar_lea.vmem %s1, 20
        %v1494 = vld [vmem:[%s1493] sm:$0xf]
        %v1496 = vsel %vm310, %v1477, 0
        %v1499 = vsel %vm310, %v1478, 0
        %v1502 = vsel %vm310, %v1479, 0
        %v1505 = vsel %vm310, %v1480, 0
        %v1508 = vsel %vm310, %v1481, 0
        %v1511 = vsel %vm310, %v1482, 0
        %v1514 = vsel %vm310, %v1483, 0
        %v1517 = vsel %vm310, %v1484, 0
        %v1520 = vsel %vm310, %v1485, 0
        %v1523 = vsel %vm310, %v1486, 0
        %v1526 = vsel %vm310, %v1487, 0
        %v1529 = vsel %vm310, %v1488, 0
        %v1532 = vsel %vm310, %v1489, 0
        %v1535 = vsel %vm310, %v1490, 0
        %v1538 = vsel %vm310, %v1491, 0
        %v1541 = vsel %vm310, %v1492, 0
        %v1544 = vsel %vm546, %v1494, 0
        %1546 = vmatpush.bf16.msra.mxu0 0
        %1547 = vmatpush.bf16.msra.mxu0 0
        %1548 = vmatpush.bf16.msra.mxu0 0
        %1549 = vmatpush.bf16.msra.mxu0 0
        %1550 = vmatpush.bf16.msra.mxu0 0
        %1551 = vmatpush.bf16.msra.mxu0 0
        %1552 = vmatpush.bf16.msra.mxu0 0
        %1553 = vmatpush.bf16.msra.mxu0 %v1544
        %1554 = vmatmul.bf16.gmra.mxu0 %v1496
        %v1555 = vpop.f32.mrf.mxu0
        %v1556 = vadd.f32 0.0, %v1555
        %v1557 = vpop.f32.mrf.mxu0
        %v1558 = vadd.f32 0.0, %v1557
        %1559 = vmatmul.bf16.gmra.mxu0 %v1499
        %v1560 = vpop.f32.mrf.mxu0
        %v1561 = vadd.f32 0.0, %v1560
        %v1562 = vpop.f32.mrf.mxu0
        %v1563 = vadd.f32 0.0, %v1562
        %1564 = vmatmul.bf16.gmra.mxu0 %v1502
        %v1565 = vpop.f32.mrf.mxu0
        %v1566 = vadd.f32 0.0, %v1565
        %v1567 = vpop.f32.mrf.mxu0
        %v1568 = vadd.f32 0.0, %v1567
        %1569 = vmatmul.bf16.gmra.mxu0 %v1505
        %v1570 = vpop.f32.mrf.mxu0
        %v1571 = vadd.f32 0.0, %v1570
        %v1572 = vpop.f32.mrf.mxu0
        %v1573 = vadd.f32 0.0, %v1572
        %1574 = vmatmul.bf16.gmra.mxu0 %v1508
        %v1575 = vpop.f32.mrf.mxu0
        %v1576 = vadd.f32 0.0, %v1575
        %v1577 = vpop.f32.mrf.mxu0
        %v1578 = vadd.f32 0.0, %v1577
        %1579 = vmatmul.bf16.gmra.mxu0 %v1511
        %v1580 = vpop.f32.mrf.mxu0
        %v1581 = vadd.f32 0.0, %v1580
        %v1582 = vpop.f32.mrf.mxu0
        %v1583 = vadd.f32 0.0, %v1582
        %1584 = vmatmul.bf16.gmra.mxu0 %v1514
        %v1585 = vpop.f32.mrf.mxu0
        %v1586 = vadd.f32 0.0, %v1585
        %v1587 = vpop.f32.mrf.mxu0
        %v1588 = vadd.f32 0.0, %v1587
        %1589 = vmatmul.bf16.gmra.mxu0 %v1517
        %v1590 = vpop.f32.mrf.mxu0
        %v1591 = vadd.f32 0.0, %v1590
        %v1592 = vpop.f32.mrf.mxu0
        %v1593 = vadd.f32 0.0, %v1592
        %1594 = vmatmul.bf16.gmra.mxu0 %v1520
        %v1595 = vpop.f32.mrf.mxu0
        %v1596 = vadd.f32 0.0, %v1595
        %v1597 = vpop.f32.mrf.mxu0
        %v1598 = vadd.f32 0.0, %v1597
        %1599 = vmatmul.bf16.gmra.mxu0 %v1523
        %v1600 = vpop.f32.mrf.mxu0
        %v1601 = vadd.f32 0.0, %v1600
        %v1602 = vpop.f32.mrf.mxu0
        %v1603 = vadd.f32 0.0, %v1602
        %1604 = vmatmul.bf16.gmra.mxu0 %v1526
        %v1605 = vpop.f32.mrf.mxu0
        %v1606 = vadd.f32 0.0, %v1605
        %v1607 = vpop.f32.mrf.mxu0
        %v1608 = vadd.f32 0.0, %v1607
        %1609 = vmatmul.bf16.gmra.mxu0 %v1529
        %v1610 = vpop.f32.mrf.mxu0
        %v1611 = vadd.f32 0.0, %v1610
        %v1612 = vpop.f32.mrf.mxu0
        %v1613 = vadd.f32 0.0, %v1612
        %1614 = vmatmul.bf16.gmra.mxu0 %v1532
        %v1615 = vpop.f32.mrf.mxu0
        %v1616 = vadd.f32 0.0, %v1615
        %v1617 = vpop.f32.mrf.mxu0
        %v1618 = vadd.f32 0.0, %v1617
        %1619 = vmatmul.bf16.gmra.mxu0 %v1535
        %v1620 = vpop.f32.mrf.mxu0
        %v1621 = vadd.f32 0.0, %v1620
        %v1622 = vpop.f32.mrf.mxu0
        %v1623 = vadd.f32 0.0, %v1622
        %1624 = vmatmul.bf16.gmra.mxu0 %v1538
        %v1625 = vpop.f32.mrf.mxu0
        %v1626 = vadd.f32 0.0, %v1625
        %v1627 = vpop.f32.mrf.mxu0
        %v1628 = vadd.f32 0.0, %v1627
        %1629 = vmatmul.bf16.gmra.mxu0 %v1541
        %v1630 = vpop.f32.mrf.mxu0
        %v1631 = vadd.f32 0.0, %v1630
        %v1632 = vpop.f32.mrf.mxu0
        %v1633 = vadd.f32 0.0, %v1632
        %1634 = vdwg.mxu0
        %v1635 = vadd.f32 %v1413, %v1556
        %v1636 = vadd.f32 %v1414, %v1558
        %v1637 = vadd.f32 %v1415, %v1561
        %v1638 = vadd.f32 %v1416, %v1563
        %v1639 = vadd.f32 %v1417, %v1566
        %v1640 = vadd.f32 %v1418, %v1568
        %v1641 = vadd.f32 %v1419, %v1571
        %v1642 = vadd.f32 %v1420, %v1573
        %v1643 = vadd.f32 %v1421, %v1576
        %v1644 = vadd.f32 %v1422, %v1578
        %v1645 = vadd.f32 %v1423, %v1581
        %v1646 = vadd.f32 %v1424, %v1583
        %v1647 = vadd.f32 %v1425, %v1586
        %v1648 = vadd.f32 %v1426, %v1588
        %v1649 = vadd.f32 %v1427, %v1591
        %v1650 = vadd.f32 %v1428, %v1593
        %v1651 = vadd.f32 %v1429, %v1596
        %v1652 = vadd.f32 %v1430, %v1598
        %v1653 = vadd.f32 %v1431, %v1601
        %v1654 = vadd.f32 %v1432, %v1603
        %v1655 = vadd.f32 %v1433, %v1606
        %v1656 = vadd.f32 %v1434, %v1608
        %v1657 = vadd.f32 %v1435, %v1611
        %v1658 = vadd.f32 %v1436, %v1613
        %v1659 = vadd.f32 %v1437, %v1616
        %v1660 = vadd.f32 %v1438, %v1618
        %v1661 = vadd.f32 %v1439, %v1621
        %v1662 = vadd.f32 %v1440, %v1623
        %v1663 = vadd.f32 %v1441, %v1626
        %v1664 = vadd.f32 %v1442, %v1628
        %v1665 = vadd.f32 %v1443, %v1631
        %v1666 = vadd.f32 %v1444, %v1633
        %s1667 = scalar_lea.vmem [#allocation2], 48
        %v1668 = vld [vmem:[%s1667] sm:$0xff]
        %v1669 = vld [vmem:[%s1667 + $0x8] sm:$0xff]
        %v1670 = vld [vmem:[%s1667 + $0x18] sm:$0xff]
        %v1671 = vld [vmem:[%s1667 + $0x20] sm:$0xff]
        %v1672 = vld [vmem:[%s1667 + $0x30] sm:$0xff]
        %v1673 = vld [vmem:[%s1667 + $0x38] sm:$0xff]
        %v1674 = vld [vmem:[%s1667 + $0x48] sm:$0xff]
        %v1675 = vld [vmem:[%s1667 + $0x50] sm:$0xff]
        %v1676 = vld [vmem:[%s1667 + $0x60] sm:$0xff]
        %v1677 = vld [vmem:[%s1667 + $0x68] sm:$0xff]
        %v1678 = vld [vmem:[%s1667 + $0x78] sm:$0xff]
        %v1679 = vld [vmem:[%s1667 + $0x80] sm:$0xff]
        %v1680 = vld [vmem:[%s1667 + $0x90] sm:$0xff]
        %v1681 = vld [vmem:[%s1667 + $0x98] sm:$0xff]
        %v1682 = vld [vmem:[%s1667 + $0xa8] sm:$0xff]
        %v1683 = vld [vmem:[%s1667 + $0xb0] sm:$0xff]
        %v1684 = vld [vmem:[%s1667 + $0xc0] sm:$0xff]
        %v1685 = vld [vmem:[%s1667 + $0xc8] sm:$0xff]
        %v1686 = vld [vmem:[%s1667 + $0xd8] sm:$0xff]
        %v1687 = vld [vmem:[%s1667 + $0xe0] sm:$0xff]
        %v1688 = vld [vmem:[%s1667 + $0xf0] sm:$0xff]
        %v1689 = vld [vmem:[%s1667 + $0xf8] sm:$0xff]
        %v1690 = vld [vmem:[%s1667 + $0x108] sm:$0xff]
        %v1691 = vld [vmem:[%s1667 + $0x110] sm:$0xff]
        %v1692 = vld [vmem:[%s1667 + $0x120] sm:$0xff]
        %v1693 = vld [vmem:[%s1667 + $0x128] sm:$0xff]
        %v1694 = vld [vmem:[%s1667 + $0x138] sm:$0xff]
        %v1695 = vld [vmem:[%s1667 + $0x140] sm:$0xff]
        %v1696 = vld [vmem:[%s1667 + $0x150] sm:$0xff]
        %v1697 = vld [vmem:[%s1667 + $0x158] sm:$0xff]
        %v1698 = vld [vmem:[%s1667 + $0x168] sm:$0xff]
        %v1699 = vld [vmem:[%s1667 + $0x170] sm:$0xff]
        %v1700 = vpack.c.bf16 %v1669, %v1668
        %v1701 = vpack.c.bf16 %v1671, %v1670
        %v1702 = vpack.c.bf16 %v1673, %v1672
        %v1703 = vpack.c.bf16 %v1675, %v1674
        %v1704 = vpack.c.bf16 %v1677, %v1676
        %v1705 = vpack.c.bf16 %v1679, %v1678
        %v1706 = vpack.c.bf16 %v1681, %v1680
        %v1707 = vpack.c.bf16 %v1683, %v1682
        %v1708 = vpack.c.bf16 %v1685, %v1684
        %v1709 = vpack.c.bf16 %v1687, %v1686
        %v1710 = vpack.c.bf16 %v1689, %v1688
        %v1711 = vpack.c.bf16 %v1691, %v1690
        %v1712 = vpack.c.bf16 %v1693, %v1692
        %v1713 = vpack.c.bf16 %v1695, %v1694
        %v1714 = vpack.c.bf16 %v1697, %v1696
        %v1715 = vpack.c.bf16 %v1699, %v1698
        %s1716 = scalar_lea.vmem %s1, 24
        %v1717 = vld [vmem:[%s1716] sm:$0xf]
        %v1719 = vsel %vm310, %v1700, 0
        %v1722 = vsel %vm310, %v1701, 0
        %v1725 = vsel %vm310, %v1702, 0
        %v1728 = vsel %vm310, %v1703, 0
        %v1731 = vsel %vm310, %v1704, 0
        %v1734 = vsel %vm310, %v1705, 0
        %v1737 = vsel %vm310, %v1706, 0
        %v1740 = vsel %vm310, %v1707, 0
        %v1743 = vsel %vm310, %v1708, 0
        %v1746 = vsel %vm310, %v1709, 0
        %v1749 = vsel %vm310, %v1710, 0
        %v1752 = vsel %vm310, %v1711, 0
        %v1755 = vsel %vm310, %v1712, 0
        %v1758 = vsel %vm310, %v1713, 0
        %v1761 = vsel %vm310, %v1714, 0
        %v1764 = vsel %vm310, %v1715, 0
        %v1767 = vsel %vm546, %v1717, 0
        %1769 = vmatpush.bf16.msra.mxu0 0
        %1770 = vmatpush.bf16.msra.mxu0 0
        %1771 = vmatpush.bf16.msra.mxu0 0
        %1772 = vmatpush.bf16.msra.mxu0 0
        %1773 = vmatpush.bf16.msra.mxu0 0
        %1774 = vmatpush.bf16.msra.mxu0 0
        %1775 = vmatpush.bf16.msra.mxu0 0
        %1776 = vmatpush.bf16.msra.mxu0 %v1767
        %1777 = vmatmul.bf16.gmra.mxu0 %v1719
        %v1778 = vpop.f32.mrf.mxu0
        %v1779 = vadd.f32 0.0, %v1778
        %v1780 = vpop.f32.mrf.mxu0
        %v1781 = vadd.f32 0.0, %v1780
        %1782 = vmatmul.bf16.gmra.mxu0 %v1722
        %v1783 = vpop.f32.mrf.mxu0
        %v1784 = vadd.f32 0.0, %v1783
        %v1785 = vpop.f32.mrf.mxu0
        %v1786 = vadd.f32 0.0, %v1785
        %1787 = vmatmul.bf16.gmra.mxu0 %v1725
        %v1788 = vpop.f32.mrf.mxu0
        %v1789 = vadd.f32 0.0, %v1788
        %v1790 = vpop.f32.mrf.mxu0
        %v1791 = vadd.f32 0.0, %v1790
        %1792 = vmatmul.bf16.gmra.mxu0 %v1728
        %v1793 = vpop.f32.mrf.mxu0
        %v1794 = vadd.f32 0.0, %v1793
        %v1795 = vpop.f32.mrf.mxu0
        %v1796 = vadd.f32 0.0, %v1795
        %1797 = vmatmul.bf16.gmra.mxu0 %v1731
        %v1798 = vpop.f32.mrf.mxu0
        %v1799 = vadd.f32 0.0, %v1798
        %v1800 = vpop.f32.mrf.mxu0
        %v1801 = vadd.f32 0.0, %v1800
        %1802 = vmatmul.bf16.gmra.mxu0 %v1734
        %v1803 = vpop.f32.mrf.mxu0
        %v1804 = vadd.f32 0.0, %v1803
        %v1805 = vpop.f32.mrf.mxu0
        %v1806 = vadd.f32 0.0, %v1805
        %1807 = vmatmul.bf16.gmra.mxu0 %v1737
        %v1808 = vpop.f32.mrf.mxu0
        %v1809 = vadd.f32 0.0, %v1808
        %v1810 = vpop.f32.mrf.mxu0
        %v1811 = vadd.f32 0.0, %v1810
        %1812 = vmatmul.bf16.gmra.mxu0 %v1740
        %v1813 = vpop.f32.mrf.mxu0
        %v1814 = vadd.f32 0.0, %v1813
        %v1815 = vpop.f32.mrf.mxu0
        %v1816 = vadd.f32 0.0, %v1815
        %1817 = vmatmul.bf16.gmra.mxu0 %v1743
        %v1818 = vpop.f32.mrf.mxu0
        %v1819 = vadd.f32 0.0, %v1818
        %v1820 = vpop.f32.mrf.mxu0
        %v1821 = vadd.f32 0.0, %v1820
        %1822 = vmatmul.bf16.gmra.mxu0 %v1746
        %v1823 = vpop.f32.mrf.mxu0
        %v1824 = vadd.f32 0.0, %v1823
        %v1825 = vpop.f32.mrf.mxu0
        %v1826 = vadd.f32 0.0, %v1825
        %1827 = vmatmul.bf16.gmra.mxu0 %v1749
        %v1828 = vpop.f32.mrf.mxu0
        %v1829 = vadd.f32 0.0, %v1828
        %v1830 = vpop.f32.mrf.mxu0
        %v1831 = vadd.f32 0.0, %v1830
        %1832 = vmatmul.bf16.gmra.mxu0 %v1752
        %v1833 = vpop.f32.mrf.mxu0
        %v1834 = vadd.f32 0.0, %v1833
        %v1835 = vpop.f32.mrf.mxu0
        %v1836 = vadd.f32 0.0, %v1835
        %1837 = vmatmul.bf16.gmra.mxu0 %v1755
        %v1838 = vpop.f32.mrf.mxu0
        %v1839 = vadd.f32 0.0, %v1838
        %v1840 = vpop.f32.mrf.mxu0
        %v1841 = vadd.f32 0.0, %v1840
        %1842 = vmatmul.bf16.gmra.mxu0 %v1758
        %v1843 = vpop.f32.mrf.mxu0
        %v1844 = vadd.f32 0.0, %v1843
        %v1845 = vpop.f32.mrf.mxu0
        %v1846 = vadd.f32 0.0, %v1845
        %1847 = vmatmul.bf16.gmra.mxu0 %v1761
        %v1848 = vpop.f32.mrf.mxu0
        %v1849 = vadd.f32 0.0, %v1848
        %v1850 = vpop.f32.mrf.mxu0
        %v1851 = vadd.f32 0.0, %v1850
        %1852 = vmatmul.bf16.gmra.mxu0 %v1764
        %v1853 = vpop.f32.mrf.mxu0
        %v1854 = vadd.f32 0.0, %v1853
        %v1855 = vpop.f32.mrf.mxu0
        %v1856 = vadd.f32 0.0, %v1855
        %1857 = vdwg.mxu0
        %v1858 = vadd.f32 %v1635, %v1779
        %v1859 = vadd.f32 %v1636, %v1781
        %v1860 = vadd.f32 %v1637, %v1784
        %v1861 = vadd.f32 %v1638, %v1786
        %v1862 = vadd.f32 %v1639, %v1789
        %v1863 = vadd.f32 %v1640, %v1791
        %v1864 = vadd.f32 %v1641, %v1794
        %v1865 = vadd.f32 %v1642, %v1796
        %v1866 = vadd.f32 %v1643, %v1799
        %v1867 = vadd.f32 %v1644, %v1801
        %v1868 = vadd.f32 %v1645, %v1804
        %v1869 = vadd.f32 %v1646, %v1806
        %v1870 = vadd.f32 %v1647, %v1809
        %v1871 = vadd.f32 %v1648, %v1811
        %v1872 = vadd.f32 %v1649, %v1814
        %v1873 = vadd.f32 %v1650, %v1816
        %v1874 = vadd.f32 %v1651, %v1819
        %v1875 = vadd.f32 %v1652, %v1821
        %v1876 = vadd.f32 %v1653, %v1824
        %v1877 = vadd.f32 %v1654, %v1826
        %v1878 = vadd.f32 %v1655, %v1829
        %v1879 = vadd.f32 %v1656, %v1831
        %v1880 = vadd.f32 %v1657, %v1834
        %v1881 = vadd.f32 %v1658, %v1836
        %v1882 = vadd.f32 %v1659, %v1839
        %v1883 = vadd.f32 %v1660, %v1841
        %v1884 = vadd.f32 %v1661, %v1844
        %v1885 = vadd.f32 %v1662, %v1846
        %v1886 = vadd.f32 %v1663, %v1849
        %v1887 = vadd.f32 %v1664, %v1851
        %v1888 = vadd.f32 %v1665, %v1854
        %v1889 = vadd.f32 %v1666, %v1856
        %v1890 = vld [vmem:[%s1667 + $0x1] sm:$0xff]
        %v1891 = vld [vmem:[%s1667 + $0x9] sm:$0xff]
        %v1892 = vld [vmem:[%s1667 + $0x19] sm:$0xff]
        %v1893 = vld [vmem:[%s1667 + $0x21] sm:$0xff]
        %v1894 = vld [vmem:[%s1667 + $0x31] sm:$0xff]
        %v1895 = vld [vmem:[%s1667 + $0x39] sm:$0xff]
        %v1896 = vld [vmem:[%s1667 + $0x49] sm:$0xff]
        %v1897 = vld [vmem:[%s1667 + $0x51] sm:$0xff]
        %v1898 = vld [vmem:[%s1667 + $0x61] sm:$0xff]
        %v1899 = vld [vmem:[%s1667 + $0x69] sm:$0xff]
        %v1900 = vld [vmem:[%s1667 + $0x79] sm:$0xff]
        %v1901 = vld [vmem:[%s1667 + $0x81] sm:$0xff]
        %v1902 = vld [vmem:[%s1667 + $0x91] sm:$0xff]
        %v1903 = vld [vmem:[%s1667 + $0x99] sm:$0xff]
        %v1904 = vld [vmem:[%s1667 + $0xa9] sm:$0xff]
        %v1905 = vld [vmem:[%s1667 + $0xb1] sm:$0xff]
        %v1906 = vld [vmem:[%s1667 + $0xc1] sm:$0xff]
        %v1907 = vld [vmem:[%s1667 + $0xc9] sm:$0xff]
        %v1908 = vld [vmem:[%s1667 + $0xd9] sm:$0xff]
        %v1909 = vld [vmem:[%s1667 + $0xe1] sm:$0xff]
        %v1910 = vld [vmem:[%s1667 + $0xf1] sm:$0xff]
        %v1911 = vld [vmem:[%s1667 + $0xf9] sm:$0xff]
        %v1912 = vld [vmem:[%s1667 + $0x109] sm:$0xff]
        %v1913 = vld [vmem:[%s1667 + $0x111] sm:$0xff]
        %v1914 = vld [vmem:[%s1667 + $0x121] sm:$0xff]
        %v1915 = vld [vmem:[%s1667 + $0x129] sm:$0xff]
        %v1916 = vld [vmem:[%s1667 + $0x139] sm:$0xff]
        %v1917 = vld [vmem:[%s1667 + $0x141] sm:$0xff]
        %v1918 = vld [vmem:[%s1667 + $0x151] sm:$0xff]
        %v1919 = vld [vmem:[%s1667 + $0x159] sm:$0xff]
        %v1920 = vld [vmem:[%s1667 + $0x169] sm:$0xff]
        %v1921 = vld [vmem:[%s1667 + $0x171] sm:$0xff]
        %v1922 = vpack.c.bf16 %v1891, %v1890
        %v1923 = vpack.c.bf16 %v1893, %v1892
        %v1924 = vpack.c.bf16 %v1895, %v1894
        %v1925 = vpack.c.bf16 %v1897, %v1896
        %v1926 = vpack.c.bf16 %v1899, %v1898
        %v1927 = vpack.c.bf16 %v1901, %v1900
        %v1928 = vpack.c.bf16 %v1903, %v1902
        %v1929 = vpack.c.bf16 %v1905, %v1904
        %v1930 = vpack.c.bf16 %v1907, %v1906
        %v1931 = vpack.c.bf16 %v1909, %v1908
        %v1932 = vpack.c.bf16 %v1911, %v1910
        %v1933 = vpack.c.bf16 %v1913, %v1912
        %v1934 = vpack.c.bf16 %v1915, %v1914
        %v1935 = vpack.c.bf16 %v1917, %v1916
        %v1936 = vpack.c.bf16 %v1919, %v1918
        %v1937 = vpack.c.bf16 %v1921, %v1920
        %s1938 = scalar_lea.vmem %s1, 28
        %v1939 = vld [vmem:[%s1938] sm:$0xf]
        %v1941 = vsel %vm310, %v1922, 0
        %v1944 = vsel %vm310, %v1923, 0
        %v1947 = vsel %vm310, %v1924, 0
        %v1950 = vsel %vm310, %v1925, 0
        %v1953 = vsel %vm310, %v1926, 0
        %v1956 = vsel %vm310, %v1927, 0
        %v1959 = vsel %vm310, %v1928, 0
        %v1962 = vsel %vm310, %v1929, 0
        %v1965 = vsel %vm310, %v1930, 0
        %v1968 = vsel %vm310, %v1931, 0
        %v1971 = vsel %vm310, %v1932, 0
        %v1974 = vsel %vm310, %v1933, 0
        %v1977 = vsel %vm310, %v1934, 0
        %v1980 = vsel %vm310, %v1935, 0
        %v1983 = vsel %vm310, %v1936, 0
        %v1986 = vsel %vm310, %v1937, 0
        %v1989 = vsel %vm546, %v1939, 0
        %1991 = vmatpush.bf16.msra.mxu0 0
        %1992 = vmatpush.bf16.msra.mxu0 0
        %1993 = vmatpush.bf16.msra.mxu0 0
        %1994 = vmatpush.bf16.msra.mxu0 0
        %1995 = vmatpush.bf16.msra.mxu0 0
        %1996 = vmatpush.bf16.msra.mxu0 0
        %1997 = vmatpush.bf16.msra.mxu0 0
        %1998 = vmatpush.bf16.msra.mxu0 %v1989
        %1999 = vmatmul.bf16.gmra.mxu0 %v1941
        %v2000 = vpop.f32.mrf.mxu0
        %v2001 = vadd.f32 0.0, %v2000
        %v2002 = vpop.f32.mrf.mxu0
        %v2003 = vadd.f32 0.0, %v2002
        %2004 = vmatmul.bf16.gmra.mxu0 %v1944
        %v2005 = vpop.f32.mrf.mxu0
        %v2006 = vadd.f32 0.0, %v2005
        %v2007 = vpop.f32.mrf.mxu0
        %v2008 = vadd.f32 0.0, %v2007
        %2009 = vmatmul.bf16.gmra.mxu0 %v1947
        %v2010 = vpop.f32.mrf.mxu0
        %v2011 = vadd.f32 0.0, %v2010
        %v2012 = vpop.f32.mrf.mxu0
        %v2013 = vadd.f32 0.0, %v2012
        %2014 = vmatmul.bf16.gmra.mxu0 %v1950
        %v2015 = vpop.f32.mrf.mxu0
        %v2016 = vadd.f32 0.0, %v2015
        %v2017 = vpop.f32.mrf.mxu0
        %v2018 = vadd.f32 0.0, %v2017
        %2019 = vmatmul.bf16.gmra.mxu0 %v1953
        %v2020 = vpop.f32.mrf.mxu0
        %v2021 = vadd.f32 0.0, %v2020
        %v2022 = vpop.f32.mrf.mxu0
        %v2023 = vadd.f32 0.0, %v2022
        %2024 = vmatmul.bf16.gmra.mxu0 %v1956
        %v2025 = vpop.f32.mrf.mxu0
        %v2026 = vadd.f32 0.0, %v2025
        %v2027 = vpop.f32.mrf.mxu0
        %v2028 = vadd.f32 0.0, %v2027
        %2029 = vmatmul.bf16.gmra.mxu0 %v1959
        %v2030 = vpop.f32.mrf.mxu0
        %v2031 = vadd.f32 0.0, %v2030
        %v2032 = vpop.f32.mrf.mxu0
        %v2033 = vadd.f32 0.0, %v2032
        %2034 = vmatmul.bf16.gmra.mxu0 %v1962
        %v2035 = vpop.f32.mrf.mxu0
        %v2036 = vadd.f32 0.0, %v2035
        %v2037 = vpop.f32.mrf.mxu0
        %v2038 = vadd.f32 0.0, %v2037
        %2039 = vmatmul.bf16.gmra.mxu0 %v1965
        %v2040 = vpop.f32.mrf.mxu0
        %v2041 = vadd.f32 0.0, %v2040
        %v2042 = vpop.f32.mrf.mxu0
        %v2043 = vadd.f32 0.0, %v2042
        %2044 = vmatmul.bf16.gmra.mxu0 %v1968
        %v2045 = vpop.f32.mrf.mxu0
        %v2046 = vadd.f32 0.0, %v2045
        %v2047 = vpop.f32.mrf.mxu0
        %v2048 = vadd.f32 0.0, %v2047
        %2049 = vmatmul.bf16.gmra.mxu0 %v1971
        %v2050 = vpop.f32.mrf.mxu0
        %v2051 = vadd.f32 0.0, %v2050
        %v2052 = vpop.f32.mrf.mxu0
        %v2053 = vadd.f32 0.0, %v2052
        %2054 = vmatmul.bf16.gmra.mxu0 %v1974
        %v2055 = vpop.f32.mrf.mxu0
        %v2056 = vadd.f32 0.0, %v2055
        %v2057 = vpop.f32.mrf.mxu0
        %v2058 = vadd.f32 0.0, %v2057
        %2059 = vmatmul.bf16.gmra.mxu0 %v1977
        %v2060 = vpop.f32.mrf.mxu0
        %v2061 = vadd.f32 0.0, %v2060
        %v2062 = vpop.f32.mrf.mxu0
        %v2063 = vadd.f32 0.0, %v2062
        %2064 = vmatmul.bf16.gmra.mxu0 %v1980
        %v2065 = vpop.f32.mrf.mxu0
        %v2066 = vadd.f32 0.0, %v2065
        %v2067 = vpop.f32.mrf.mxu0
        %v2068 = vadd.f32 0.0, %v2067
        %2069 = vmatmul.bf16.gmra.mxu0 %v1983
        %v2070 = vpop.f32.mrf.mxu0
        %v2071 = vadd.f32 0.0, %v2070
        %v2072 = vpop.f32.mrf.mxu0
        %v2073 = vadd.f32 0.0, %v2072
        %2074 = vmatmul.bf16.gmra.mxu0 %v1986
        %v2075 = vpop.f32.mrf.mxu0
        %v2076 = vadd.f32 0.0, %v2075
        %v2077 = vpop.f32.mrf.mxu0
        %v2078 = vadd.f32 0.0, %v2077
        %2079 = vdwg.mxu0
        %v2080 = vadd.f32 %v1858, %v2001
        %v2081 = vadd.f32 %v1859, %v2003
        %v2082 = vadd.f32 %v1860, %v2006
        %v2083 = vadd.f32 %v1861, %v2008
        %v2084 = vadd.f32 %v1862, %v2011
        %v2085 = vadd.f32 %v1863, %v2013
        %v2086 = vadd.f32 %v1864, %v2016
        %v2087 = vadd.f32 %v1865, %v2018
        %v2088 = vadd.f32 %v1866, %v2021
        %v2089 = vadd.f32 %v1867, %v2023
        %v2090 = vadd.f32 %v1868, %v2026
        %v2091 = vadd.f32 %v1869, %v2028
        %v2092 = vadd.f32 %v1870, %v2031
        %v2093 = vadd.f32 %v1871, %v2033
        %v2094 = vadd.f32 %v1872, %v2036
        %v2095 = vadd.f32 %v1873, %v2038
        %v2096 = vadd.f32 %v1874, %v2041
        %v2097 = vadd.f32 %v1875, %v2043
        %v2098 = vadd.f32 %v1876, %v2046
        %v2099 = vadd.f32 %v1877, %v2048
        %v2100 = vadd.f32 %v1878, %v2051
        %v2101 = vadd.f32 %v1879, %v2053
        %v2102 = vadd.f32 %v1880, %v2056
        %v2103 = vadd.f32 %v1881, %v2058
        %v2104 = vadd.f32 %v1882, %v2061
        %v2105 = vadd.f32 %v1883, %v2063
        %v2106 = vadd.f32 %v1884, %v2066
        %v2107 = vadd.f32 %v1885, %v2068
        %v2108 = vadd.f32 %v1886, %v2071
        %v2109 = vadd.f32 %v1887, %v2073
        %v2110 = vadd.f32 %v1888, %v2076
        %v2111 = vadd.f32 %v1889, %v2078
        %v2112 = vld [vmem:[%s1667 + $0x2] sm:$0xff]
        %v2113 = vld [vmem:[%s1667 + $0xa] sm:$0xff]
        %v2114 = vld [vmem:[%s1667 + $0x1a] sm:$0xff]
        %v2115 = vld [vmem:[%s1667 + $0x22] sm:$0xff]
        %v2116 = vld [vmem:[%s1667 + $0x32] sm:$0xff]
        %v2117 = vld [vmem:[%s1667 + $0x3a] sm:$0xff]
        %v2118 = vld [vmem:[%s1667 + $0x4a] sm:$0xff]
        %v2119 = vld [vmem:[%s1667 + $0x52] sm:$0xff]
        %v2120 = vld [vmem:[%s1667 + $0x62] sm:$0xff]
        %v2121 = vld [vmem:[%s1667 + $0x6a] sm:$0xff]
        %v2122 = vld [vmem:[%s1667 + $0x7a] sm:$0xff]
        %v2123 = vld [vmem:[%s1667 + $0x82] sm:$0xff]
        %v2124 = vld [vmem:[%s1667 + $0x92] sm:$0xff]
        %v2125 = vld [vmem:[%s1667 + $0x9a] sm:$0xff]
        %v2126 = vld [vmem:[%s1667 + $0xaa] sm:$0xff]
        %v2127 = vld [vmem:[%s1667 + $0xb2] sm:$0xff]
        %v2128 = vld [vmem:[%s1667 + $0xc2] sm:$0xff]
        %v2129 = vld [vmem:[%s1667 + $0xca] sm:$0xff]
        %v2130 = vld [vmem:[%s1667 + $0xda] sm:$0xff]
        %v2131 = vld [vmem:[%s1667 + $0xe2] sm:$0xff]
        %v2132 = vld [vmem:[%s1667 + $0xf2] sm:$0xff]
        %v2133 = vld [vmem:[%s1667 + $0xfa] sm:$0xff]
        %v2134 = vld [vmem:[%s1667 + $0x10a] sm:$0xff]
        %v2135 = vld [vmem:[%s1667 + $0x112] sm:$0xff]
        %v2136 = vld [vmem:[%s1667 + $0x122] sm:$0xff]
        %v2137 = vld [vmem:[%s1667 + $0x12a] sm:$0xff]
        %v2138 = vld [vmem:[%s1667 + $0x13a] sm:$0xff]
        %v2139 = vld [vmem:[%s1667 + $0x142] sm:$0xff]
        %v2140 = vld [vmem:[%s1667 + $0x152] sm:$0xff]
        %v2141 = vld [vmem:[%s1667 + $0x15a] sm:$0xff]
        %v2142 = vld [vmem:[%s1667 + $0x16a] sm:$0xff]
        %v2143 = vld [vmem:[%s1667 + $0x172] sm:$0xff]
        %v2144 = vpack.c.bf16 %v2113, %v2112
        %v2145 = vpack.c.bf16 %v2115, %v2114
        %v2146 = vpack.c.bf16 %v2117, %v2116
        %v2147 = vpack.c.bf16 %v2119, %v2118
        %v2148 = vpack.c.bf16 %v2121, %v2120
        %v2149 = vpack.c.bf16 %v2123, %v2122
        %v2150 = vpack.c.bf16 %v2125, %v2124
        %v2151 = vpack.c.bf16 %v2127, %v2126
        %v2152 = vpack.c.bf16 %v2129, %v2128
        %v2153 = vpack.c.bf16 %v2131, %v2130
        %v2154 = vpack.c.bf16 %v2133, %v2132
        %v2155 = vpack.c.bf16 %v2135, %v2134
        %v2156 = vpack.c.bf16 %v2137, %v2136
        %v2157 = vpack.c.bf16 %v2139, %v2138
        %v2158 = vpack.c.bf16 %v2141, %v2140
        %v2159 = vpack.c.bf16 %v2143, %v2142
        %s2160 = scalar_lea.vmem %s1, 32
        %v2161 = vld [vmem:[%s2160] sm:$0xf]
        %v2163 = vsel %vm310, %v2144, 0
        %v2166 = vsel %vm310, %v2145, 0
        %v2169 = vsel %vm310, %v2146, 0
        %v2172 = vsel %vm310, %v2147, 0
        %v2175 = vsel %vm310, %v2148, 0
        %v2178 = vsel %vm310, %v2149, 0
        %v2181 = vsel %vm310, %v2150, 0
        %v2184 = vsel %vm310, %v2151, 0
        %v2187 = vsel %vm310, %v2152, 0
        %v2190 = vsel %vm310, %v2153, 0
        %v2193 = vsel %vm310, %v2154, 0
        %v2196 = vsel %vm310, %v2155, 0
        %v2199 = vsel %vm310, %v2156, 0
        %v2202 = vsel %vm310, %v2157, 0
        %v2205 = vsel %vm310, %v2158, 0
        %v2208 = vsel %vm310, %v2159, 0
        %v2211 = vsel %vm546, %v2161, 0
        %2213 = vmatpush.bf16.msra.mxu0 0
        %2214 = vmatpush.bf16.msra.mxu0 0
        %2215 = vmatpush.bf16.msra.mxu0 0
        %2216 = vmatpush.bf16.msra.mxu0 0
        %2217 = vmatpush.bf16.msra.mxu0 0
        %2218 = vmatpush.bf16.msra.mxu0 0
        %2219 = vmatpush.bf16.msra.mxu0 0
        %2220 = vmatpush.bf16.msra.mxu0 %v2211
        %2221 = vmatmul.bf16.gmra.mxu0 %v2163
        %v2222 = vpop.f32.mrf.mxu0
        %v2223 = vadd.f32 0.0, %v2222
        %v2224 = vpop.f32.mrf.mxu0
        %v2225 = vadd.f32 0.0, %v2224
        %2226 = vmatmul.bf16.gmra.mxu0 %v2166
        %v2227 = vpop.f32.mrf.mxu0
        %v2228 = vadd.f32 0.0, %v2227
        %v2229 = vpop.f32.mrf.mxu0
        %v2230 = vadd.f32 0.0, %v2229
        %2231 = vmatmul.bf16.gmra.mxu0 %v2169
        %v2232 = vpop.f32.mrf.mxu0
        %v2233 = vadd.f32 0.0, %v2232
        %v2234 = vpop.f32.mrf.mxu0
        %v2235 = vadd.f32 0.0, %v2234
        %2236 = vmatmul.bf16.gmra.mxu0 %v2172
        %v2237 = vpop.f32.mrf.mxu0
        %v2238 = vadd.f32 0.0, %v2237
        %v2239 = vpop.f32.mrf.mxu0
        %v2240 = vadd.f32 0.0, %v2239
        %2241 = vmatmul.bf16.gmra.mxu0 %v2175
        %v2242 = vpop.f32.mrf.mxu0
        %v2243 = vadd.f32 0.0, %v2242
        %v2244 = vpop.f32.mrf.mxu0
        %v2245 = vadd.f32 0.0, %v2244
        %2246 = vmatmul.bf16.gmra.mxu0 %v2178
        %v2247 = vpop.f32.mrf.mxu0
        %v2248 = vadd.f32 0.0, %v2247
        %v2249 = vpop.f32.mrf.mxu0
        %v2250 = vadd.f32 0.0, %v2249
        %2251 = vmatmul.bf16.gmra.mxu0 %v2181
        %v2252 = vpop.f32.mrf.mxu0
        %v2253 = vadd.f32 0.0, %v2252
        %v2254 = vpop.f32.mrf.mxu0
        %v2255 = vadd.f32 0.0, %v2254
        %2256 = vmatmul.bf16.gmra.mxu0 %v2184
        %v2257 = vpop.f32.mrf.mxu0
        %v2258 = vadd.f32 0.0, %v2257
        %v2259 = vpop.f32.mrf.mxu0
        %v2260 = vadd.f32 0.0, %v2259
        %2261 = vmatmul.bf16.gmra.mxu0 %v2187
        %v2262 = vpop.f32.mrf.mxu0
        %v2263 = vadd.f32 0.0, %v2262
        %v2264 = vpop.f32.mrf.mxu0
        %v2265 = vadd.f32 0.0, %v2264
        %2266 = vmatmul.bf16.gmra.mxu0 %v2190
        %v2267 = vpop.f32.mrf.mxu0
        %v2268 = vadd.f32 0.0, %v2267
        %v2269 = vpop.f32.mrf.mxu0
        %v2270 = vadd.f32 0.0, %v2269
        %2271 = vmatmul.bf16.gmra.mxu0 %v2193
        %v2272 = vpop.f32.mrf.mxu0
        %v2273 = vadd.f32 0.0, %v2272
        %v2274 = vpop.f32.mrf.mxu0
        %v2275 = vadd.f32 0.0, %v2274
        %2276 = vmatmul.bf16.gmra.mxu0 %v2196
        %v2277 = vpop.f32.mrf.mxu0
        %v2278 = vadd.f32 0.0, %v2277
        %v2279 = vpop.f32.mrf.mxu0
        %v2280 = vadd.f32 0.0, %v2279
        %2281 = vmatmul.bf16.gmra.mxu0 %v2199
        %v2282 = vpop.f32.mrf.mxu0
        %v2283 = vadd.f32 0.0, %v2282
        %v2284 = vpop.f32.mrf.mxu0
        %v2285 = vadd.f32 0.0, %v2284
        %2286 = vmatmul.bf16.gmra.mxu0 %v2202
        %v2287 = vpop.f32.mrf.mxu0
        %v2288 = vadd.f32 0.0, %v2287
        %v2289 = vpop.f32.mrf.mxu0
        %v2290 = vadd.f32 0.0, %v2289
        %2291 = vmatmul.bf16.gmra.mxu0 %v2205
        %v2292 = vpop.f32.mrf.mxu0
        %v2293 = vadd.f32 0.0, %v2292
        %v2294 = vpop.f32.mrf.mxu0
        %v2295 = vadd.f32 0.0, %v2294
        %2296 = vmatmul.bf16.gmra.mxu0 %v2208
        %v2297 = vpop.f32.mrf.mxu0
        %v2298 = vadd.f32 0.0, %v2297
        %v2299 = vpop.f32.mrf.mxu0
        %v2300 = vadd.f32 0.0, %v2299
        %2301 = vdwg.mxu0
        %v2302 = vadd.f32 %v2080, %v2223
        %v2303 = vadd.f32 %v2081, %v2225
        %v2304 = vadd.f32 %v2082, %v2228
        %v2305 = vadd.f32 %v2083, %v2230
        %v2306 = vadd.f32 %v2084, %v2233
        %v2307 = vadd.f32 %v2085, %v2235
        %v2308 = vadd.f32 %v2086, %v2238
        %v2309 = vadd.f32 %v2087, %v2240
        %v2310 = vadd.f32 %v2088, %v2243
        %v2311 = vadd.f32 %v2089, %v2245
        %v2312 = vadd.f32 %v2090, %v2248
        %v2313 = vadd.f32 %v2091, %v2250
        %v2314 = vadd.f32 %v2092, %v2253
        %v2315 = vadd.f32 %v2093, %v2255
        %v2316 = vadd.f32 %v2094, %v2258
        %v2317 = vadd.f32 %v2095, %v2260
        %v2318 = vadd.f32 %v2096, %v2263
        %v2319 = vadd.f32 %v2097, %v2265
        %v2320 = vadd.f32 %v2098, %v2268
        %v2321 = vadd.f32 %v2099, %v2270
        %v2322 = vadd.f32 %v2100, %v2273
        %v2323 = vadd.f32 %v2101, %v2275
        %v2324 = vadd.f32 %v2102, %v2278
        %v2325 = vadd.f32 %v2103, %v2280
        %v2326 = vadd.f32 %v2104, %v2283
        %v2327 = vadd.f32 %v2105, %v2285
        %v2328 = vadd.f32 %v2106, %v2288
        %v2329 = vadd.f32 %v2107, %v2290
        %v2330 = vadd.f32 %v2108, %v2293
        %v2331 = vadd.f32 %v2109, %v2295
        %v2332 = vadd.f32 %v2110, %v2298
        %v2333 = vadd.f32 %v2111, %v2300
        %v2334 = vld [vmem:[%s2] sm:$0x1]
        %v2336 = vperm.slane %v2334, 0
        %v2338 = vadd.f32 %v2302, %v2336
        %v2339 = vadd.f32 %v2303, %v2336
        %v2340 = vadd.f32 %v2304, %v2336
        %v2341 = vadd.f32 %v2305, %v2336
        %v2342 = vadd.f32 %v2306, %v2336
        %v2343 = vadd.f32 %v2307, %v2336
        %v2344 = vadd.f32 %v2308, %v2336
        %v2345 = vadd.f32 %v2309, %v2336
        %v2346 = vadd.f32 %v2310, %v2336
        %v2347 = vadd.f32 %v2311, %v2336
        %v2348 = vadd.f32 %v2312, %v2336
        %v2349 = vadd.f32 %v2313, %v2336
        %v2350 = vadd.f32 %v2314, %v2336
        %v2351 = vadd.f32 %v2315, %v2336
        %v2352 = vadd.f32 %v2316, %v2336
        %v2353 = vadd.f32 %v2317, %v2336
        %v2354 = vadd.f32 %v2318, %v2336
        %v2355 = vadd.f32 %v2319, %v2336
        %v2356 = vadd.f32 %v2320, %v2336
        %v2357 = vadd.f32 %v2321, %v2336
        %v2358 = vadd.f32 %v2322, %v2336
        %v2359 = vadd.f32 %v2323, %v2336
        %v2360 = vadd.f32 %v2324, %v2336
        %v2361 = vadd.f32 %v2325, %v2336
        %v2362 = vadd.f32 %v2326, %v2336
        %v2363 = vadd.f32 %v2327, %v2336
        %v2364 = vadd.f32 %v2328, %v2336
        %v2365 = vadd.f32 %v2329, %v2336
        %v2366 = vadd.f32 %v2330, %v2336
        %v2367 = vadd.f32 %v2331, %v2336
        %v2368 = vadd.f32 %v2332, %v2336
        %v2369 = vadd.f32 %v2333, %v2336
        %v2370 = vmax.f32 %v2338, 0.0
        %v2371 = vmax.f32 %v2339, 0.0
        %v2372 = vmax.f32 %v2340, 0.0
        %v2373 = vmax.f32 %v2341, 0.0
        %v2374 = vmax.f32 %v2342, 0.0
        %v2375 = vmax.f32 %v2343, 0.0
        %v2376 = vmax.f32 %v2344, 0.0
        %v2377 = vmax.f32 %v2345, 0.0
        %v2378 = vmax.f32 %v2346, 0.0
        %v2379 = vmax.f32 %v2347, 0.0
        %v2380 = vmax.f32 %v2348, 0.0
        %v2381 = vmax.f32 %v2349, 0.0
        %v2382 = vmax.f32 %v2350, 0.0
        %v2383 = vmax.f32 %v2351, 0.0
        %v2384 = vmax.f32 %v2352, 0.0
        %v2385 = vmax.f32 %v2353, 0.0
        %v2386 = vmax.f32 %v2354, 0.0
        %v2387 = vmax.f32 %v2355, 0.0
        %v2388 = vmax.f32 %v2356, 0.0
        %v2389 = vmax.f32 %v2357, 0.0
        %v2390 = vmax.f32 %v2358, 0.0
        %v2391 = vmax.f32 %v2359, 0.0
        %v2392 = vmax.f32 %v2360, 0.0
        %v2393 = vmax.f32 %v2361, 0.0
        %v2394 = vmax.f32 %v2362, 0.0
        %v2395 = vmax.f32 %v2363, 0.0
        %v2396 = vmax.f32 %v2364, 0.0
        %v2397 = vmax.f32 %v2365, 0.0
        %v2398 = vmax.f32 %v2366, 0.0
        %v2399 = vmax.f32 %v2367, 0.0
        %v2400 = vmax.f32 %v2368, 0.0
        %v2401 = vmax.f32 %v2369, 0.0
        %vm2402 = vcmask 130048
        %2403 = vst.msk [vmem:[#allocation3] sm:$0xff] %vm2402, 0.0
        %2404 = vst.msk [vmem:[#allocation3 + $0x8] sm:$0xff] %vm2402, 0.0
        %vm2405 = vcmask 123904
        %2406 = vst.msk [vmem:[#allocation3 + $0x10] sm:$0x3] %vm2405, 0.0
        %2407 = vst.msk [vmem:[#allocation3 + $0x18] sm:$0xff] %vm2402, 0.0
        %2408 = vst.msk [vmem:[#allocation3 + $0x20] sm:$0xff] %vm2402, 0.0
        %2409 = vst.msk [vmem:[#allocation3 + $0x28] sm:$0x3] %vm2405, 0.0
        %2410 = vst.msk [vmem:[#allocation3 + $0x30] sm:$0xff] %vm2402, 0.0
        %2411 = vst.msk [vmem:[#allocation3 + $0x38] sm:$0xff] %vm2402, 0.0
        %2412 = vst.msk [vmem:[#allocation3 + $0x40] sm:$0x3] %vm2405, 0.0
        %2413 = vst.msk [vmem:[#allocation3 + $0x48] sm:$0xff] %vm2402, 0.0
        %2414 = vst.msk [vmem:[#allocation3 + $0x50] sm:$0xff] %vm2402, 0.0
        %2415 = vst.msk [vmem:[#allocation3 + $0x58] sm:$0x3] %vm2405, 0.0
        %2416 = vst.msk [vmem:[#allocation3 + $0x60] sm:$0xff] %vm2402, 0.0
        %2417 = vst.msk [vmem:[#allocation3 + $0x68] sm:$0xff] %vm2402, 0.0
        %2418 = vst.msk [vmem:[#allocation3 + $0x70] sm:$0x3] %vm2405, 0.0
        %2419 = vst.msk [vmem:[#allocation3 + $0x78] sm:$0xff] %vm2402, 0.0
        %2420 = vst.msk [vmem:[#allocation3 + $0x80] sm:$0xff] %vm2402, 0.0
        %2421 = vst.msk [vmem:[#allocation3 + $0x88] sm:$0x3] %vm2405, 0.0
        %2422 = vst.msk [vmem:[#allocation3 + $0x90] sm:$0xff] %vm2402, 0.0
        %2423 = vst.msk [vmem:[#allocation3 + $0x98] sm:$0xff] %vm2402, 0.0
        %2424 = vst.msk [vmem:[#allocation3 + $0xa0] sm:$0x3] %vm2405, 0.0
        %2425 = vst.msk [vmem:[#allocation3 + $0xa8] sm:$0xff] %vm2402, 0.0
        %2426 = vst.msk [vmem:[#allocation3 + $0xb0] sm:$0xff] %vm2402, 0.0
        %2427 = vst.msk [vmem:[#allocation3 + $0xb8] sm:$0x3] %vm2405, 0.0
        %2428 = vst.msk [vmem:[#allocation3 + $0xc0] sm:$0xff] %vm2402, 0.0
        %2429 = vst.msk [vmem:[#allocation3 + $0xc8] sm:$0xff] %vm2402, 0.0
        %2430 = vst.msk [vmem:[#allocation3 + $0xd0] sm:$0x3] %vm2405, 0.0
        %2431 = vst.msk [vmem:[#allocation3 + $0xd8] sm:$0xff] %vm2402, 0.0
        %2432 = vst.msk [vmem:[#allocation3 + $0xe0] sm:$0xff] %vm2402, 0.0
        %2433 = vst.msk [vmem:[#allocation3 + $0xe8] sm:$0x3] %vm2405, 0.0
        %2434 = vst.msk [vmem:[#allocation3 + $0xf0] sm:$0xff] %vm2402, 0.0
        %2435 = vst.msk [vmem:[#allocation3 + $0xf8] sm:$0xff] %vm2402, 0.0
        %2436 = vst.msk [vmem:[#allocation3 + $0x100] sm:$0x3] %vm2405, 0.0
        %2437 = vst.msk [vmem:[#allocation3 + $0x108] sm:$0xff] %vm2402, 0.0
        %2438 = vst.msk [vmem:[#allocation3 + $0x110] sm:$0xff] %vm2402, 0.0
        %2439 = vst.msk [vmem:[#allocation3 + $0x118] sm:$0x3] %vm2405, 0.0
        %2440 = vst.msk [vmem:[#allocation3 + $0x120] sm:$0xff] %vm2402, 0.0
        %2441 = vst.msk [vmem:[#allocation3 + $0x128] sm:$0xff] %vm2402, 0.0
        %2442 = vst.msk [vmem:[#allocation3 + $0x130] sm:$0x3] %vm2405, 0.0
        %2443 = vst.msk [vmem:[#allocation3 + $0x138] sm:$0xff] %vm2402, 0.0
        %2444 = vst.msk [vmem:[#allocation3 + $0x140] sm:$0xff] %vm2402, 0.0
        %2445 = vst.msk [vmem:[#allocation3 + $0x148] sm:$0x3] %vm2405, 0.0
        %2446 = vst.msk [vmem:[#allocation3 + $0x150] sm:$0xff] %vm2402, 0.0
        %2447 = vst.msk [vmem:[#allocation3 + $0x158] sm:$0xff] %vm2402, 0.0
        %2448 = vst.msk [vmem:[#allocation3 + $0x160] sm:$0x3] %vm2405, 0.0
        %2449 = vst.msk [vmem:[#allocation3 + $0x168] sm:$0xff] %vm2402, 0.0
        %2450 = vst.msk [vmem:[#allocation3 + $0x170] sm:$0xff] %vm2402, 0.0
        %2451 = vst.msk [vmem:[#allocation3 + $0x178] sm:$0x3] %vm2405, 0.0
        %2452 = vst.msk [vmem:[#allocation3 + $0x180] sm:$0xff] %vm2402, 0.0
        %2453 = vst.msk [vmem:[#allocation3 + $0x188] sm:$0xff] %vm2402, 0.0
        %2454 = vst.msk [vmem:[#allocation3 + $0x190] sm:$0x3] %vm2405, 0.0
        %2455 = vst.msk [vmem:[#allocation3 + $0x198] sm:$0xff] %vm2402, 0.0
        %2456 = vst.msk [vmem:[#allocation3 + $0x1a0] sm:$0xff] %vm2402, 0.0
        %2457 = vst.msk [vmem:[#allocation3 + $0x1a8] sm:$0x3] %vm2405, 0.0
        %s2458 = scalar_lea.vmem [#allocation3], 24
        %2459 = vst.msk [vmem:[%s2458 + $0x1] sm:$0xff] %vm2402, %v2370
        %2460 = vst.msk [vmem:[%s2458 + $0x9] sm:$0xff] %vm2402, %v2371
        %2461 = vst.msk [vmem:[%s2458 + $0x19] sm:$0xff] %vm2402, %v2372
        %2462 = vst.msk [vmem:[%s2458 + $0x21] sm:$0xff] %vm2402, %v2373
        %2463 = vst.msk [vmem:[%s2458 + $0x31] sm:$0xff] %vm2402, %v2374
        %2464 = vst.msk [vmem:[%s2458 + $0x39] sm:$0xff] %vm2402, %v2375
        %2465 = vst.msk [vmem:[%s2458 + $0x49] sm:$0xff] %vm2402, %v2376
        %2466 = vst.msk [vmem:[%s2458 + $0x51] sm:$0xff] %vm2402, %v2377
        %2467 = vst.msk [vmem:[%s2458 + $0x61] sm:$0xff] %vm2402, %v2378
        %2468 = vst.msk [vmem:[%s2458 + $0x69] sm:$0xff] %vm2402, %v2379
        %2469 = vst.msk [vmem:[%s2458 + $0x79] sm:$0xff] %vm2402, %v2380
        %2470 = vst.msk [vmem:[%s2458 + $0x81] sm:$0xff] %vm2402, %v2381
        %2471 = vst.msk [vmem:[%s2458 + $0x91] sm:$0xff] %vm2402, %v2382
        %2472 = vst.msk [vmem:[%s2458 + $0x99] sm:$0xff] %vm2402, %v2383
        %2473 = vst.msk [vmem:[%s2458 + $0xa9] sm:$0xff] %vm2402, %v2384
        %2474 = vst.msk [vmem:[%s2458 + $0xb1] sm:$0xff] %vm2402, %v2385
        %2475 = vst.msk [vmem:[%s2458 + $0xc1] sm:$0xff] %vm2402, %v2386
        %2476 = vst.msk [vmem:[%s2458 + $0xc9] sm:$0xff] %vm2402, %v2387
        %2477 = vst.msk [vmem:[%s2458 + $0xd9] sm:$0xff] %vm2402, %v2388
        %2478 = vst.msk [vmem:[%s2458 + $0xe1] sm:$0xff] %vm2402, %v2389
        %2479 = vst.msk [vmem:[%s2458 + $0xf1] sm:$0xff] %vm2402, %v2390
        %2480 = vst.msk [vmem:[%s2458 + $0xf9] sm:$0xff] %vm2402, %v2391
        %2481 = vst.msk [vmem:[%s2458 + $0x109] sm:$0xff] %vm2402, %v2392
        %2482 = vst.msk [vmem:[%s2458 + $0x111] sm:$0xff] %vm2402, %v2393
        %2483 = vst.msk [vmem:[%s2458 + $0x121] sm:$0xff] %vm2402, %v2394
        %2484 = vst.msk [vmem:[%s2458 + $0x129] sm:$0xff] %vm2402, %v2395
        %2485 = vst.msk [vmem:[%s2458 + $0x139] sm:$0xff] %vm2402, %v2396
        %2486 = vst.msk [vmem:[%s2458 + $0x141] sm:$0xff] %vm2402, %v2397
        %2487 = vst.msk [vmem:[%s2458 + $0x151] sm:$0xff] %vm2402, %v2398
        %2488 = vst.msk [vmem:[%s2458 + $0x159] sm:$0xff] %vm2402, %v2399
        %2489 = vst.msk [vmem:[%s2458 + $0x169] sm:$0xff] %vm2402, %v2400
        %2490 = vst.msk [vmem:[%s2458 + $0x171] sm:$0xff] %vm2402, %v2401
        %v2491 = vld [vmem:[#allocation3] sm:$0xff]
        %v2492 = vld [vmem:[#allocation3 + $0x8] sm:$0xff]
        %v2493 = vld [vmem:[#allocation3 + $0x18] sm:$0xff]
        %v2494 = vld [vmem:[#allocation3 + $0x20] sm:$0xff]
        %v2495 = vld [vmem:[#allocation3 + $0x30] sm:$0xff]
        %v2496 = vld [vmem:[#allocation3 + $0x38] sm:$0xff]
        %v2497 = vld [vmem:[#allocation3 + $0x48] sm:$0xff]
        %v2498 = vld [vmem:[#allocation3 + $0x50] sm:$0xff]
        %v2499 = vld [vmem:[#allocation3 + $0x60] sm:$0xff]
        %v2500 = vld [vmem:[#allocation3 + $0x68] sm:$0xff]
        %v2501 = vld [vmem:[#allocation3 + $0x78] sm:$0xff]
        %v2502 = vld [vmem:[#allocation3 + $0x80] sm:$0xff]
        %v2503 = vld [vmem:[#allocation3 + $0x90] sm:$0xff]
        %v2504 = vld [vmem:[#allocation3 + $0x98] sm:$0xff]
        %v2505 = vld [vmem:[#allocation3 + $0xa8] sm:$0xff]
        %v2506 = vld [vmem:[#allocation3 + $0xb0] sm:$0xff]
        %v2507 = vld [vmem:[#allocation3 + $0xc0] sm:$0xff]
        %v2508 = vld [vmem:[#allocation3 + $0xc8] sm:$0xff]
        %v2509 = vld [vmem:[#allocation3 + $0xd8] sm:$0xff]
        %v2510 = vld [vmem:[#allocation3 + $0xe0] sm:$0xff]
        %v2511 = vld [vmem:[#allocation3 + $0xf0] sm:$0xff]
        %v2512 = vld [vmem:[#allocation3 + $0xf8] sm:$0xff]
        %v2513 = vld [vmem:[#allocation3 + $0x108] sm:$0xff]
        %v2514 = vld [vmem:[#allocation3 + $0x110] sm:$0xff]
        %v2515 = vld [vmem:[#allocation3 + $0x120] sm:$0xff]
        %v2516 = vld [vmem:[#allocation3 + $0x128] sm:$0xff]
        %v2517 = vld [vmem:[#allocation3 + $0x138] sm:$0xff]
        %v2518 = vld [vmem:[#allocation3 + $0x140] sm:$0xff]
        %v2519 = vld [vmem:[#allocation3 + $0x150] sm:$0xff]
        %v2520 = vld [vmem:[#allocation3 + $0x158] sm:$0xff]
        %v2521 = vld [vmem:[#allocation3 + $0x168] sm:$0xff]
        %v2522 = vld [vmem:[#allocation3 + $0x170] sm:$0xff]
        %v2523 = vld [vmem:[%s3] sm:$0xf]
        %v2524 = vld [vmem:[%s3 + $0x4] sm:$0xf]
        %v2525 = vpack.c.bf16 %v2492, %v2491
        %v2526 = vpack.c.bf16 %v2494, %v2493
        %v2527 = vpack.c.bf16 %v2496, %v2495
        %v2528 = vpack.c.bf16 %v2498, %v2497
        %v2529 = vpack.c.bf16 %v2500, %v2499
        %v2530 = vpack.c.bf16 %v2502, %v2501
        %v2531 = vpack.c.bf16 %v2504, %v2503
        %v2532 = vpack.c.bf16 %v2506, %v2505
        %v2533 = vpack.c.bf16 %v2508, %v2507
        %v2534 = vpack.c.bf16 %v2510, %v2509
        %v2535 = vpack.c.bf16 %v2512, %v2511
        %v2536 = vpack.c.bf16 %v2514, %v2513
        %v2537 = vpack.c.bf16 %v2516, %v2515
        %v2538 = vpack.c.bf16 %v2518, %v2517
        %v2539 = vpack.c.bf16 %v2520, %v2519
        %v2540 = vpack.c.bf16 %v2522, %v2521
        %v2541 = vld [vmem:[#allocation3 + $0x1] sm:$0xff]
        %v2542 = vld [vmem:[#allocation3 + $0x9] sm:$0xff]
        %v2543 = vld [vmem:[#allocation3 + $0x19] sm:$0xff]
        %v2544 = vld [vmem:[#allocation3 + $0x21] sm:$0xff]
        %v2545 = vld [vmem:[#allocation3 + $0x31] sm:$0xff]
        %v2546 = vld [vmem:[#allocation3 + $0x39] sm:$0xff]
        %v2547 = vld [vmem:[#allocation3 + $0x49] sm:$0xff]
        %v2548 = vld [vmem:[#allocation3 + $0x51] sm:$0xff]
        %v2549 = vld [vmem:[#allocation3 + $0x61] sm:$0xff]
        %v2550 = vld [vmem:[#allocation3 + $0x69] sm:$0xff]
        %v2551 = vld [vmem:[#allocation3 + $0x79] sm:$0xff]
        %v2552 = vld [vmem:[#allocation3 + $0x81] sm:$0xff]
        %v2553 = vld [vmem:[#allocation3 + $0x91] sm:$0xff]
        %v2554 = vld [vmem:[#allocation3 + $0x99] sm:$0xff]
        %v2555 = vld [vmem:[#allocation3 + $0xa9] sm:$0xff]
        %v2556 = vld [vmem:[#allocation3 + $0xb1] sm:$0xff]
        %v2557 = vld [vmem:[#allocation3 + $0xc1] sm:$0xff]
        %v2558 = vld [vmem:[#allocation3 + $0xc9] sm:$0xff]
        %v2559 = vld [vmem:[#allocation3 + $0xd9] sm:$0xff]
        %v2560 = vld [vmem:[#allocation3 + $0xe1] sm:$0xff]
        %v2561 = vld [vmem:[#allocation3 + $0xf1] sm:$0xff]
        %v2562 = vld [vmem:[#allocation3 + $0xf9] sm:$0xff]
        %v2563 = vld [vmem:[#allocation3 + $0x109] sm:$0xff]
        %v2564 = vld [vmem:[#allocation3 + $0x111] sm:$0xff]
        %v2565 = vld [vmem:[#allocation3 + $0x121] sm:$0xff]
        %v2566 = vld [vmem:[#allocation3 + $0x129] sm:$0xff]
        %v2567 = vld [vmem:[#allocation3 + $0x139] sm:$0xff]
        %v2568 = vld [vmem:[#allocation3 + $0x141] sm:$0xff]
        %v2569 = vld [vmem:[#allocation3 + $0x151] sm:$0xff]
        %v2570 = vld [vmem:[#allocation3 + $0x159] sm:$0xff]
        %v2571 = vld [vmem:[#allocation3 + $0x169] sm:$0xff]
        %v2572 = vld [vmem:[#allocation3 + $0x171] sm:$0xff]
        %s2573 = scalar_lea.vmem %s3, 8
        %v2574 = vld [vmem:[%s2573] sm:$0xf]
        %v2575 = vld [vmem:[%s2573 + $0x4] sm:$0xf]
        %v2576 = vpack.c.bf16 %v2542, %v2541
        %v2577 = vpack.c.bf16 %v2544, %v2543
        %v2578 = vpack.c.bf16 %v2546, %v2545
        %v2579 = vpack.c.bf16 %v2548, %v2547
        %v2580 = vpack.c.bf16 %v2550, %v2549
        %v2581 = vpack.c.bf16 %v2552, %v2551
        %v2582 = vpack.c.bf16 %v2554, %v2553
        %v2583 = vpack.c.bf16 %v2556, %v2555
        %v2584 = vpack.c.bf16 %v2558, %v2557
        %v2585 = vpack.c.bf16 %v2560, %v2559
        %v2586 = vpack.c.bf16 %v2562, %v2561
        %v2587 = vpack.c.bf16 %v2564, %v2563
        %v2588 = vpack.c.bf16 %v2566, %v2565
        %v2589 = vpack.c.bf16 %v2568, %v2567
        %v2590 = vpack.c.bf16 %v2570, %v2569
        %v2591 = vpack.c.bf16 %v2572, %v2571
        %v2594 = vunpack.c.l.b16 %v2574
        %v2595 = vunpack.c.l.b16 %v2575
        %v2596 = vpack.c.b16 %v2595, %v2594
        %v2598 = vsel %vm2402, %v2596, 0
        %v2601 = vsel %vm2402, %v2576, 0
        %v2604 = vsel %vm2402, %v2577, 0
        %v2607 = vsel %vm2402, %v2578, 0
        %v2610 = vsel %vm2402, %v2579, 0
        %v2613 = vsel %vm2402, %v2580, 0
        %v2616 = vsel %vm2402, %v2581, 0
        %v2619 = vsel %vm2402, %v2582, 0
        %v2622 = vsel %vm2402, %v2583, 0
        %v2625 = vsel %vm2402, %v2584, 0
        %v2628 = vsel %vm2402, %v2585, 0
        %v2631 = vsel %vm2402, %v2586, 0
        %v2634 = vsel %vm2402, %v2587, 0
        %v2637 = vsel %vm2402, %v2588, 0
        %v2640 = vsel %vm2402, %v2589, 0
        %v2643 = vsel %vm2402, %v2590, 0
        %v2646 = vsel %vm2402, %v2591, 0
        %2648 = vmatpush.bf16.xpose.msra.mxu0 %v2622
        %2649 = vmatpush.bf16.xpose.msra.mxu0 %v2619
        %2650 = vmatpush.bf16.xpose.msra.mxu0 %v2616
        %2651 = vmatpush.bf16.xpose.msra.mxu0 %v2613
        %2652 = vmatpush.bf16.xpose.msra.mxu0 %v2610
        %2653 = vmatpush.bf16.xpose.msra.mxu0 %v2607
        %2654 = vmatpush.bf16.xpose.msra.mxu0 %v2604
        %2655 = vmatpush.bf16.xpose.msra.mxu0 %v2601
        %2656 = vmatmul.bf16.gmra.mxu0 %v2598
        %v2657 = vpop.f32.mrf.mxu0
        %v2658 = vadd.f32 0.0, %v2657
        %v2659 = vpop.f32.mrf.mxu0
        %v2660 = vadd.f32 0.0, %v2659
        %2661 = vdwg.mxu0
        %2662 = vmatpush.bf16.xpose.msra.mxu0 %v2646
        %2663 = vmatpush.bf16.xpose.msra.mxu0 %v2643
        %2664 = vmatpush.bf16.xpose.msra.mxu0 %v2640
        %2665 = vmatpush.bf16.xpose.msra.mxu0 %v2637
        %2666 = vmatpush.bf16.xpose.msra.mxu0 %v2634
        %2667 = vmatpush.bf16.xpose.msra.mxu0 %v2631
        %2668 = vmatpush.bf16.xpose.msra.mxu0 %v2628
        %2669 = vmatpush.bf16.xpose.msra.mxu0 %v2625
        %2670 = vmatmul.bf16.gmra.mxu0 %v2598
        %v2671 = vpop.f32.mrf.mxu0
        %v2672 = vadd.f32 0.0, %v2671
        %v2673 = vpop.f32.mrf.mxu0
        %v2674 = vadd.f32 0.0, %v2673
        %2675 = vdwg.mxu0
        %v2678 = vunpack.c.l.b16 %v2523
        %v2679 = vunpack.c.l.b16 %v2524
        %v2680 = vpack.c.b16 %v2679, %v2678
        %v2682 = vsel %vm2402, %v2680, 0
        %v2685 = vsel %vm2402, %v2525, 0
        %v2688 = vsel %vm2402, %v2526, 0
        %v2691 = vsel %vm2402, %v2527, 0
        %v2694 = vsel %vm2402, %v2528, 0
        %v2697 = vsel %vm2402, %v2529, 0
        %v2700 = vsel %vm2402, %v2530, 0
        %v2703 = vsel %vm2402, %v2531, 0
        %v2706 = vsel %vm2402, %v2532, 0
        %v2709 = vsel %vm2402, %v2533, 0
        %v2712 = vsel %vm2402, %v2534, 0
        %v2715 = vsel %vm2402, %v2535, 0
        %v2718 = vsel %vm2402, %v2536, 0
        %v2721 = vsel %vm2402, %v2537, 0
        %v2724 = vsel %vm2402, %v2538, 0
        %v2727 = vsel %vm2402, %v2539, 0
        %v2730 = vsel %vm2402, %v2540, 0
        %2732 = vmatpush.bf16.xpose.msra.mxu0 %v2706
        %2733 = vmatpush.bf16.xpose.msra.mxu0 %v2703
        %2734 = vmatpush.bf16.xpose.msra.mxu0 %v2700
        %2735 = vmatpush.bf16.xpose.msra.mxu0 %v2697
        %2736 = vmatpush.bf16.xpose.msra.mxu0 %v2694
        %2737 = vmatpush.bf16.xpose.msra.mxu0 %v2691
        %2738 = vmatpush.bf16.xpose.msra.mxu0 %v2688
        %2739 = vmatpush.bf16.xpose.msra.mxu0 %v2685
        %2740 = vmatmul.bf16.gmra.mxu0 %v2682
        %v2741 = vpop.f32.mrf.mxu0
        %v2742 = vadd.f32 %v2658, %v2741
        %v2743 = vpop.f32.mrf.mxu0
        %v2744 = vadd.f32 %v2660, %v2743
        %2745 = vdwg.mxu0
        %2746 = vmatpush.bf16.xpose.msra.mxu0 %v2730
        %2747 = vmatpush.bf16.xpose.msra.mxu0 %v2727
        %2748 = vmatpush.bf16.xpose.msra.mxu0 %v2724
        %2749 = vmatpush.bf16.xpose.msra.mxu0 %v2721
        %2750 = vmatpush.bf16.xpose.msra.mxu0 %v2718
        %2751 = vmatpush.bf16.xpose.msra.mxu0 %v2715
        %2752 = vmatpush.bf16.xpose.msra.mxu0 %v2712
        %2753 = vmatpush.bf16.xpose.msra.mxu0 %v2709
        %2754 = vmatmul.bf16.gmra.mxu0 %v2682
        %v2755 = vpop.f32.mrf.mxu0
        %v2756 = vadd.f32 %v2672, %v2755
        %v2757 = vpop.f32.mrf.mxu0
        %v2758 = vadd.f32 %v2674, %v2757
        %2759 = vdwg.mxu0
        %v2760 = vld [vmem:[#allocation3 + $0x2] sm:$0xff]
        %v2761 = vld [vmem:[#allocation3 + $0xa] sm:$0xff]
        %v2762 = vld [vmem:[#allocation3 + $0x1a] sm:$0xff]
        %v2763 = vld [vmem:[#allocation3 + $0x22] sm:$0xff]
        %v2764 = vld [vmem:[#allocation3 + $0x32] sm:$0xff]
        %v2765 = vld [vmem:[#allocation3 + $0x3a] sm:$0xff]
        %v2766 = vld [vmem:[#allocation3 + $0x4a] sm:$0xff]
        %v2767 = vld [vmem:[#allocation3 + $0x52] sm:$0xff]
        %v2768 = vld [vmem:[#allocation3 + $0x62] sm:$0xff]
        %v2769 = vld [vmem:[#allocation3 + $0x6a] sm:$0xff]
        %v2770 = vld [vmem:[#allocation3 + $0x7a] sm:$0xff]
        %v2771 = vld [vmem:[#allocation3 + $0x82] sm:$0xff]
        %v2772 = vld [vmem:[#allocation3 + $0x92] sm:$0xff]
        %v2773 = vld [vmem:[#allocation3 + $0x9a] sm:$0xff]
        %v2774 = vld [vmem:[#allocation3 + $0xaa] sm:$0xff]
        %v2775 = vld [vmem:[#allocation3 + $0xb2] sm:$0xff]
        %v2776 = vld [vmem:[#allocation3 + $0xc2] sm:$0xff]
        %v2777 = vld [vmem:[#allocation3 + $0xca] sm:$0xff]
        %v2778 = vld [vmem:[#allocation3 + $0xda] sm:$0xff]
        %v2779 = vld [vmem:[#allocation3 + $0xe2] sm:$0xff]
        %v2780 = vld [vmem:[#allocation3 + $0xf2] sm:$0xff]
        %v2781 = vld [vmem:[#allocation3 + $0xfa] sm:$0xff]
        %v2782 = vld [vmem:[#allocation3 + $0x10a] sm:$0xff]
        %v2783 = vld [vmem:[#allocation3 + $0x112] sm:$0xff]
        %v2784 = vld [vmem:[#allocation3 + $0x122] sm:$0xff]
        %v2785 = vld [vmem:[#allocation3 + $0x12a] sm:$0xff]
        %v2786 = vld [vmem:[#allocation3 + $0x13a] sm:$0xff]
        %v2787 = vld [vmem:[#allocation3 + $0x142] sm:$0xff]
        %v2788 = vld [vmem:[#allocation3 + $0x152] sm:$0xff]
        %v2789 = vld [vmem:[#allocation3 + $0x15a] sm:$0xff]
        %v2790 = vld [vmem:[#allocation3 + $0x16a] sm:$0xff]
        %v2791 = vld [vmem:[#allocation3 + $0x172] sm:$0xff]
        %s2792 = scalar_lea.vmem %s3, 16
        %v2793 = vld [vmem:[%s2792] sm:$0xf]
        %v2794 = vld [vmem:[%s2792 + $0x4] sm:$0xf]
        %v2795 = vpack.c.bf16 %v2761, %v2760
        %v2796 = vpack.c.bf16 %v2763, %v2762
        %v2797 = vpack.c.bf16 %v2765, %v2764
        %v2798 = vpack.c.bf16 %v2767, %v2766
        %v2799 = vpack.c.bf16 %v2769, %v2768
        %v2800 = vpack.c.bf16 %v2771, %v2770
        %v2801 = vpack.c.bf16 %v2773, %v2772
        %v2802 = vpack.c.bf16 %v2775, %v2774
        %v2803 = vpack.c.bf16 %v2777, %v2776
        %v2804 = vpack.c.bf16 %v2779, %v2778
        %v2805 = vpack.c.bf16 %v2781, %v2780
        %v2806 = vpack.c.bf16 %v2783, %v2782
        %v2807 = vpack.c.bf16 %v2785, %v2784
        %v2808 = vpack.c.bf16 %v2787, %v2786
        %v2809 = vpack.c.bf16 %v2789, %v2788
        %v2810 = vpack.c.bf16 %v2791, %v2790
        %v2813 = vunpack.c.l.b16 %v2793
        %v2814 = vunpack.c.l.b16 %v2794
        %v2815 = vpack.c.b16 %v2814, %v2813
        %v2817 = vsel %vm2402, %v2815, 0
        %v2820 = vsel %vm2402, %v2795, 0
        %v2823 = vsel %vm2402, %v2796, 0
        %v2826 = vsel %vm2402, %v2797, 0
        %v2829 = vsel %vm2402, %v2798, 0
        %v2832 = vsel %vm2402, %v2799, 0
        %v2835 = vsel %vm2402, %v2800, 0
        %v2838 = vsel %vm2402, %v2801, 0
        %v2841 = vsel %vm2402, %v2802, 0
        %v2844 = vsel %vm2402, %v2803, 0
        %v2847 = vsel %vm2402, %v2804, 0
        %v2850 = vsel %vm2402, %v2805, 0
        %v2853 = vsel %vm2402, %v2806, 0
        %v2856 = vsel %vm2402, %v2807, 0
        %v2859 = vsel %vm2402, %v2808, 0
        %v2862 = vsel %vm2402, %v2809, 0
        %v2865 = vsel %vm2402, %v2810, 0
        %2867 = vmatpush.bf16.xpose.msra.mxu0 %v2841
        %2868 = vmatpush.bf16.xpose.msra.mxu0 %v2838
        %2869 = vmatpush.bf16.xpose.msra.mxu0 %v2835
        %2870 = vmatpush.bf16.xpose.msra.mxu0 %v2832
        %2871 = vmatpush.bf16.xpose.msra.mxu0 %v2829
        %2872 = vmatpush.bf16.xpose.msra.mxu0 %v2826
        %2873 = vmatpush.bf16.xpose.msra.mxu0 %v2823
        %2874 = vmatpush.bf16.xpose.msra.mxu0 %v2820
        %2875 = vmatmul.bf16.gmra.mxu0 %v2817
        %v2876 = vpop.f32.mrf.mxu0
        %v2877 = vadd.f32 0.0, %v2876
        %v2878 = vpop.f32.mrf.mxu0
        %v2879 = vadd.f32 0.0, %v2878
        %2880 = vdwg.mxu0
        %2881 = vmatpush.bf16.xpose.msra.mxu0 %v2865
        %2882 = vmatpush.bf16.xpose.msra.mxu0 %v2862
        %2883 = vmatpush.bf16.xpose.msra.mxu0 %v2859
        %2884 = vmatpush.bf16.xpose.msra.mxu0 %v2856
        %2885 = vmatpush.bf16.xpose.msra.mxu0 %v2853
        %2886 = vmatpush.bf16.xpose.msra.mxu0 %v2850
        %2887 = vmatpush.bf16.xpose.msra.mxu0 %v2847
        %2888 = vmatpush.bf16.xpose.msra.mxu0 %v2844
        %2889 = vmatmul.bf16.gmra.mxu0 %v2817
        %v2890 = vpop.f32.mrf.mxu0
        %v2891 = vadd.f32 0.0, %v2890
        %v2892 = vpop.f32.mrf.mxu0
        %v2893 = vadd.f32 0.0, %v2892
        %2894 = vdwg.mxu0
        %v2895 = vadd.f32 %v2742, %v2877
        %v2896 = vadd.f32 %v2756, %v2891
        %v2897 = vadd.f32 %v2744, %v2879
        %v2898 = vadd.f32 %v2758, %v2893
        %v2899 = vld [vmem:[%s2458] sm:$0xff]
        %v2900 = vld [vmem:[%s2458 + $0x8] sm:$0xff]
        %v2901 = vld [vmem:[%s2458 + $0x18] sm:$0xff]
        %v2902 = vld [vmem:[%s2458 + $0x20] sm:$0xff]
        %v2903 = vld [vmem:[%s2458 + $0x30] sm:$0xff]
        %v2904 = vld [vmem:[%s2458 + $0x38] sm:$0xff]
        %v2905 = vld [vmem:[%s2458 + $0x48] sm:$0xff]
        %v2906 = vld [vmem:[%s2458 + $0x50] sm:$0xff]
        %v2907 = vld [vmem:[%s2458 + $0x60] sm:$0xff]
        %v2908 = vld [vmem:[%s2458 + $0x68] sm:$0xff]
        %v2909 = vld [vmem:[%s2458 + $0x78] sm:$0xff]
        %v2910 = vld [vmem:[%s2458 + $0x80] sm:$0xff]
        %v2911 = vld [vmem:[%s2458 + $0x90] sm:$0xff]
        %v2912 = vld [vmem:[%s2458 + $0x98] sm:$0xff]
        %v2913 = vld [vmem:[%s2458 + $0xa8] sm:$0xff]
        %v2914 = vld [vmem:[%s2458 + $0xb0] sm:$0xff]
        %v2915 = vld [vmem:[%s2458 + $0xc0] sm:$0xff]
        %v2916 = vld [vmem:[%s2458 + $0xc8] sm:$0xff]
        %v2917 = vld [vmem:[%s2458 + $0xd8] sm:$0xff]
        %v2918 = vld [vmem:[%s2458 + $0xe0] sm:$0xff]
        %v2919 = vld [vmem:[%s2458 + $0xf0] sm:$0xff]
        %v2920 = vld [vmem:[%s2458 + $0xf8] sm:$0xff]
        %v2921 = vld [vmem:[%s2458 + $0x108] sm:$0xff]
        %v2922 = vld [vmem:[%s2458 + $0x110] sm:$0xff]
        %v2923 = vld [vmem:[%s2458 + $0x120] sm:$0xff]
        %v2924 = vld [vmem:[%s2458 + $0x128] sm:$0xff]
        %v2925 = vld [vmem:[%s2458 + $0x138] sm:$0xff]
        %v2926 = vld [vmem:[%s2458 + $0x140] sm:$0xff]
        %v2927 = vld [vmem:[%s2458 + $0x150] sm:$0xff]
        %v2928 = vld [vmem:[%s2458 + $0x158] sm:$0xff]
        %v2929 = vld [vmem:[%s2458 + $0x168] sm:$0xff]
        %v2930 = vld [vmem:[%s2458 + $0x170] sm:$0xff]
        %s2931 = scalar_lea.vmem %s3, 24
        %v2932 = vld [vmem:[%s2931] sm:$0xf]
        %v2933 = vld [vmem:[%s2931 + $0x4] sm:$0xf]
        %v2934 = vpack.c.bf16 %v2900, %v2899
        %v2935 = vpack.c.bf16 %v2902, %v2901
        %v2936 = vpack.c.bf16 %v2904, %v2903
        %v2937 = vpack.c.bf16 %v2906, %v2905
        %v2938 = vpack.c.bf16 %v2908, %v2907
        %v2939 = vpack.c.bf16 %v2910, %v2909
        %v2940 = vpack.c.bf16 %v2912, %v2911
        %v2941 = vpack.c.bf16 %v2914, %v2913
        %v2942 = vpack.c.bf16 %v2916, %v2915
        %v2943 = vpack.c.bf16 %v2918, %v2917
        %v2944 = vpack.c.bf16 %v2920, %v2919
        %v2945 = vpack.c.bf16 %v2922, %v2921
        %v2946 = vpack.c.bf16 %v2924, %v2923
        %v2947 = vpack.c.bf16 %v2926, %v2925
        %v2948 = vpack.c.bf16 %v2928, %v2927
        %v2949 = vpack.c.bf16 %v2930, %v2929
        %v2952 = vunpack.c.l.b16 %v2932
        %v2953 = vunpack.c.l.b16 %v2933
        %v2954 = vpack.c.b16 %v2953, %v2952
        %v2956 = vsel %vm2402, %v2954, 0
        %v2959 = vsel %vm2402, %v2934, 0
        %v2962 = vsel %vm2402, %v2935, 0
        %v2965 = vsel %vm2402, %v2936, 0
        %v2968 = vsel %vm2402, %v2937, 0
        %v2971 = vsel %vm2402, %v2938, 0
        %v2974 = vsel %vm2402, %v2939, 0
        %v2977 = vsel %vm2402, %v2940, 0
        %v2980 = vsel %vm2402, %v2941, 0
        %v2983 = vsel %vm2402, %v2942, 0
        %v2986 = vsel %vm2402, %v2943, 0
        %v2989 = vsel %vm2402, %v2944, 0
        %v2992 = vsel %vm2402, %v2945, 0
        %v2995 = vsel %vm2402, %v2946, 0
        %v2998 = vsel %vm2402, %v2947, 0
        %v3001 = vsel %vm2402, %v2948, 0
        %v3004 = vsel %vm2402, %v2949, 0
        %3006 = vmatpush.bf16.xpose.msra.mxu0 %v2980
        %3007 = vmatpush.bf16.xpose.msra.mxu0 %v2977
        %3008 = vmatpush.bf16.xpose.msra.mxu0 %v2974
        %3009 = vmatpush.bf16.xpose.msra.mxu0 %v2971
        %3010 = vmatpush.bf16.xpose.msra.mxu0 %v2968
        %3011 = vmatpush.bf16.xpose.msra.mxu0 %v2965
        %3012 = vmatpush.bf16.xpose.msra.mxu0 %v2962
        %3013 = vmatpush.bf16.xpose.msra.mxu0 %v2959
        %3014 = vmatmul.bf16.gmra.mxu0 %v2956
        %v3015 = vpop.f32.mrf.mxu0
        %v3016 = vadd.f32 0.0, %v3015
        %v3017 = vpop.f32.mrf.mxu0
        %v3018 = vadd.f32 0.0, %v3017
        %3019 = vdwg.mxu0
        %3020 = vmatpush.bf16.xpose.msra.mxu0 %v3004
        %3021 = vmatpush.bf16.xpose.msra.mxu0 %v3001
        %3022 = vmatpush.bf16.xpose.msra.mxu0 %v2998
        %3023 = vmatpush.bf16.xpose.msra.mxu0 %v2995
        %3024 = vmatpush.bf16.xpose.msra.mxu0 %v2992
        %3025 = vmatpush.bf16.xpose.msra.mxu0 %v2989
        %3026 = vmatpush.bf16.xpose.msra.mxu0 %v2986
        %3027 = vmatpush.bf16.xpose.msra.mxu0 %v2983
        %3028 = vmatmul.bf16.gmra.mxu0 %v2956
        %v3029 = vpop.f32.mrf.mxu0
        %v3030 = vadd.f32 0.0, %v3029
        %v3031 = vpop.f32.mrf.mxu0
        %v3032 = vadd.f32 0.0, %v3031
        %3033 = vdwg.mxu0
        %v3034 = vadd.f32 %v2895, %v3016
        %v3035 = vadd.f32 %v2896, %v3030
        %v3036 = vadd.f32 %v2897, %v3018
        %v3037 = vadd.f32 %v2898, %v3032
        %v3038 = vld [vmem:[%s2458 + $0x1] sm:$0xff]
        %v3039 = vld [vmem:[%s2458 + $0x9] sm:$0xff]
        %v3040 = vld [vmem:[%s2458 + $0x19] sm:$0xff]
        %v3041 = vld [vmem:[%s2458 + $0x21] sm:$0xff]
        %v3042 = vld [vmem:[%s2458 + $0x31] sm:$0xff]
        %v3043 = vld [vmem:[%s2458 + $0x39] sm:$0xff]
        %v3044 = vld [vmem:[%s2458 + $0x49] sm:$0xff]
        %v3045 = vld [vmem:[%s2458 + $0x51] sm:$0xff]
        %v3046 = vld [vmem:[%s2458 + $0x61] sm:$0xff]
        %v3047 = vld [vmem:[%s2458 + $0x69] sm:$0xff]
        %v3048 = vld [vmem:[%s2458 + $0x79] sm:$0xff]
        %v3049 = vld [vmem:[%s2458 + $0x81] sm:$0xff]
        %v3050 = vld [vmem:[%s2458 + $0x91] sm:$0xff]
        %v3051 = vld [vmem:[%s2458 + $0x99] sm:$0xff]
        %v3052 = vld [vmem:[%s2458 + $0xa9] sm:$0xff]
        %v3053 = vld [vmem:[%s2458 + $0xb1] sm:$0xff]
        %v3054 = vld [vmem:[%s2458 + $0xc1] sm:$0xff]
        %v3055 = vld [vmem:[%s2458 + $0xc9] sm:$0xff]
        %v3056 = vld [vmem:[%s2458 + $0xd9] sm:$0xff]
        %v3057 = vld [vmem:[%s2458 + $0xe1] sm:$0xff]
        %v3058 = vld [vmem:[%s2458 + $0xf1] sm:$0xff]
        %v3059 = vld [vmem:[%s2458 + $0xf9] sm:$0xff]
        %v3060 = vld [vmem:[%s2458 + $0x109] sm:$0xff]
        %v3061 = vld [vmem:[%s2458 + $0x111] sm:$0xff]
        %v3062 = vld [vmem:[%s2458 + $0x121] sm:$0xff]
        %v3063 = vld [vmem:[%s2458 + $0x129] sm:$0xff]
        %v3064 = vld [vmem:[%s2458 + $0x139] sm:$0xff]
        %v3065 = vld [vmem:[%s2458 + $0x141] sm:$0xff]
        %v3066 = vld [vmem:[%s2458 + $0x151] sm:$0xff]
        %v3067 = vld [vmem:[%s2458 + $0x159] sm:$0xff]
        %v3068 = vld [vmem:[%s2458 + $0x169] sm:$0xff]
        %v3069 = vld [vmem:[%s2458 + $0x171] sm:$0xff]
        %s3070 = scalar_lea.vmem %s3, 32
        %v3071 = vld [vmem:[%s3070] sm:$0xf]
        %v3072 = vld [vmem:[%s3070 + $0x4] sm:$0xf]
        %v3073 = vpack.c.bf16 %v3039, %v3038
        %v3074 = vpack.c.bf16 %v3041, %v3040
        %v3075 = vpack.c.bf16 %v3043, %v3042
        %v3076 = vpack.c.bf16 %v3045, %v3044
        %v3077 = vpack.c.bf16 %v3047, %v3046
        %v3078 = vpack.c.bf16 %v3049, %v3048
        %v3079 = vpack.c.bf16 %v3051, %v3050
        %v3080 = vpack.c.bf16 %v3053, %v3052
        %v3081 = vpack.c.bf16 %v3055, %v3054
        %v3082 = vpack.c.bf16 %v3057, %v3056
        %v3083 = vpack.c.bf16 %v3059, %v3058
        %v3084 = vpack.c.bf16 %v3061, %v3060
        %v3085 = vpack.c.bf16 %v3063, %v3062
        %v3086 = vpack.c.bf16 %v3065, %v3064
        %v3087 = vpack.c.bf16 %v3067, %v3066
        %v3088 = vpack.c.bf16 %v3069, %v3068
        %v3091 = vunpack.c.l.b16 %v3071
        %v3092 = vunpack.c.l.b16 %v3072
        %v3093 = vpack.c.b16 %v3092, %v3091
        %v3095 = vsel %vm2402, %v3093, 0
        %v3098 = vsel %vm2402, %v3073, 0
        %v3101 = vsel %vm2402, %v3074, 0
        %v3104 = vsel %vm2402, %v3075, 0
        %v3107 = vsel %vm2402, %v3076, 0
        %v3110 = vsel %vm2402, %v3077, 0
        %v3113 = vsel %vm2402, %v3078, 0
        %v3116 = vsel %vm2402, %v3079, 0
        %v3119 = vsel %vm2402, %v3080, 0
        %v3122 = vsel %vm2402, %v3081, 0
        %v3125 = vsel %vm2402, %v3082, 0
        %v3128 = vsel %vm2402, %v3083, 0
        %v3131 = vsel %vm2402, %v3084, 0
        %v3134 = vsel %vm2402, %v3085, 0
        %v3137 = vsel %vm2402, %v3086, 0
        %v3140 = vsel %vm2402, %v3087, 0
        %v3143 = vsel %vm2402, %v3088, 0
        %3145 = vmatpush.bf16.xpose.msra.mxu0 %v3119
        %3146 = vmatpush.bf16.xpose.msra.mxu0 %v3116
        %3147 = vmatpush.bf16.xpose.msra.mxu0 %v3113
        %3148 = vmatpush.bf16.xpose.msra.mxu0 %v3110
        %3149 = vmatpush.bf16.xpose.msra.mxu0 %v3107
        %3150 = vmatpush.bf16.xpose.msra.mxu0 %v3104
        %3151 = vmatpush.bf16.xpose.msra.mxu0 %v3101
        %3152 = vmatpush.bf16.xpose.msra.mxu0 %v3098
        %3153 = vmatmul.bf16.gmra.mxu0 %v3095
        %v3154 = vpop.f32.mrf.mxu0
        %v3155 = vadd.f32 0.0, %v3154
        %v3156 = vpop.f32.mrf.mxu0
        %v3157 = vadd.f32 0.0, %v3156
        %3158 = vdwg.mxu0
        %3159 = vmatpush.bf16.xpose.msra.mxu0 %v3143
        %3160 = vmatpush.bf16.xpose.msra.mxu0 %v3140
        %3161 = vmatpush.bf16.xpose.msra.mxu0 %v3137
        %3162 = vmatpush.bf16.xpose.msra.mxu0 %v3134
        %3163 = vmatpush.bf16.xpose.msra.mxu0 %v3131
        %3164 = vmatpush.bf16.xpose.msra.mxu0 %v3128
        %3165 = vmatpush.bf16.xpose.msra.mxu0 %v3125
        %3166 = vmatpush.bf16.xpose.msra.mxu0 %v3122
        %3167 = vmatmul.bf16.gmra.mxu0 %v3095
        %v3168 = vpop.f32.mrf.mxu0
        %v3169 = vadd.f32 0.0, %v3168
        %v3170 = vpop.f32.mrf.mxu0
        %v3171 = vadd.f32 0.0, %v3170
        %3172 = vdwg.mxu0
        %v3173 = vadd.f32 %v3034, %v3155
        %v3174 = vadd.f32 %v3035, %v3169
        %v3175 = vadd.f32 %v3036, %v3157
        %v3176 = vadd.f32 %v3037, %v3171
        %v3177 = vld [vmem:[%s2458 + $0x2] sm:$0xff]
        %v3178 = vld [vmem:[%s2458 + $0xa] sm:$0xff]
        %v3179 = vld [vmem:[%s2458 + $0x1a] sm:$0xff]
        %v3180 = vld [vmem:[%s2458 + $0x22] sm:$0xff]
        %v3181 = vld [vmem:[%s2458 + $0x32] sm:$0xff]
        %v3182 = vld [vmem:[%s2458 + $0x3a] sm:$0xff]
        %v3183 = vld [vmem:[%s2458 + $0x4a] sm:$0xff]
        %v3184 = vld [vmem:[%s2458 + $0x52] sm:$0xff]
        %v3185 = vld [vmem:[%s2458 + $0x62] sm:$0xff]
        %v3186 = vld [vmem:[%s2458 + $0x6a] sm:$0xff]
        %v3187 = vld [vmem:[%s2458 + $0x7a] sm:$0xff]
        %v3188 = vld [vmem:[%s2458 + $0x82] sm:$0xff]
        %v3189 = vld [vmem:[%s2458 + $0x92] sm:$0xff]
        %v3190 = vld [vmem:[%s2458 + $0x9a] sm:$0xff]
        %v3191 = vld [vmem:[%s2458 + $0xaa] sm:$0xff]
        %v3192 = vld [vmem:[%s2458 + $0xb2] sm:$0xff]
        %v3193 = vld [vmem:[%s2458 + $0xc2] sm:$0xff]
        %v3194 = vld [vmem:[%s2458 + $0xca] sm:$0xff]
        %v3195 = vld [vmem:[%s2458 + $0xda] sm:$0xff]
        %v3196 = vld [vmem:[%s2458 + $0xe2] sm:$0xff]
        %v3197 = vld [vmem:[%s2458 + $0xf2] sm:$0xff]
        %v3198 = vld [vmem:[%s2458 + $0xfa] sm:$0xff]
        %v3199 = vld [vmem:[%s2458 + $0x10a] sm:$0xff]
        %v3200 = vld [vmem:[%s2458 + $0x112] sm:$0xff]
        %v3201 = vld [vmem:[%s2458 + $0x122] sm:$0xff]
        %v3202 = vld [vmem:[%s2458 + $0x12a] sm:$0xff]
        %v3203 = vld [vmem:[%s2458 + $0x13a] sm:$0xff]
        %v3204 = vld [vmem:[%s2458 + $0x142] sm:$0xff]
        %v3205 = vld [vmem:[%s2458 + $0x152] sm:$0xff]
        %v3206 = vld [vmem:[%s2458 + $0x15a] sm:$0xff]
        %v3207 = vld [vmem:[%s2458 + $0x16a] sm:$0xff]
        %v3208 = vld [vmem:[%s2458 + $0x172] sm:$0xff]
        %s3209 = scalar_lea.vmem %s3, 40
        %v3210 = vld [vmem:[%s3209] sm:$0xf]
        %v3211 = vld [vmem:[%s3209 + $0x4] sm:$0xf]
        %v3212 = vpack.c.bf16 %v3178, %v3177
        %v3213 = vpack.c.bf16 %v3180, %v3179
        %v3214 = vpack.c.bf16 %v3182, %v3181
        %v3215 = vpack.c.bf16 %v3184, %v3183
        %v3216 = vpack.c.bf16 %v3186, %v3185
        %v3217 = vpack.c.bf16 %v3188, %v3187
        %v3218 = vpack.c.bf16 %v3190, %v3189
        %v3219 = vpack.c.bf16 %v3192, %v3191
        %v3220 = vpack.c.bf16 %v3194, %v3193
        %v3221 = vpack.c.bf16 %v3196, %v3195
        %v3222 = vpack.c.bf16 %v3198, %v3197
        %v3223 = vpack.c.bf16 %v3200, %v3199
        %v3224 = vpack.c.bf16 %v3202, %v3201
        %v3225 = vpack.c.bf16 %v3204, %v3203
        %v3226 = vpack.c.bf16 %v3206, %v3205
        %v3227 = vpack.c.bf16 %v3208, %v3207
        %v3230 = vunpack.c.l.b16 %v3210
        %v3231 = vunpack.c.l.b16 %v3211
        %v3232 = vpack.c.b16 %v3231, %v3230
        %v3234 = vsel %vm2402, %v3232, 0
        %v3237 = vsel %vm2402, %v3212, 0
        %v3240 = vsel %vm2402, %v3213, 0
        %v3243 = vsel %vm2402, %v3214, 0
        %v3246 = vsel %vm2402, %v3215, 0
        %v3249 = vsel %vm2402, %v3216, 0
        %v3252 = vsel %vm2402, %v3217, 0
        %v3255 = vsel %vm2402, %v3218, 0
        %v3258 = vsel %vm2402, %v3219, 0
        %v3261 = vsel %vm2402, %v3220, 0
        %v3264 = vsel %vm2402, %v3221, 0
        %v3267 = vsel %vm2402, %v3222, 0
        %v3270 = vsel %vm2402, %v3223, 0
        %v3273 = vsel %vm2402, %v3224, 0
        %v3276 = vsel %vm2402, %v3225, 0
        %v3279 = vsel %vm2402, %v3226, 0
        %v3282 = vsel %vm2402, %v3227, 0
        %3284 = vmatpush.bf16.xpose.msra.mxu0 %v3258
        %3285 = vmatpush.bf16.xpose.msra.mxu0 %v3255
        %3286 = vmatpush.bf16.xpose.msra.mxu0 %v3252
        %3287 = vmatpush.bf16.xpose.msra.mxu0 %v3249
        %3288 = vmatpush.bf16.xpose.msra.mxu0 %v3246
        %3289 = vmatpush.bf16.xpose.msra.mxu0 %v3243
        %3290 = vmatpush.bf16.xpose.msra.mxu0 %v3240
        %3291 = vmatpush.bf16.xpose.msra.mxu0 %v3237
        %3292 = vmatmul.bf16.gmra.mxu0 %v3234
        %v3293 = vpop.f32.mrf.mxu0
        %v3294 = vadd.f32 0.0, %v3293
        %v3295 = vpop.f32.mrf.mxu0
        %v3296 = vadd.f32 0.0, %v3295
        %3297 = vdwg.mxu0
        %3298 = vmatpush.bf16.xpose.msra.mxu0 %v3282
        %3299 = vmatpush.bf16.xpose.msra.mxu0 %v3279
        %3300 = vmatpush.bf16.xpose.msra.mxu0 %v3276
        %3301 = vmatpush.bf16.xpose.msra.mxu0 %v3273
        %3302 = vmatpush.bf16.xpose.msra.mxu0 %v3270
        %3303 = vmatpush.bf16.xpose.msra.mxu0 %v3267
        %3304 = vmatpush.bf16.xpose.msra.mxu0 %v3264
        %3305 = vmatpush.bf16.xpose.msra.mxu0 %v3261
        %3306 = vmatmul.bf16.gmra.mxu0 %v3234
        %v3307 = vpop.f32.mrf.mxu0
        %v3308 = vadd.f32 0.0, %v3307
        %v3309 = vpop.f32.mrf.mxu0
        %v3310 = vadd.f32 0.0, %v3309
        %3311 = vdwg.mxu0
        %v3312 = vadd.f32 %v3173, %v3294
        %v3313 = vadd.f32 %v3174, %v3308
        %v3314 = vadd.f32 %v3175, %v3296
        %v3315 = vadd.f32 %v3176, %v3310
        %s3316 = scalar_lea.vmem [#allocation3], 48
        %v3317 = vld [vmem:[%s3316] sm:$0xff]
        %v3318 = vld [vmem:[%s3316 + $0x8] sm:$0xff]
        %v3319 = vld [vmem:[%s3316 + $0x18] sm:$0xff]
        %v3320 = vld [vmem:[%s3316 + $0x20] sm:$0xff]
        %v3321 = vld [vmem:[%s3316 + $0x30] sm:$0xff]
        %v3322 = vld [vmem:[%s3316 + $0x38] sm:$0xff]
        %v3323 = vld [vmem:[%s3316 + $0x48] sm:$0xff]
        %v3324 = vld [vmem:[%s3316 + $0x50] sm:$0xff]
        %v3325 = vld [vmem:[%s3316 + $0x60] sm:$0xff]
        %v3326 = vld [vmem:[%s3316 + $0x68] sm:$0xff]
        %v3327 = vld [vmem:[%s3316 + $0x78] sm:$0xff]
        %v3328 = vld [vmem:[%s3316 + $0x80] sm:$0xff]
        %v3329 = vld [vmem:[%s3316 + $0x90] sm:$0xff]
        %v3330 = vld [vmem:[%s3316 + $0x98] sm:$0xff]
        %v3331 = vld [vmem:[%s3316 + $0xa8] sm:$0xff]
        %v3332 = vld [vmem:[%s3316 + $0xb0] sm:$0xff]
        %v3333 = vld [vmem:[%s3316 + $0xc0] sm:$0xff]
        %v3334 = vld [vmem:[%s3316 + $0xc8] sm:$0xff]
        %v3335 = vld [vmem:[%s3316 + $0xd8] sm:$0xff]
        %v3336 = vld [vmem:[%s3316 + $0xe0] sm:$0xff]
        %v3337 = vld [vmem:[%s3316 + $0xf0] sm:$0xff]
        %v3338 = vld [vmem:[%s3316 + $0xf8] sm:$0xff]
        %v3339 = vld [vmem:[%s3316 + $0x108] sm:$0xff]
        %v3340 = vld [vmem:[%s3316 + $0x110] sm:$0xff]
        %v3341 = vld [vmem:[%s3316 + $0x120] sm:$0xff]
        %v3342 = vld [vmem:[%s3316 + $0x128] sm:$0xff]
        %v3343 = vld [vmem:[%s3316 + $0x138] sm:$0xff]
        %v3344 = vld [vmem:[%s3316 + $0x140] sm:$0xff]
        %v3345 = vld [vmem:[%s3316 + $0x150] sm:$0xff]
        %v3346 = vld [vmem:[%s3316 + $0x158] sm:$0xff]
        %v3347 = vld [vmem:[%s3316 + $0x168] sm:$0xff]
        %v3348 = vld [vmem:[%s3316 + $0x170] sm:$0xff]
        %s3349 = scalar_lea.vmem %s3, 48
        %v3350 = vld [vmem:[%s3349] sm:$0xf]
        %v3351 = vld [vmem:[%s3349 + $0x4] sm:$0xf]
        %v3352 = vpack.c.bf16 %v3318, %v3317
        %v3353 = vpack.c.bf16 %v3320, %v3319
        %v3354 = vpack.c.bf16 %v3322, %v3321
        %v3355 = vpack.c.bf16 %v3324, %v3323
        %v3356 = vpack.c.bf16 %v3326, %v3325
        %v3357 = vpack.c.bf16 %v3328, %v3327
        %v3358 = vpack.c.bf16 %v3330, %v3329
        %v3359 = vpack.c.bf16 %v3332, %v3331
        %v3360 = vpack.c.bf16 %v3334, %v3333
        %v3361 = vpack.c.bf16 %v3336, %v3335
        %v3362 = vpack.c.bf16 %v3338, %v3337
        %v3363 = vpack.c.bf16 %v3340, %v3339
        %v3364 = vpack.c.bf16 %v3342, %v3341
        %v3365 = vpack.c.bf16 %v3344, %v3343
        %v3366 = vpack.c.bf16 %v3346, %v3345
        %v3367 = vpack.c.bf16 %v3348, %v3347
        %v3370 = vunpack.c.l.b16 %v3350
        %v3371 = vunpack.c.l.b16 %v3351
        %v3372 = vpack.c.b16 %v3371, %v3370
        %v3374 = vsel %vm2402, %v3372, 0
        %v3377 = vsel %vm2402, %v3352, 0
        %v3380 = vsel %vm2402, %v3353, 0
        %v3383 = vsel %vm2402, %v3354, 0
        %v3386 = vsel %vm2402, %v3355, 0
        %v3389 = vsel %vm2402, %v3356, 0
        %v3392 = vsel %vm2402, %v3357, 0
        %v3395 = vsel %vm2402, %v3358, 0
        %v3398 = vsel %vm2402, %v3359, 0
        %v3401 = vsel %vm2402, %v3360, 0
        %v3404 = vsel %vm2402, %v3361, 0
        %v3407 = vsel %vm2402, %v3362, 0
        %v3410 = vsel %vm2402, %v3363, 0
        %v3413 = vsel %vm2402, %v3364, 0
        %v3416 = vsel %vm2402, %v3365, 0
        %v3419 = vsel %vm2402, %v3366, 0
        %v3422 = vsel %vm2402, %v3367, 0
        %3424 = vmatpush.bf16.xpose.msra.mxu0 %v3398
        %3425 = vmatpush.bf16.xpose.msra.mxu0 %v3395
        %3426 = vmatpush.bf16.xpose.msra.mxu0 %v3392
        %3427 = vmatpush.bf16.xpose.msra.mxu0 %v3389
        %3428 = vmatpush.bf16.xpose.msra.mxu0 %v3386
        %3429 = vmatpush.bf16.xpose.msra.mxu0 %v3383
        %3430 = vmatpush.bf16.xpose.msra.mxu0 %v3380
        %3431 = vmatpush.bf16.xpose.msra.mxu0 %v3377
        %3432 = vmatmul.bf16.gmra.mxu0 %v3374
        %v3433 = vpop.f32.mrf.mxu0
        %v3434 = vadd.f32 0.0, %v3433
        %v3435 = vpop.f32.mrf.mxu0
        %v3436 = vadd.f32 0.0, %v3435
        %3437 = vdwg.mxu0
        %3438 = vmatpush.bf16.xpose.msra.mxu0 %v3422
        %3439 = vmatpush.bf16.xpose.msra.mxu0 %v3419
        %3440 = vmatpush.bf16.xpose.msra.mxu0 %v3416
        %3441 = vmatpush.bf16.xpose.msra.mxu0 %v3413
        %3442 = vmatpush.bf16.xpose.msra.mxu0 %v3410
        %3443 = vmatpush.bf16.xpose.msra.mxu0 %v3407
        %3444 = vmatpush.bf16.xpose.msra.mxu0 %v3404
        %3445 = vmatpush.bf16.xpose.msra.mxu0 %v3401
        %3446 = vmatmul.bf16.gmra.mxu0 %v3374
        %v3447 = vpop.f32.mrf.mxu0
        %v3448 = vadd.f32 0.0, %v3447
        %v3449 = vpop.f32.mrf.mxu0
        %v3450 = vadd.f32 0.0, %v3449
        %3451 = vdwg.mxu0
        %v3452 = vadd.f32 %v3312, %v3434
        %v3453 = vadd.f32 %v3313, %v3448
        %v3454 = vadd.f32 %v3314, %v3436
        %v3455 = vadd.f32 %v3315, %v3450
        %v3456 = vld [vmem:[%s3316 + $0x1] sm:$0xff]
        %v3457 = vld [vmem:[%s3316 + $0x9] sm:$0xff]
        %v3458 = vld [vmem:[%s3316 + $0x19] sm:$0xff]
        %v3459 = vld [vmem:[%s3316 + $0x21] sm:$0xff]
        %v3460 = vld [vmem:[%s3316 + $0x31] sm:$0xff]
        %v3461 = vld [vmem:[%s3316 + $0x39] sm:$0xff]
        %v3462 = vld [vmem:[%s3316 + $0x49] sm:$0xff]
        %v3463 = vld [vmem:[%s3316 + $0x51] sm:$0xff]
        %v3464 = vld [vmem:[%s3316 + $0x61] sm:$0xff]
        %v3465 = vld [vmem:[%s3316 + $0x69] sm:$0xff]
        %v3466 = vld [vmem:[%s3316 + $0x79] sm:$0xff]
        %v3467 = vld [vmem:[%s3316 + $0x81] sm:$0xff]
        %v3468 = vld [vmem:[%s3316 + $0x91] sm:$0xff]
        %v3469 = vld [vmem:[%s3316 + $0x99] sm:$0xff]
        %v3470 = vld [vmem:[%s3316 + $0xa9] sm:$0xff]
        %v3471 = vld [vmem:[%s3316 + $0xb1] sm:$0xff]
        %v3472 = vld [vmem:[%s3316 + $0xc1] sm:$0xff]
        %v3473 = vld [vmem:[%s3316 + $0xc9] sm:$0xff]
        %v3474 = vld [vmem:[%s3316 + $0xd9] sm:$0xff]
        %v3475 = vld [vmem:[%s3316 + $0xe1] sm:$0xff]
        %v3476 = vld [vmem:[%s3316 + $0xf1] sm:$0xff]
        %v3477 = vld [vmem:[%s3316 + $0xf9] sm:$0xff]
        %v3478 = vld [vmem:[%s3316 + $0x109] sm:$0xff]
        %v3479 = vld [vmem:[%s3316 + $0x111] sm:$0xff]
        %v3480 = vld [vmem:[%s3316 + $0x121] sm:$0xff]
        %v3481 = vld [vmem:[%s3316 + $0x129] sm:$0xff]
        %v3482 = vld [vmem:[%s3316 + $0x139] sm:$0xff]
        %v3483 = vld [vmem:[%s3316 + $0x141] sm:$0xff]
        %v3484 = vld [vmem:[%s3316 + $0x151] sm:$0xff]
        %v3485 = vld [vmem:[%s3316 + $0x159] sm:$0xff]
        %v3486 = vld [vmem:[%s3316 + $0x169] sm:$0xff]
        %v3487 = vld [vmem:[%s3316 + $0x171] sm:$0xff]
        %s3488 = scalar_lea.vmem %s3, 56
        %v3489 = vld [vmem:[%s3488] sm:$0xf]
        %v3490 = vld [vmem:[%s3488 + $0x4] sm:$0xf]
        %v3491 = vpack.c.bf16 %v3457, %v3456
        %v3492 = vpack.c.bf16 %v3459, %v3458
        %v3493 = vpack.c.bf16 %v3461, %v3460
        %v3494 = vpack.c.bf16 %v3463, %v3462
        %v3495 = vpack.c.bf16 %v3465, %v3464
        %v3496 = vpack.c.bf16 %v3467, %v3466
        %v3497 = vpack.c.bf16 %v3469, %v3468
        %v3498 = vpack.c.bf16 %v3471, %v3470
        %v3499 = vpack.c.bf16 %v3473, %v3472
        %v3500 = vpack.c.bf16 %v3475, %v3474
        %v3501 = vpack.c.bf16 %v3477, %v3476
        %v3502 = vpack.c.bf16 %v3479, %v3478
        %v3503 = vpack.c.bf16 %v3481, %v3480
        %v3504 = vpack.c.bf16 %v3483, %v3482
        %v3505 = vpack.c.bf16 %v3485, %v3484
        %v3506 = vpack.c.bf16 %v3487, %v3486
        %v3509 = vunpack.c.l.b16 %v3489
        %v3510 = vunpack.c.l.b16 %v3490
        %v3511 = vpack.c.b16 %v3510, %v3509
        %v3513 = vsel %vm2402, %v3511, 0
        %v3516 = vsel %vm2402, %v3491, 0
        %v3519 = vsel %vm2402, %v3492, 0
        %v3522 = vsel %vm2402, %v3493, 0
        %v3525 = vsel %vm2402, %v3494, 0
        %v3528 = vsel %vm2402, %v3495, 0
        %v3531 = vsel %vm2402, %v3496, 0
        %v3534 = vsel %vm2402, %v3497, 0
        %v3537 = vsel %vm2402, %v3498, 0
        %v3540 = vsel %vm2402, %v3499, 0
        %v3543 = vsel %vm2402, %v3500, 0
        %v3546 = vsel %vm2402, %v3501, 0
        %v3549 = vsel %vm2402, %v3502, 0
        %v3552 = vsel %vm2402, %v3503, 0
        %v3555 = vsel %vm2402, %v3504, 0
        %v3558 = vsel %vm2402, %v3505, 0
        %v3561 = vsel %vm2402, %v3506, 0
        %3563 = vmatpush.bf16.xpose.msra.mxu0 %v3537
        %3564 = vmatpush.bf16.xpose.msra.mxu0 %v3534
        %3565 = vmatpush.bf16.xpose.msra.mxu0 %v3531
        %3566 = vmatpush.bf16.xpose.msra.mxu0 %v3528
        %3567 = vmatpush.bf16.xpose.msra.mxu0 %v3525
        %3568 = vmatpush.bf16.xpose.msra.mxu0 %v3522
        %3569 = vmatpush.bf16.xpose.msra.mxu0 %v3519
        %3570 = vmatpush.bf16.xpose.msra.mxu0 %v3516
        %3571 = vmatmul.bf16.gmra.mxu0 %v3513
        %v3572 = vpop.f32.mrf.mxu0
        %v3573 = vadd.f32 0.0, %v3572
        %v3574 = vpop.f32.mrf.mxu0
        %v3575 = vadd.f32 0.0, %v3574
        %3576 = vdwg.mxu0
        %3577 = vmatpush.bf16.xpose.msra.mxu0 %v3561
        %3578 = vmatpush.bf16.xpose.msra.mxu0 %v3558
        %3579 = vmatpush.bf16.xpose.msra.mxu0 %v3555
        %3580 = vmatpush.bf16.xpose.msra.mxu0 %v3552
        %3581 = vmatpush.bf16.xpose.msra.mxu0 %v3549
        %3582 = vmatpush.bf16.xpose.msra.mxu0 %v3546
        %3583 = vmatpush.bf16.xpose.msra.mxu0 %v3543
        %3584 = vmatpush.bf16.xpose.msra.mxu0 %v3540
        %3585 = vmatmul.bf16.gmra.mxu0 %v3513
        %v3586 = vpop.f32.mrf.mxu0
        %v3587 = vadd.f32 0.0, %v3586
        %v3588 = vpop.f32.mrf.mxu0
        %v3589 = vadd.f32 0.0, %v3588
        %3590 = vdwg.mxu0
        %v3591 = vadd.f32 %v3452, %v3573
        %v3592 = vadd.f32 %v3453, %v3587
        %v3593 = vadd.f32 %v3454, %v3575
        %v3594 = vadd.f32 %v3455, %v3589
        %v3595 = vld [vmem:[%s3316 + $0x2] sm:$0xff]
        %v3596 = vld [vmem:[%s3316 + $0xa] sm:$0xff]
        %v3597 = vld [vmem:[%s3316 + $0x1a] sm:$0xff]
        %v3598 = vld [vmem:[%s3316 + $0x22] sm:$0xff]
        %v3599 = vld [vmem:[%s3316 + $0x32] sm:$0xff]
        %v3600 = vld [vmem:[%s3316 + $0x3a] sm:$0xff]
        %v3601 = vld [vmem:[%s3316 + $0x4a] sm:$0xff]
        %v3602 = vld [vmem:[%s3316 + $0x52] sm:$0xff]
        %v3603 = vld [vmem:[%s3316 + $0x62] sm:$0xff]
        %v3604 = vld [vmem:[%s3316 + $0x6a] sm:$0xff]
        %v3605 = vld [vmem:[%s3316 + $0x7a] sm:$0xff]
        %v3606 = vld [vmem:[%s3316 + $0x82] sm:$0xff]
        %v3607 = vld [vmem:[%s3316 + $0x92] sm:$0xff]
        %v3608 = vld [vmem:[%s3316 + $0x9a] sm:$0xff]
        %v3609 = vld [vmem:[%s3316 + $0xaa] sm:$0xff]
        %v3610 = vld [vmem:[%s3316 + $0xb2] sm:$0xff]
        %v3611 = vld [vmem:[%s3316 + $0xc2] sm:$0xff]
        %v3612 = vld [vmem:[%s3316 + $0xca] sm:$0xff]
        %v3613 = vld [vmem:[%s3316 + $0xda] sm:$0xff]
        %v3614 = vld [vmem:[%s3316 + $0xe2] sm:$0xff]
        %v3615 = vld [vmem:[%s3316 + $0xf2] sm:$0xff]
        %v3616 = vld [vmem:[%s3316 + $0xfa] sm:$0xff]
        %v3617 = vld [vmem:[%s3316 + $0x10a] sm:$0xff]
        %v3618 = vld [vmem:[%s3316 + $0x112] sm:$0xff]
        %v3619 = vld [vmem:[%s3316 + $0x122] sm:$0xff]
        %v3620 = vld [vmem:[%s3316 + $0x12a] sm:$0xff]
        %v3621 = vld [vmem:[%s3316 + $0x13a] sm:$0xff]
        %v3622 = vld [vmem:[%s3316 + $0x142] sm:$0xff]
        %v3623 = vld [vmem:[%s3316 + $0x152] sm:$0xff]
        %v3624 = vld [vmem:[%s3316 + $0x15a] sm:$0xff]
        %v3625 = vld [vmem:[%s3316 + $0x16a] sm:$0xff]
        %v3626 = vld [vmem:[%s3316 + $0x172] sm:$0xff]
        %s3627 = scalar_lea.vmem %s3, 64
        %v3628 = vld [vmem:[%s3627] sm:$0xf]
        %v3629 = vld [vmem:[%s3627 + $0x4] sm:$0xf]
        %v3630 = vpack.c.bf16 %v3596, %v3595
        %v3631 = vpack.c.bf16 %v3598, %v3597
        %v3632 = vpack.c.bf16 %v3600, %v3599
        %v3633 = vpack.c.bf16 %v3602, %v3601
        %v3634 = vpack.c.bf16 %v3604, %v3603
        %v3635 = vpack.c.bf16 %v3606, %v3605
        %v3636 = vpack.c.bf16 %v3608, %v3607
        %v3637 = vpack.c.bf16 %v3610, %v3609
        %v3638 = vpack.c.bf16 %v3612, %v3611
        %v3639 = vpack.c.bf16 %v3614, %v3613
        %v3640 = vpack.c.bf16 %v3616, %v3615
        %v3641 = vpack.c.bf16 %v3618, %v3617
        %v3642 = vpack.c.bf16 %v3620, %v3619
        %v3643 = vpack.c.bf16 %v3622, %v3621
        %v3644 = vpack.c.bf16 %v3624, %v3623
        %v3645 = vpack.c.bf16 %v3626, %v3625
        %v3648 = vunpack.c.l.b16 %v3628
        %v3649 = vunpack.c.l.b16 %v3629
        %v3650 = vpack.c.b16 %v3649, %v3648
        %v3652 = vsel %vm2402, %v3650, 0
        %v3655 = vsel %vm2402, %v3630, 0
        %v3658 = vsel %vm2402, %v3631, 0
        %v3661 = vsel %vm2402, %v3632, 0
        %v3664 = vsel %vm2402, %v3633, 0
        %v3667 = vsel %vm2402, %v3634, 0
        %v3670 = vsel %vm2402, %v3635, 0
        %v3673 = vsel %vm2402, %v3636, 0
        %v3676 = vsel %vm2402, %v3637, 0
        %v3679 = vsel %vm2402, %v3638, 0
        %v3682 = vsel %vm2402, %v3639, 0
        %v3685 = vsel %vm2402, %v3640, 0
        %v3688 = vsel %vm2402, %v3641, 0
        %v3691 = vsel %vm2402, %v3642, 0
        %v3694 = vsel %vm2402, %v3643, 0
        %v3697 = vsel %vm2402, %v3644, 0
        %v3700 = vsel %vm2402, %v3645, 0
        %3702 = vmatpush.bf16.xpose.msra.mxu0 %v3676
        %3703 = vmatpush.bf16.xpose.msra.mxu0 %v3673
        %3704 = vmatpush.bf16.xpose.msra.mxu0 %v3670
        %3705 = vmatpush.bf16.xpose.msra.mxu0 %v3667
        %3706 = vmatpush.bf16.xpose.msra.mxu0 %v3664
        %3707 = vmatpush.bf16.xpose.msra.mxu0 %v3661
        %3708 = vmatpush.bf16.xpose.msra.mxu0 %v3658
        %3709 = vmatpush.bf16.xpose.msra.mxu0 %v3655
        %3710 = vmatmul.bf16.gmra.mxu0 %v3652
        %v3711 = vpop.f32.mrf.mxu0
        %v3712 = vadd.f32 0.0, %v3711
        %v3713 = vpop.f32.mrf.mxu0
        %v3714 = vadd.f32 0.0, %v3713
        %3715 = vdwg.mxu0
        %3716 = vmatpush.bf16.xpose.msra.mxu0 %v3700
        %3717 = vmatpush.bf16.xpose.msra.mxu0 %v3697
        %3718 = vmatpush.bf16.xpose.msra.mxu0 %v3694
        %3719 = vmatpush.bf16.xpose.msra.mxu0 %v3691
        %3720 = vmatpush.bf16.xpose.msra.mxu0 %v3688
        %3721 = vmatpush.bf16.xpose.msra.mxu0 %v3685
        %3722 = vmatpush.bf16.xpose.msra.mxu0 %v3682
        %3723 = vmatpush.bf16.xpose.msra.mxu0 %v3679
        %3724 = vmatmul.bf16.gmra.mxu0 %v3652
        %v3725 = vpop.f32.mrf.mxu0
        %v3726 = vadd.f32 0.0, %v3725
        %v3727 = vpop.f32.mrf.mxu0
        %v3728 = vadd.f32 0.0, %v3727
        %3729 = vdwg.mxu0
        %v3730 = vadd.f32 %v3591, %v3712
        %v3731 = vadd.f32 %v3592, %v3726
        %v3732 = vadd.f32 %v3593, %v3714
        %v3733 = vadd.f32 %v3594, %v3728
        %v3734 = vld [vmem:[%s4] sm:$0xff]
        %v3735 = vld [vmem:[%s4 + $0x8] sm:$0xff]
        %3737 = vset.pattern.permute.xlu0 0
        %3738 = vperm.xlu0 %3737, %v3734
        %v3739 = vpop.permute.xlu0 %3738
        %3742 = vset.pattern.permute.xlu0 0
        %3743 = vperm.xlu0 %3742, %v3735
        %v3744 = vpop.permute.xlu0 %3743
        %v3746 = vadd.f32 %v3730, %v3739
        %v3747 = vadd.f32 %v3731, %v3739
        %v3748 = vadd.f32 %v3732, %v3744
        %v3749 = vadd.f32 %v3733, %v3744
        %v3750 = vld [vmem:[%s5] sm:$0xff]
        %v3751 = vld [vmem:[%s5 + $0x8] sm:$0xff]
        %v3753 = vsel %vm310, %v3750, 0
        %v3756 = vsel %vm310, %v3751, 0
        %v3759 = vsel %vm310, %v278, 0
        %v3762 = vsel %vm310, %v279, 0
        %v3765 = vsel %vm310, %v280, 0
        %v3768 = vsel %vm310, %v281, 0
        %v3771 = vsel %vm310, %v282, 0
        %v3774 = vsel %vm310, %v283, 0
        %v3777 = vsel %vm310, %v284, 0
        %v3780 = vsel %vm310, %v285, 0
        %v3783 = vsel %vm310, %v286, 0
        %v3786 = vsel %vm310, %v287, 0
        %v3789 = vsel %vm310, %v288, 0
        %v3792 = vsel %vm310, %v289, 0
        %v3795 = vsel %vm310, %v290, 0
        %v3798 = vsel %vm310, %v291, 0
        %v3801 = vsel %vm310, %v292, 0
        %v3804 = vsel %vm310, %v293, 0
        %v3807 = vsel %vm310, %v294, 0
        %v3810 = vsel %vm310, %v295, 0
        %v3813 = vsel %vm310, %v296, 0
        %v3816 = vsel %vm310, %v297, 0
        %v3819 = vsel %vm310, %v298, 0
        %v3822 = vsel %vm310, %v299, 0
        %v3825 = vsel %vm310, %v300, 0
        %v3828 = vsel %vm310, %v301, 0
        %v3831 = vsel %vm310, %v302, 0
        %v3834 = vsel %vm310, %v303, 0
        %v3837 = vsel %vm310, %v304, 0
        %v3840 = vsel %vm310, %v305, 0
        %v3843 = vsel %vm310, %v306, 0
        %v3846 = vsel %vm310, %v307, 0
        %v3849 = vsel %vm310, %v308, 0
        %v3852 = vsel %vm310, %v309, 0
        %3854 = vmatpush.xpose.msra.mxu0 %v3804
        %3855 = vmatpush.xpose.msra.mxu0 %v3801
        %3856 = vmatpush.xpose.msra.mxu0 %v3798
        %3857 = vmatpush.xpose.msra.mxu0 %v3795
        %3858 = vmatpush.xpose.msra.mxu0 %v3792
        %3859 = vmatpush.xpose.msra.mxu0 %v3789
        %3860 = vmatpush.xpose.msra.mxu0 %v3786
        %3861 = vmatpush.xpose.msra.mxu0 %v3783
        %3862 = vmatpush.xpose.msra.mxu0 %v3780
        %3863 = vmatpush.xpose.msra.mxu0 %v3777
        %3864 = vmatpush.xpose.msra.mxu0 %v3774
        %3865 = vmatpush.xpose.msra.mxu0 %v3771
        %3866 = vmatpush.xpose.msra.mxu0 %v3768
        %3867 = vmatpush.xpose.msra.mxu0 %v3765
        %3868 = vmatpush.xpose.msra.mxu0 %v3762
        %3869 = vmatpush.xpose.msra.mxu0 %v3759
        %3870 = vmatmul.f32.gmra.mxu0 %v3753
        %v3871 = vpop.f32.mrf.mxu0
        %v3872 = vadd.f32 0.0, %v3871
        %3873 = vmatmul.f32.gmra.mxu0 %v3756
        %v3874 = vpop.f32.mrf.mxu0
        %v3875 = vadd.f32 0.0, %v3874
        %3876 = vdwg.mxu0
        %3877 = vmatpush.xpose.msra.mxu0 %v3852
        %3878 = vmatpush.xpose.msra.mxu0 %v3849
        %3879 = vmatpush.xpose.msra.mxu0 %v3846
        %3880 = vmatpush.xpose.msra.mxu0 %v3843
        %3881 = vmatpush.xpose.msra.mxu0 %v3840
        %3882 = vmatpush.xpose.msra.mxu0 %v3837
        %3883 = vmatpush.xpose.msra.mxu0 %v3834
        %3884 = vmatpush.xpose.msra.mxu0 %v3831
        %3885 = vmatpush.xpose.msra.mxu0 %v3828
        %3886 = vmatpush.xpose.msra.mxu0 %v3825
        %3887 = vmatpush.xpose.msra.mxu0 %v3822
        %3888 = vmatpush.xpose.msra.mxu0 %v3819
        %3889 = vmatpush.xpose.msra.mxu0 %v3816
        %3890 = vmatpush.xpose.msra.mxu0 %v3813
        %3891 = vmatpush.xpose.msra.mxu0 %v3810
        %3892 = vmatpush.xpose.msra.mxu0 %v3807
        %3893 = vmatmul.f32.gmra.mxu0 %v3753
        %v3894 = vpop.f32.mrf.mxu0
        %v3895 = vadd.f32 0.0, %v3894
        %3896 = vmatmul.f32.gmra.mxu0 %v3756
        %v3897 = vpop.f32.mrf.mxu0
        %v3898 = vadd.f32 0.0, %v3897
        %3899 = vdwg.mxu0
        %v3900 = vadd.f32 %v3746, %v3872
        %v3901 = vadd.f32 %v3747, %v3895
        %v3902 = vadd.f32 %v3748, %v3875
        %v3903 = vadd.f32 %v3749, %v3898
        %v3904 = vld [vmem:[%s6] sm:$0xff]
        %v3905 = vld [vmem:[%s6 + $0x8] sm:$0xff]
        %3907 = vset.pattern.permute.xlu0 0
        %3908 = vperm.xlu0 %3907, %v3904
        %v3909 = vpop.permute.xlu0 %3908
        %3912 = vset.pattern.permute.xlu0 0
        %3913 = vperm.xlu0 %3912, %v3905
        %v3914 = vpop.permute.xlu0 %3913
        %v3916 = vadd.f32 %v3900, %v3909
        %v3917 = vadd.f32 %v3901, %v3909
        %v3918 = vadd.f32 %v3902, %v3914
        %v3919 = vadd.f32 %v3903, %v3914
        %3920 = vst [vmem:[%s271] sm:$0xff] %v3916
        %3921 = vst [vmem:[%s271 + $0x8] sm:$0xff] %v3917
        %3922 = vst [vmem:[%s271 + $0x10] sm:$0xff] %v3918
        %3923 = vst [vmem:[%s271 + $0x18] sm:$0xff] %v3919
        %s3924 = sand.u32 %s181, 1
        %s3925 = scalar_lea.sflag [#allocation5], %s3924
        %s3926 = sand.u32 %s181, 1
        %s3927 = smul.addr %s3926, 32
        %s3928 = scalar_lea.vmem [#allocation4], %s3927
        // Predicated region
        $region49: #{tpu_custom_call.1} parent=47 // pred_check
          %p3929 = pneg %p191
        $region50: #{tpu_custom_call.1} parent=47 // pred_check_branch
          %3931 = sbr.rel (%p3929) target = $region52
        $region51: #{tpu_custom_call.1} parent=47 // pred_region
          %3933 = vsyncadd %s3925, 0
          %s3934 = smul.addr %s21, 4
          %s3935 = smul.addr %s3934, 8
          %s3936 = scalar_lea.hbm %s7, %s3935
          %s3937 = sshll.u32 %s3928, 4
          %s3938 = int_to_ptr.vmem [resolvable:$true] %s3937
          %s3939 = sshll.u32 %s3936, 4
          %s3940 = int_to_ptr.hbm [resolvable:$true] %s3939
          %3945 = dma.vmem_to_hbm [thread:$0]  %s3938, 512, %s3940, %s3925, 256, 256, 16
        $region52: #{tpu_custom_call.1} parent=47 // pred_fallthru
          _
      $region48: #{tpu_custom_call.1} parent=5 // pred_fallthru
        _
      %p3946 = scmp.le.s32.totalorder 2, %s16
      // Predicated region
      $region53: #{tpu_custom_call.1} parent=5 // pred_check
        %p3947 = pneg %p3946
      $region54: #{tpu_custom_call.1} parent=5 // pred_check_branch
        %3949 = sbr.rel (%p3947) target = $region56
      $region55: #{tpu_custom_call.1} parent=5 // pred_region
        %s3950 = ssub.s32 %s16, 2
        // Predicated region
        $region57: #{tpu_custom_call.1} parent=55 // pred_check
          %p3951 = pneg %p197
        $region58: #{tpu_custom_call.1} parent=55 // pred_check_branch
          %3953 = sbr.rel (%p3951) target = $region60
        $region59: #{tpu_custom_call.1} parent=55 // pred_region
          %s3954 = sand.u32 %s182, 1
          %s3955 = scalar_lea.sflag [#allocation5], %s3954
          %s3956 = sand.u32 %s182, 1
          %s3957 = smul.addr %s3956, 32
          %s3958 = scalar_lea.vmem [#allocation4], %s3957
          %3960 = dma.done %s3955, 512
        $region60: #{tpu_custom_call.1} parent=55 // pred_fallthru
          _
      $region56: #{tpu_custom_call.1} parent=5 // pred_fallthru
        _
    $region6: #{tpu_custom_call.1} parent=1 // loop_footer
      %s20 = sadd.s32 1, %s16
    $region7: #{tpu_custom_call.1} parent=1 // loop_footer_branch
      %15 = sbr.rel target = $region3
    $region8: #{tpu_custom_call.1} parent=1 // loop_exit
      _
    %3961 = vsyncpa [#allocation5], 1
    %s3962 = scalar_lea.sflag [#allocation5], 1
    %3963 = vsyncpa %s3962, 1

</llo_original>
